<compile_context>
chip_gen: v5e
topology: v5e:2x2
jax: 0.10.0
libtpu: 0.0.40
codegen_flags: <defaults>
</compile_context>

<pallas_src>
import functools

import jax
import jax.numpy as jnp
from jax.experimental import pallas as pl
from jax.experimental.pallas import tpu as pltpu

LANE = 128
SUBLANE = 8
H_P = 512          # 400-wide hidden, padded to lane multiple
Z_P = 128          # latent widths padded to one lane
TILE_N = 512       # decoder-output lane tile streamed over the grid


# ----------------------------------------------------------------------------
# helpers
# ----------------------------------------------------------------------------
def _round_up(n, m):
    return ((n + m - 1) // m) * m


def _nbytes(shape, dtype):
    n = 1
    for d in shape:
        n *= int(d)
    return n * jnp.dtype(dtype).itemsize


# ----------------------------------------------------------------------------
# fused Pallas kernel
# ----------------------------------------------------------------------------
def _mlvae_kernel(
    x_ref, eps_s_ref, eps_C_ref,
    w_pre_ref, w_head_ref, w_d1_ref, b_enc_ref,
    w_d2_ref, b_d2_ref,
    recon_ref, mu_s_ref, var_s_ref, mu_C_ref, var_C_ref,
    h2_sc,
    *, batch,
):
    f32 = jnp.float32
    bf16 = jnp.bfloat16
    j = pl.program_id(0)

    # ---- encoder + heads + dec1: only on the first decoder tile -------------
    @pl.when(j == 0)
    def _():
        b_enc = b_enc_ref[...]                                   # (3, H_P) f32
        b_pre = b_enc[0:1, :]
        b_head = b_enc[1:2, :]
        b_d1 = b_enc[2:3, :]

        # pre-encoder: h = relu(x @ W_pre + b_pre)
        h = jnp.dot(x_ref[...].astype(bf16), w_pre_ref[...],
                    preferred_element_type=f32)
        h = jnp.maximum(h + b_pre, 0.0)

        # fused heads: one (bp, 512) @ (512, 512) pass, static 128-lane slices
        theta = jnp.dot(h.astype(bf16), w_head_ref[...],
                        preferred_element_type=f32) + b_head
        mu_s = theta[:, 0 * Z_P:1 * Z_P]
        lv_s = jnp.tanh(theta[:, 1 * Z_P:2 * Z_P])
        mu_c = theta[:, 2 * Z_P:3 * Z_P]
        lv_c = jnp.tanh(theta[:, 3 * Z_P:4 * Z_P])

        # local reparam: var = exp(tanh(.)), s = mu + eps * sqrt(var)
        std_s = jnp.exp(0.5 * lv_s)
        var_s = std_s * std_s                                    # == exp(lv_s)
        s = mu_s + eps_s_ref[...] * std_s
        mu_s_ref[...] = mu_s
        var_s_ref[...] = var_s

        # global product-of-experts over the (valid) batch rows
        prec = jnp.exp(-lv_c)                                    # exp(logvar)^-1
        row = jax.lax.broadcasted_iota(jnp.int32, prec.shape, 0)
        prec = jnp.where(row < batch, prec, 0.0)                 # mask padded rows
        sum_prec = jnp.sum(prec, axis=0, keepdims=True)          # (1, Z_P)
        var_c = 1.0 / sum_prec                                   # exact (output)
        mu_cg = var_c * jnp.sum(prec * mu_c, axis=0, keepdims=True)
        c = mu_cg + eps_C_ref[...] * jax.lax.rsqrt(sum_prec)     # std = var**0.5
        mu_C_ref[...] = mu_cg
        var_C_ref[...] = var_c

        # dec1: cat(s, C) -> (bp, 256) lane concat, one K=256 matmul
        cb = jnp.broadcast_to(c, s.shape)                        # (bp, Z_P)
        sc = jnp.concatenate([s, cb], axis=-1).astype(bf16)      # (bp, 2*Z_P)
        h2 = jnp.dot(sc, w_d1_ref[...], preferred_element_type=f32) + b_d1
        h2_sc[...] = jnp.maximum(h2, 0.0)

    # ---- decoder-2: one streamed output-lane tile per grid step -------------
    logits = jnp.dot(h2_sc[...].astype(bf16), w_d2_ref[...],
                     preferred_element_type=f32) + b_d2_ref[...]
    recon_ref[...] = jax.nn.sigmoid(logits)


# ----------------------------------------------------------------------------
# parameters (PyTorch-default Linear init, stored pre-padded / pre-packed)
# ----------------------------------------------------------------------------
def init_params(key, channels, dim_s, dim_C):
    d_in = channels * 784
    d_out_p = _round_up(d_in, TILE_N)
    f32, bf16 = jnp.float32, jnp.bfloat16

    def lin(k, fan_in, fan_out):
        k1, k2 = jax.random.split(k)
        bound = 1.0 / float(fan_in) ** 0.5      # PyTorch default Linear init
        w = jax.random.uniform(k1, (fan_in, fan_out), f32, -bound, bound)
        b = jax.random.uniform(k2, (fan_out,), f32, -bound, bound)
        return w, b

    keys = jax.random.split(key, 5)
    w_pre, b_pre = lin(keys[0], d_in, 400)          # nn.Linear(channels*784, 400)
    w_loc, b_loc = lin(keys[1], 400, 2 * dim_s)     # nn.Linear(400, dim_s*2)
    w_glo, b_glo = lin(keys[2], 400, 2 * dim_C)     # nn.Linear(400, dim_C*2)
    w_d1, b_d1 = lin(keys[3], dim_s + dim_C, 400)   # nn.Linear(dim_s+dim_C, 400)
    w_d2, b_d2 = lin(keys[4], 400, d_in)            # nn.Linear(400, channels*784)

    # pre-encoder weight: rows kept at d_in (multiple of 8), lanes 400 -> 512
    w_pre_p = jnp.zeros((d_in, H_P), f32).at[:, :400].set(w_pre)

    # fused head weight: [mu_s | lv_s | mu_C | lv_C] column blocks, 128 each
    w_head = jnp.zeros((H_P, 4 * Z_P), f32)
    w_head = w_head.at[:400, 0 * Z_P:0 * Z_P + dim_s].set(w_loc[:, :dim_s])
    w_head = w_head.at[:400, 1 * Z_P:1 * Z_P + dim_s].set(w_loc[:, dim_s:])
    w_head = w_head.at[:400, 2 * Z_P:2 * Z_P + dim_C].set(w_glo[:, :dim_C])
    w_head = w_head.at[:400, 3 * Z_P:3 * Z_P + dim_C].set(w_glo[:, dim_C:])

    # fused dec1 weight: [s-block ; C-block] stacked rows (K = 256)
    w_d1_p = jnp.zeros((2 * Z_P, H_P), f32)
    w_d1_p = w_d1_p.at[:dim_s, :400].set(w_d1[:dim_s, :])
    w_d1_p = w_d1_p.at[Z_P:Z_P + dim_C, :400].set(w_d1[dim_s:, :])

    # dec2 weight / bias, output lanes padded to TILE_N multiple for streaming
    w_d2_p = jnp.zeros((H_P, d_out_p), f32).at[:400, :d_in].set(w_d2)
    b_d2_p = jnp.zeros((1, d_out_p), f32).at[0, :d_in].set(b_d2)

    # packed small biases: row0 = b_pre, row1 = fused head bias, row2 = b_d1
    b_enc = jnp.zeros((3, H_P), f32)
    b_enc = b_enc.at[0, :400].set(b_pre)
    b_enc = b_enc.at[1, 0 * Z_P:0 * Z_P + dim_s].set(b_loc[:dim_s])
    b_enc = b_enc.at[1, 1 * Z_P:1 * Z_P + dim_s].set(b_loc[dim_s:])
    b_enc = b_enc.at[1, 2 * Z_P:2 * Z_P + dim_C].set(b_glo[:dim_C])
    b_enc = b_enc.at[1, 3 * Z_P:3 * Z_P + dim_C].set(b_glo[dim_C:])
    b_enc = b_enc.at[2, :400].set(b_d1)

    return dict(
        w_pre=w_pre_p.astype(bf16),
        w_head=w_head.astype(bf16),
        w_d1=w_d1_p.astype(bf16),
        w_d2=w_d2_p.astype(bf16),
        b_enc=b_enc,                 # f32 (tiny; added after f32 accumulation)
        b_d2=b_d2_p,                 # f32, streamed with w_d2
    )


# ----------------------------------------------------------------------------
# forward
# ----------------------------------------------------------------------------
def mlvae_forward(params, x, eps_s, eps_C, *, dim_s, dim_C, channels):
    B = x.shape[0]
    d_in = channels * 784
    d_out_p = _round_up(d_in, TILE_N)
    n_tiles = d_out_p // TILE_N
    bp = _round_up(max(B, SUBLANE), SUBLANE)          # batch padded to sublanes

    x_flat = x.reshape(B, d_in)                       # View((-1, channels*784))
    x_pad = jnp.zeros((bp, d_in), jnp.float32).at[:B, :].set(x_flat)
    eps_s_pad = jnp.zeros((bp, Z_P), jnp.float32).at[:B, :dim_s].set(eps_s)
    eps_C_pad = jnp.zeros((1, Z_P), jnp.float32).at[0, :dim_C].set(eps_C)

    operands = (
        x_pad, eps_s_pad, eps_C_pad,
        params["w_pre"], params["w_head"], params["w_d1"], params["b_enc"],
        params["w_d2"], params["b_d2"],
    )

    out_shapes = [
        jax.ShapeDtypeStruct((bp, d_out_p), jnp.float32),   # recon (padded)
        jax.ShapeDtypeStruct((bp, Z_P), jnp.float32),       # mu_s
        jax.ShapeDtypeStruct((bp, Z_P), jnp.float32),       # var_s
        jax.ShapeDtypeStruct((1, Z_P), jnp.float32),        # mu_C
        jax.ShapeDtypeStruct((1, Z_P), jnp.float32),        # var_C
    ]

    in_specs = [
        pl.BlockSpec((bp, d_in), lambda j: (0, 0)),         # x           (resident)
        pl.BlockSpec((bp, Z_P), lambda j: (0, 0)),          # eps_s       (resident)
        pl.BlockSpec((1, Z_P), lambda j: (0, 0)),           # eps_C       (resident)
        pl.BlockSpec((d_in, H_P), lambda j: (0, 0)),        # w_pre       (resident)
        pl.BlockSpec((H_P, 4 * Z_P), lambda j: (0, 0)),     # w_head      (resident)
        pl.BlockSpec((2 * Z_P, H_P), lambda j: (0, 0)),     # w_d1        (resident)
        pl.BlockSpec((3, H_P), lambda j: (0, 0)),           # packed biases
        pl.BlockSpec((H_P, TILE_N), lambda j: (0, j)),      # w_d2        (streamed)
        pl.BlockSpec((1, TILE_N), lambda j: (0, j)),        # b_d2        (streamed)
    ]
    out_specs = [
        pl.BlockSpec((bp, TILE_N), lambda j: (0, j)),       # recon       (streamed)
        pl.BlockSpec((bp, Z_P), lambda j: (0, 0)),          # mu_s
        pl.BlockSpec((bp, Z_P), lambda j: (0, 0)),          # var_s
        pl.BlockSpec((1, Z_P), lambda j: (0, 0)),           # mu_C
        pl.BlockSpec((1, Z_P), lambda j: (0, 0)),           # var_C
    ]

    flops = 2 * bp * (d_in * H_P + H_P * 4 * Z_P + 2 * Z_P * H_P + H_P * d_out_p)
    transcendentals = bp * (5 * Z_P + d_out_p)              # tanh/exp heads + sigmoid
    bytes_accessed = (
        sum(_nbytes(a.shape, a.dtype) for a in operands)
        + sum(_nbytes(s.shape, s.dtype) for s in out_shapes)
    )

    recon_p, mu_s_p, var_s_p, mu_C_p, var_C_p = pl.pallas_call(
        functools.partial(_mlvae_kernel, batch=B),
        grid=(n_tiles,),
        in_specs=in_specs,
        out_specs=out_specs,
        out_shape=out_shapes,
        scratch_shapes=[pltpu.VMEM((bp, H_P), jnp.float32)],   # h2 held across tiles
        compiler_params=pltpu.CompilerParams(
            # h2 scratch written at j==0 and read at every j -> sequential axis.
            dimension_semantics=("arbitrary",),
            vmem_limit_bytes=32 * 1024 * 1024,
        ),
        cost_estimate=pl.CostEstimate(
            flops=flops,
            transcendentals=transcendentals,
            bytes_accessed=bytes_accessed,
        ),
    )(*operands)

    recon = recon_p[:B, :d_in].reshape(B, channels, 28, 28)   # View((-1, C, 28, 28))
    mu_s = mu_s_p[:B, :dim_s]
    var_s = var_s_p[:B, :dim_s]
    mu_C = mu_C_p[0, :dim_C]
    var_C = var_C_p[0, :dim_C]
    return recon, mu_s, var_s, mu_C, var_C


# ----------------------------------------------------------------------------
# main
# ----------------------------------------------------------------------------
if __name__ == "__main__":
    channels, dim_s, dim_C = 1, 4, 4
    B = 4

    key = jax.random.PRNGKey(0)
    k_param, k_x, k_es, k_ec = jax.random.split(key, 4)

    params = init_params(k_param, channels, dim_s, dim_C)
    x = jax.random.uniform(k_x, (B, channels, 28, 28), jnp.float32)
    # reparameterization noise (torch.randn_like equivalents, drawn outside kernel)
    eps_s = jax.random.normal(k_es, (B, dim_s), jnp.float32)
    eps_C = jax.random.normal(k_ec, (dim_C,), jnp.float32)

    fwd = jax.jit(functools.partial(
        mlvae_forward, dim_s=dim_s, dim_C=dim_C, channels=channels))

    recon, mu_s, var_s, mu_C, var_C = fwd(params, x, eps_s, eps_C)
    jax.block_until_ready((recon, mu_s, var_s, mu_C, var_C))

    assert recon.shape == (B, channels, 28, 28)
    assert mu_s.shape == (B, dim_s) and var_s.shape == (B, dim_s)
    assert mu_C.shape == (dim_C,) and var_C.shape == (dim_C,)
    assert bool(jnp.all(jnp.isfinite(recon)))
    assert bool(jnp.all(var_s > 0.0)) and bool(jnp.all(var_C > 0.0))
    print("KERNEL_OK")
</pallas_src>

<mosaic_0001>
module attributes {stable_mosaic.version = 11 : i64} {
  func.func @_mlvae_kernel(%arg0: i32, %arg1: memref<8x784xf32, #tpu.memory_space<vmem>>, %arg2: memref<8x128xf32, #tpu.memory_space<vmem>>, %arg3: memref<1x128xf32, #tpu.memory_space<vmem>>, %arg4: memref<784x512xbf16, #tpu.memory_space<vmem>>, %arg5: memref<512x512xbf16, #tpu.memory_space<vmem>>, %arg6: memref<256x512xbf16, #tpu.memory_space<vmem>>, %arg7: memref<3x512xf32, #tpu.memory_space<vmem>>, %arg8: memref<512x512xbf16, #tpu.memory_space<vmem>>, %arg9: memref<1x512xf32, #tpu.memory_space<vmem>>, %arg10: memref<8x512xf32, #tpu.memory_space<vmem>>, %arg11: memref<8x128xf32, #tpu.memory_space<vmem>>, %arg12: memref<8x128xf32, #tpu.memory_space<vmem>>, %arg13: memref<1x128xf32, #tpu.memory_space<vmem>>, %arg14: memref<1x128xf32, #tpu.memory_space<vmem>>, %arg15: memref<8x512xf32, #tpu.memory_space<vmem>>) attributes {dimension_semantics = [#tpu.dimension_semantics<arbitrary>], iteration_bounds = array<i64: 2>, scalar_prefetch = 0 : i64, scratch_operands = 1 : i64, tpu.core_type = #tpu.core_type<tc>, window_params = [{pipeline_mode = #tpu.pipeline_mode<synchronous>, transform_indices = @transform_0, window_bounds = array<i64: 8, 784>}, {pipeline_mode = #tpu.pipeline_mode<synchronous>, transform_indices = @transform_1, window_bounds = array<i64: 8, 128>}, {pipeline_mode = #tpu.pipeline_mode<synchronous>, transform_indices = @transform_2, window_bounds = array<i64: 1, 128>}, {pipeline_mode = #tpu.pipeline_mode<synchronous>, transform_indices = @transform_3, window_bounds = array<i64: 784, 512>}, {pipeline_mode = #tpu.pipeline_mode<synchronous>, transform_indices = @transform_4, window_bounds = array<i64: 512, 512>}, {pipeline_mode = #tpu.pipeline_mode<synchronous>, transform_indices = @transform_5, window_bounds = array<i64: 256, 512>}, {pipeline_mode = #tpu.pipeline_mode<synchronous>, transform_indices = @transform_6, window_bounds = array<i64: 3, 512>}, {transform_indices = @transform_7, window_bounds = array<i64: 512, 512>}, {transform_indices = @transform_8, window_bounds = array<i64: 1, 512>}, {transform_indices = @transform_9, window_bounds = array<i64: 8, 512>}, {pipeline_mode = #tpu.pipeline_mode<synchronous>, transform_indices = @transform_10, window_bounds = array<i64: 8, 128>}, {pipeline_mode = #tpu.pipeline_mode<synchronous>, transform_indices = @transform_11, window_bounds = array<i64: 8, 128>}, {pipeline_mode = #tpu.pipeline_mode<synchronous>, transform_indices = @transform_12, window_bounds = array<i64: 1, 128>}, {pipeline_mode = #tpu.pipeline_mode<synchronous>, transform_indices = @transform_13, window_bounds = array<i64: 1, 128>}]} {
    %c0_i32 = arith.constant 0 : i32
    %0 = arith.cmpi eq, %arg0, %c0_i32 : i32
    %1 = arith.extui %0 : i1 to i32
    %c0_i32_0 = arith.constant 0 : i32
    %2 = arith.cmpi ne, %1, %c0_i32_0 : i32
    scf.if %2 {
      %c0_9 = arith.constant 0 : index
      %c0_10 = arith.constant 0 : index
      %16 = vector.load %arg7[%c0_9, %c0_10] : memref<3x512xf32, #tpu.memory_space<vmem>>, vector<3x512xf32>
      %17 = vector.extract_strided_slice %16 {offsets = [0, 0], sizes = [1, 512], strides = [1, 1]} : vector<3x512xf32> to vector<1x512xf32>
      %18 = vector.extract_strided_slice %16 {offsets = [1, 0], sizes = [1, 512], strides = [1, 1]} : vector<3x512xf32> to vector<1x512xf32>
      %19 = vector.extract_strided_slice %16 {offsets = [2, 0], sizes = [1, 512], strides = [1, 1]} : vector<3x512xf32> to vector<1x512xf32>
      %c0_11 = arith.constant 0 : index
      %c0_12 = arith.constant 0 : index
      %20 = vector.load %arg1[%c0_11, %c0_12] : memref<8x784xf32, #tpu.memory_space<vmem>>, vector<8x784xf32>
      %21 = arith.truncf %20 : vector<8x784xf32> to vector<8x784xbf16>
      %c0_13 = arith.constant 0 : index
      %c0_14 = arith.constant 0 : index
      %22 = vector.load %arg4[%c0_13, %c0_14] : memref<784x512xbf16, #tpu.memory_space<vmem>>, vector<784x512xbf16>
      %cst_15 = arith.constant dense<0.000000e+00> : vector<8x512xf32>
      %23 = tpu.matmul %21, %22, %cst_15 {dimension_numbers = #tpu.dot_dimension_numbers<[1], [0], [0], [1], [0, 0, 1, 1], [], []>} : vector<8x784xbf16>, vector<784x512xbf16>, vector<8x512xf32> -> vector<8x512xf32>
      %24 = vector.broadcast %17 : vector<1x512xf32> to vector<8x512xf32>
      %25 = arith.addf %23, %24 : vector<8x512xf32>
      %cst_16 = arith.constant 0.000000e+00 : f32
      %26 = vector.broadcast %cst_16 : f32 to vector<8x512xf32>
      %27 = arith.maximumf %25, %26 : vector<8x512xf32>
      %28 = arith.truncf %27 : vector<8x512xf32> to vector<8x512xbf16>
      %c0_17 = arith.constant 0 : index
      %c0_18 = arith.constant 0 : index
      %29 = vector.load %arg5[%c0_17, %c0_18] : memref<512x512xbf16, #tpu.memory_space<vmem>>, vector<512x512xbf16>
      %cst_19 = arith.constant dense<0.000000e+00> : vector<8x512xf32>
      %30 = tpu.matmul %28, %29, %cst_19 {dimension_numbers = #tpu.dot_dimension_numbers<[1], [0], [0], [1], [0, 0, 1, 1], [], []>} : vector<8x512xbf16>, vector<512x512xbf16>, vector<8x512xf32> -> vector<8x512xf32>
      %31 = vector.broadcast %18 : vector<1x512xf32> to vector<8x512xf32>
      %32 = arith.addf %30, %31 : vector<8x512xf32>
      %33 = vector.extract_strided_slice %32 {offsets = [0, 0], sizes = [8, 128], strides = [1, 1]} : vector<8x512xf32> to vector<8x128xf32>
      %34 = vector.extract_strided_slice %32 {offsets = [0, 128], sizes = [8, 128], strides = [1, 1]} : vector<8x512xf32> to vector<8x128xf32>
      %35 = math.tanh %34 : vector<8x128xf32>
      %36 = vector.extract_strided_slice %32 {offsets = [0, 256], sizes = [8, 128], strides = [1, 1]} : vector<8x512xf32> to vector<8x128xf32>
      %37 = vector.extract_strided_slice %32 {offsets = [0, 384], sizes = [8, 128], strides = [1, 1]} : vector<8x512xf32> to vector<8x128xf32>
      %38 = math.tanh %37 : vector<8x128xf32>
      %cst_20 = arith.constant 5.000000e-01 : f32
      %39 = vector.broadcast %cst_20 : f32 to vector<8x128xf32>
      %40 = arith.mulf %39, %35 : vector<8x128xf32>
      %41 = math.exp %40 : vector<8x128xf32>
      %42 = arith.mulf %41, %41 : vector<8x128xf32>
      %c0_21 = arith.constant 0 : index
      %c0_22 = arith.constant 0 : index
      %43 = vector.load %arg2[%c0_21, %c0_22] : memref<8x128xf32, #tpu.memory_space<vmem>>, vector<8x128xf32>
      %44 = arith.mulf %43, %41 : vector<8x128xf32>
      %45 = arith.addf %33, %44 : vector<8x128xf32>
      %c0_23 = arith.constant 0 : index
      %c0_24 = arith.constant 0 : index
      %46 = vector.load %arg11[%c0_23, %c0_24] : memref<8x128xf32, #tpu.memory_space<vmem>>, vector<8x128xf32>
      tpu.vector_store %arg11[%c0_23, %c0_24], %33 {strides = array<i32>} : memref<8x128xf32, #tpu.memory_space<vmem>>, vector<8x128xf32>,
      %c0_25 = arith.constant 0 : index
      %c0_26 = arith.constant 0 : index
      %47 = vector.load %arg12[%c0_25, %c0_26] : memref<8x128xf32, #tpu.memory_space<vmem>>, vector<8x128xf32>
      tpu.vector_store %arg12[%c0_25, %c0_26], %42 {strides = array<i32>} : memref<8x128xf32, #tpu.memory_space<vmem>>, vector<8x128xf32>,
      %cst_27 = arith.constant 0.000000e+00 : f32
      %48 = vector.broadcast %cst_27 : f32 to vector<8x128xf32>
      %49 = arith.subf %48, %38 : vector<8x128xf32>
      %50 = math.exp %49 : vector<8x128xf32>
      %51 = tpu.iota {dimensions = array<i32: 0>} : vector<8x128xi32>
      %c4_i32 = arith.constant 4 : i32
      %52 = vector.broadcast %c4_i32 : i32 to vector<8x128xi32>
      %53 = arith.cmpi slt, %51, %52 : vector<8x128xi32>
      %cst_28 = arith.constant 0.000000e+00 : f32
      %54 = vector.broadcast %cst_28 : f32 to vector<8x128xf32>
      %55 = arith.select %53, %50, %54 : vector<8x128xi1>, vector<8x128xf32>
      %cst_29 = arith.constant dense<0.000000e+00> : vector<128xf32>
      %56 = vector.multi_reduction <add>, %55, %cst_29 [0] : vector<8x128xf32> to vector<128xf32>
      %57 = vector.shape_cast %56 : vector<128xf32> to vector<1x128xf32>
      %cst_30 = arith.constant 1.000000e+00 : f32
      %58 = vector.broadcast %cst_30 : f32 to vector<1x128xf32>
      %59 = arith.divf %58, %57 : vector<1x128xf32>
      %60 = arith.mulf %55, %36 : vector<8x128xf32>
      %cst_31 = arith.constant dense<0.000000e+00> : vector<128xf32>
      %61 = vector.multi_reduction <add>, %60, %cst_31 [0] : vector<8x128xf32> to vector<128xf32>
      %62 = vector.shape_cast %61 : vector<128xf32> to vector<1x128xf32>
      %63 = arith.mulf %59, %62 : vector<1x128xf32>
      %c0_32 = arith.constant 0 : index
      %c0_33 = arith.constant 0 : index
      %64 = vector.load %arg3[%c0_32, %c0_33] : memref<1x128xf32, #tpu.memory_space<vmem>>, vector<1x128xf32>
      %65 = math.rsqrt %57 : vector<1x128xf32>
      %66 = arith.mulf %64, %65 : vector<1x128xf32>
      %67 = arith.addf %63, %66 : vector<1x128xf32>
      %c0_34 = arith.constant 0 : index
      %c0_35 = arith.constant 0 : index
      %68 = vector.load %arg13[%c0_34, %c0_35] : memref<1x128xf32, #tpu.memory_space<vmem>>, vector<1x128xf32>
      tpu.vector_store %arg13[%c0_34, %c0_35], %63 {strides = array<i32>} : memref<1x128xf32, #tpu.memory_space<vmem>>, vector<1x128xf32>,
      %c0_36 = arith.constant 0 : index
      %c0_37 = arith.constant 0 : index
      %69 = vector.load %arg14[%c0_36, %c0_37] : memref<1x128xf32, #tpu.memory_space<vmem>>, vector<1x128xf32>
      tpu.vector_store %arg14[%c0_36, %c0_37], %59 {strides = array<i32>} : memref<1x128xf32, #tpu.memory_space<vmem>>, vector<1x128xf32>,
      %70 = vector.shape_cast %67 : vector<1x128xf32> to vector<1x128xf32>
      %71 = vector.broadcast %70 : vector<1x128xf32> to vector<8x128xf32>
      %72 = tpu.concatenate %45, %71 in 1 : vector<8x128xf32>, vector<8x128xf32> -> vector<8x256xf32>
      %73 = arith.truncf %72 : vector<8x256xf32> to vector<8x256xbf16>
      %c0_38 = arith.constant 0 : index
      %c0_39 = arith.constant 0 : index
      %74 = vector.load %arg6[%c0_38, %c0_39] : memref<256x512xbf16, #tpu.memory_space<vmem>>, vector<256x512xbf16>
      %cst_40 = arith.constant dense<0.000000e+00> : vector<8x512xf32>
      %75 = tpu.matmul %73, %74, %cst_40 {dimension_numbers = #tpu.dot_dimension_numbers<[1], [0], [0], [1], [0, 0, 1, 1], [], []>} : vector<8x256xbf16>, vector<256x512xbf16>, vector<8x512xf32> -> vector<8x512xf32>
      %76 = vector.broadcast %19 : vector<1x512xf32> to vector<8x512xf32>
      %77 = arith.addf %75, %76 : vector<8x512xf32>
      %cst_41 = arith.constant 0.000000e+00 : f32
      %78 = vector.broadcast %cst_41 : f32 to vector<8x512xf32>
      %79 = arith.maximumf %77, %78 : vector<8x512xf32>
      %c0_42 = arith.constant 0 : index
      %c0_43 = arith.constant 0 : index
      %80 = vector.load %arg15[%c0_42, %c0_43] : memref<8x512xf32, #tpu.memory_space<vmem>>, vector<8x512xf32>
      tpu.vector_store %arg15[%c0_42, %c0_43], %79 {strides = array<i32>} : memref<8x512xf32, #tpu.memory_space<vmem>>, vector<8x512xf32>,
    } else {
    }
    %c0 = arith.constant 0 : index
    %c0_1 = arith.constant 0 : index
    %3 = vector.load %arg15[%c0, %c0_1] : memref<8x512xf32, #tpu.memory_space<vmem>>, vector<8x512xf32>
    %4 = arith.truncf %3 : vector<8x512xf32> to vector<8x512xbf16>
    %c0_2 = arith.constant 0 : index
    %c0_3 = arith.constant 0 : index
    %5 = vector.load %arg8[%c0_2, %c0_3] : memref<512x512xbf16, #tpu.memory_space<vmem>>, vector<512x512xbf16>
    %cst = arith.constant dense<0.000000e+00> : vector<8x512xf32>
    %6 = tpu.matmul %4, %5, %cst {dimension_numbers = #tpu.dot_dimension_numbers<[1], [0], [0], [1], [0, 0, 1, 1], [], []>} : vector<8x512xbf16>, vector<512x512xbf16>, vector<8x512xf32> -> vector<8x512xf32>
    %c0_4 = arith.constant 0 : index
    %c0_5 = arith.constant 0 : index
    %7 = vector.load %arg9[%c0_4, %c0_5] : memref<1x512xf32, #tpu.memory_space<vmem>>, vector<1x512xf32>
    %8 = vector.broadcast %7 : vector<1x512xf32> to vector<8x512xf32>
    %9 = arith.addf %6, %8 : vector<8x512xf32>
    %10 = arith.negf %9 : vector<8x512xf32>
    %11 = math.exp %10 : vector<8x512xf32>
    %cst_6 = arith.constant 1.000000e+00 : f32
    %12 = vector.broadcast %cst_6 : f32 to vector<8x512xf32>
    %13 = arith.addf %12, %11 : vector<8x512xf32>
    %14 = arith.divf %12, %13 : vector<8x512xf32>
    %c0_7 = arith.constant 0 : index
    %c0_8 = arith.constant 0 : index
    %15 = vector.load %arg10[%c0_7, %c0_8] : memref<8x512xf32, #tpu.memory_space<vmem>>, vector<8x512xf32>
    tpu.vector_store %arg10[%c0_7, %c0_8], %14 {strides = array<i32>} : memref<8x512xf32, #tpu.memory_space<vmem>>, vector<8x512xf32>,
    return
  }
  func.func @transform_0(%arg0: i32) -> (i32, i32) {
    %c0_i32 = arith.constant 0 : i32
    %c0_i32_0 = arith.constant 0 : i32
    %c0_i32_1 = arith.constant 0 : i32
    return %c0_i32, %c0_i32_0 : i32, i32
  }
  func.func @transform_1(%arg0: i32) -> (i32, i32) {
    %c0_i32 = arith.constant 0 : i32
    %c0_i32_0 = arith.constant 0 : i32
    %c0_i32_1 = arith.constant 0 : i32
    return %c0_i32, %c0_i32_0 : i32, i32
  }
  func.func @transform_2(%arg0: i32) -> (i32, i32) {
    %c0_i32 = arith.constant 0 : i32
    %c0_i32_0 = arith.constant 0 : i32
    %c0_i32_1 = arith.constant 0 : i32
    return %c0_i32, %c0_i32_0 : i32, i32
  }
  func.func @transform_3(%arg0: i32) -> (i32, i32) {
    %c0_i32 = arith.constant 0 : i32
    %c0_i32_0 = arith.constant 0 : i32
    %c0_i32_1 = arith.constant 0 : i32
    return %c0_i32, %c0_i32_0 : i32, i32
  }
  func.func @transform_4(%arg0: i32) -> (i32, i32) {
    %c0_i32 = arith.constant 0 : i32
    %c0_i32_0 = arith.constant 0 : i32
    %c0_i32_1 = arith.constant 0 : i32
    return %c0_i32, %c0_i32_0 : i32, i32
  }
  func.func @transform_5(%arg0: i32) -> (i32, i32) {
    %c0_i32 = arith.constant 0 : i32
    %c0_i32_0 = arith.constant 0 : i32
    %c0_i32_1 = arith.constant 0 : i32
    return %c0_i32, %c0_i32_0 : i32, i32
  }
  func.func @transform_6(%arg0: i32) -> (i32, i32) {
    %c0_i32 = arith.constant 0 : i32
    %c0_i32_0 = arith.constant 0 : i32
    %c0_i32_1 = arith.constant 0 : i32
    return %c0_i32, %c0_i32_0 : i32, i32
  }
  func.func @transform_7(%arg0: i32) -> (i32, i32) {
    %c0_i32 = arith.constant 0 : i32
    %c0_i32_0 = arith.constant 0 : i32
    return %c0_i32, %arg0 : i32, i32
  }
  func.func @transform_8(%arg0: i32) -> (i32, i32) {
    %c0_i32 = arith.constant 0 : i32
    %c0_i32_0 = arith.constant 0 : i32
    return %c0_i32, %arg0 : i32, i32
  }
  func.func @transform_9(%arg0: i32) -> (i32, i32) {
    %c0_i32 = arith.constant 0 : i32
    %c0_i32_0 = arith.constant 0 : i32
    return %c0_i32, %arg0 : i32, i32
  }
  func.func @transform_10(%arg0: i32) -> (i32, i32) {
    %c0_i32 = arith.constant 0 : i32
    %c0_i32_0 = arith.constant 0 : i32
    %c0_i32_1 = arith.constant 0 : i32
    return %c0_i32, %c0_i32_0 : i32, i32
  }
  func.func @transform_11(%arg0: i32) -> (i32, i32) {
    %c0_i32 = arith.constant 0 : i32
    %c0_i32_0 = arith.constant 0 : i32
    %c0_i32_1 = arith.constant 0 : i32
    return %c0_i32, %c0_i32_0 : i32, i32
  }
  func.func @transform_12(%arg0: i32) -> (i32, i32) {
    %c0_i32 = arith.constant 0 : i32
    %c0_i32_0 = arith.constant 0 : i32
    %c0_i32_1 = arith.constant 0 : i32
    return %c0_i32, %c0_i32_0 : i32, i32
  }
  func.func @transform_13(%arg0: i32) -> (i32, i32) {
    %c0_i32 = arith.constant 0 : i32
    %c0_i32_0 = arith.constant 0 : i32
    %c0_i32_1 = arith.constant 0 : i32
    return %c0_i32, %c0_i32_0 : i32, i32
  }
}

</mosaic_0001>

<llo_original>
// kernel: mlvae_forward.1
$region0: #{mlvae_forward.1}
  #allocation0 [shape = 'u32[]', space=smem, size = 0x4, offset = 0x4, fixed_abs, tag = 'smem constant byte address 0x4 - core index']
  #allocation1 [shape = 'u32[72,128]{1,0:T(1,128)}', space=vmem, size = 0x9000, scoped, tag = 'internal scratch']
  #allocation2 [shape = 'f32[8,512]{1,0:T(8,128)}', space=vmem, size = 0x4000, scoped, tag = 'scratch operand']
  %s0 = inlined_call_operand.vmem [shape: f32[8,784], index: 0, kind: input, shape index: {}]
  %s1 = inlined_call_operand.vmem [shape: f32[8,128], index: 1, kind: input, shape index: {}]
  %s2 = inlined_call_operand.vmem [shape: f32[1,128], index: 2, kind: input, shape index: {}]
  %s3 = inlined_call_operand.hbm [shape: bf16[784,512], index: 3, kind: input, shape index: {}]
  %s4 = inlined_call_operand.hbm [shape: bf16[512,512], index: 4, kind: input, shape index: {}]
  %s5 = inlined_call_operand.hbm [shape: bf16[256,512], index: 5, kind: input, shape index: {}]
  %s6 = inlined_call_operand.vmem [shape: f32[3,512], index: 6, kind: input, shape index: {}]
  %s7 = inlined_call_operand.hbm [shape: bf16[512,1024], index: 7, kind: input, shape index: {}]
  %s8 = inlined_call_operand.vmem [shape: f32[1,1024], index: 8, kind: input, shape index: {}]
  %s9 = inlined_call_operand.vmem [shape: f32[8,1024], index: 9, kind: output, shape index: {0}]
  %s10 = inlined_call_operand.vmem [shape: f32[8,128], index: 10, kind: output, shape index: {1}]
  %s11 = inlined_call_operand.vmem [shape: f32[8,128], index: 11, kind: output, shape index: {2}]
  %s12 = inlined_call_operand.vmem [shape: f32[1,128], index: 12, kind: output, shape index: {3}]
  %s13 = inlined_call_operand.vmem [shape: f32[1,128], index: 13, kind: output, shape index: {4}]
  %14 = xla_tuple %s9, %s10, %s11, %s12, %s13
  %s15 = sld [smem:[#allocation0]]
  $region121: #{mlvae_forward.1} parent=0
    _
  %s17 = ssub.s32 1, %s15
  %s18 = scalar_select 0, %s17, %s15
  $region1: #{mlvae_forward.1} parent=0
    #allocation3 [shape = 'u8[802816]{0}', space=vmem, size = 0xc4000, scoped, tag = 'input window, operand 3, single buffered']
    #allocation4 [shape = 's32[2]{0}', space=sflag, size = 0x8, scoped, tag = 'scoped memory for mlvae_forward.1']
    #allocation5 [shape = 'u8[524288]{0}', space=vmem, size = 0x80000, scoped, tag = 'input window, operand 4, single buffered']
    #allocation6 [shape = 's32[1]{0}', space=sflag, size = 0x4, scoped, tag = 'scoped memory for mlvae_forward.1']
    #allocation7 [shape = 'u8[262144]{0}', space=vmem, size = 0x40000, scoped, tag = 'input window, operand 5, single buffered']
    #allocation8 [shape = 'u8[1048576]{0}', space=vmem, size = 0x100000, scoped, tag = 'input window, operand 7']
    #allocation9 [shape = 's32[2]{0}', space=sflag, size = 0x8, scoped, tag = 'scoped memory for mlvae_forward.1']
    %19 = vsyncpa [#allocation4], 0
    %20 = vsyncpa [#allocation6], 0
    %21 = vsyncpa [#allocation9], 0
    %s22 = scalar_lea.sflag [#allocation9], 1
    %23 = vsyncpa %s22, 0
    loop: start=0, step=1, limit=4
    $region2: #{mlvae_forward.1} parent=1 // loop_pre_header
      _
    $region3: #{mlvae_forward.1} parent=1 // loop_header
      %s25 = sphi 0, %s29
      %p26 = scmp.ge.s32.totalorder %s25, 4
      %s33 = sphi 0, %s33
      %s35 = sphi 0, %s33
      %s36 = sphi 0, %s35
      %s50 = sphi 0, %s36
      %s54 = sphi 0, %s54
      %s56 = sphi 0, %s54
      %s57 = sphi 0, %s56
      %s71 = sphi 0, %s57
      %s75 = sphi 0, %s75
      %s77 = sphi 0, %s75
      %s78 = sphi 0, %s77
      %s92 = sphi 0, %s78
      %s96 = sphi 0, %s96
      %s98 = sphi 0, %s96
      %s99 = sphi 0, %s98
      %s113 = sphi 0, %s99
      %s117 = sphi 0, %s117
      %s119 = sphi 0, %s117
      %s120 = sphi 0, %s119
      %s134 = sphi 0, %s120
      %s138 = sphi 0, %s138
      %s140 = sphi 0, %s138
      %s141 = sphi 0, %s140
      %s155 = sphi 0, %s141
      %s159 = sphi 0, %s159
      %s161 = sphi 0, %s159
      %s162 = sphi 0, %s161
      %s176 = sphi 0, %s162
      %s182 = sphi 0, %s184
      %s185 = sphi 0, %s182
      %s186 = sphi 0, %s185
      %s202 = sphi 0, %s186
      %s208 = sphi 0, %s210
      %s211 = sphi 0, %s208
      %s212 = sphi 0, %s211
      %s228 = sphi 0, %s212
      %s234 = sphi 0, %s236
      %s237 = sphi 0, %s234
      %s238 = sphi 0, %s237
      %s254 = sphi 0, %s238
      %s258 = sphi 0, %s258
      %s260 = sphi 0, %s258
      %s261 = sphi 0, %s260
      %s275 = sphi 0, %s261
      %s279 = sphi 0, %s279
      %s281 = sphi 0, %s279
      %s282 = sphi 0, %s281
      %s296 = sphi 0, %s282
      %s300 = sphi 0, %s300
      %s302 = sphi 0, %s300
      %s303 = sphi 0, %s302
      %s317 = sphi 0, %s303
      %s321 = sphi 0, %s321
      %s323 = sphi 0, %s321
      %s324 = sphi 0, %s323
      %s338 = sphi 0, %s324
    $region4: #{mlvae_forward.1} parent=1 // loop_header_branch
      %28 = sbr.rel (%p26) target = $region8
    $region5: #{mlvae_forward.1} parent=1 // loop_body
      %s30 = ssub.s32 %s25, 1
      %s31 = ssub.s32 %s25, 2
      %s32 = sadd.s32 %s25, 1
      %s34 = sadd.s32 %s33, 1
      %p37 = scmp.eq.s32.totalorder %s25, 1
      %p38 = scmp.ne.s32.totalorder %s33, %s35
      %p39 = scmp.eq.s32.totalorder %s25, 0
      %p40 = por %p38, %p39
      %p41 = scmp.ne.s32.totalorder %s33, %s35
      %p42 = scmp.eq.s32.totalorder %s30, 1
      %p43 = por %p41, %p42
      %p44 = scmp.ne.s32.totalorder %s35, %s36
      %p45 = scmp.eq.s32.totalorder %s30, 0
      %p46 = por %p44, %p45
      %p47 = scmp.ne.s32.totalorder %s35, %s36
      %p48 = scmp.eq.s32.totalorder %s31, 1
      %p49 = por %p47, %p48
      %p51 = scmp.ne.s32.totalorder %s36, %s50
      %p52 = scmp.eq.s32.totalorder %s31, 0
      %p53 = por %p51, %p52
      %s55 = sadd.s32 %s54, 1
      %p58 = scmp.eq.s32.totalorder %s25, 1
      %p59 = scmp.ne.s32.totalorder %s54, %s56
      %p60 = scmp.eq.s32.totalorder %s25, 0
      %p61 = por %p59, %p60
      %p62 = scmp.ne.s32.totalorder %s54, %s56
      %p63 = scmp.eq.s32.totalorder %s30, 1
      %p64 = por %p62, %p63
      %p65 = scmp.ne.s32.totalorder %s56, %s57
      %p66 = scmp.eq.s32.totalorder %s30, 0
      %p67 = por %p65, %p66
      %p68 = scmp.ne.s32.totalorder %s56, %s57
      %p69 = scmp.eq.s32.totalorder %s31, 1
      %p70 = por %p68, %p69
      %p72 = scmp.ne.s32.totalorder %s57, %s71
      %p73 = scmp.eq.s32.totalorder %s31, 0
      %p74 = por %p72, %p73
      %s76 = sadd.s32 %s75, 1
      %p79 = scmp.eq.s32.totalorder %s25, 1
      %p80 = scmp.ne.s32.totalorder %s75, %s77
      %p81 = scmp.eq.s32.totalorder %s25, 0
      %p82 = por %p80, %p81
      %p83 = scmp.ne.s32.totalorder %s75, %s77
      %p84 = scmp.eq.s32.totalorder %s30, 1
      %p85 = por %p83, %p84
      %p86 = scmp.ne.s32.totalorder %s77, %s78
      %p87 = scmp.eq.s32.totalorder %s30, 0
      %p88 = por %p86, %p87
      %p89 = scmp.ne.s32.totalorder %s77, %s78
      %p90 = scmp.eq.s32.totalorder %s31, 1
      %p91 = por %p89, %p90
      %p93 = scmp.ne.s32.totalorder %s78, %s92
      %p94 = scmp.eq.s32.totalorder %s31, 0
      %p95 = por %p93, %p94
      %s97 = sadd.s32 %s96, 1
      %p100 = scmp.eq.s32.totalorder %s25, 1
      %p101 = scmp.ne.s32.totalorder %s96, %s98
      %p102 = scmp.eq.s32.totalorder %s25, 0
      %p103 = por %p101, %p102
      %p104 = scmp.ne.s32.totalorder %s96, %s98
      %p105 = scmp.eq.s32.totalorder %s30, 1
      %p106 = por %p104, %p105
      %p107 = scmp.ne.s32.totalorder %s98, %s99
      %p108 = scmp.eq.s32.totalorder %s30, 0
      %p109 = por %p107, %p108
      %p110 = scmp.ne.s32.totalorder %s98, %s99
      %p111 = scmp.eq.s32.totalorder %s31, 1
      %p112 = por %p110, %p111
      %p114 = scmp.ne.s32.totalorder %s99, %s113
      %p115 = scmp.eq.s32.totalorder %s31, 0
      %p116 = por %p114, %p115
      %s118 = sadd.s32 %s117, 1
      %p121 = scmp.eq.s32.totalorder %s25, 1
      %p122 = scmp.ne.s32.totalorder %s117, %s119
      %p123 = scmp.eq.s32.totalorder %s25, 0
      %p124 = por %p122, %p123
      %p125 = scmp.ne.s32.totalorder %s117, %s119
      %p126 = scmp.eq.s32.totalorder %s30, 1
      %p127 = por %p125, %p126
      %p128 = scmp.ne.s32.totalorder %s119, %s120
      %p129 = scmp.eq.s32.totalorder %s30, 0
      %p130 = por %p128, %p129
      %p131 = scmp.ne.s32.totalorder %s119, %s120
      %p132 = scmp.eq.s32.totalorder %s31, 1
      %p133 = por %p131, %p132
      %p135 = scmp.ne.s32.totalorder %s120, %s134
      %p136 = scmp.eq.s32.totalorder %s31, 0
      %p137 = por %p135, %p136
      %s139 = sadd.s32 %s138, 1
      %p142 = scmp.eq.s32.totalorder %s25, 1
      %p143 = scmp.ne.s32.totalorder %s138, %s140
      %p144 = scmp.eq.s32.totalorder %s25, 0
      %p145 = por %p143, %p144
      %p146 = scmp.ne.s32.totalorder %s138, %s140
      %p147 = scmp.eq.s32.totalorder %s30, 1
      %p148 = por %p146, %p147
      %p149 = scmp.ne.s32.totalorder %s140, %s141
      %p150 = scmp.eq.s32.totalorder %s30, 0
      %p151 = por %p149, %p150
      %p152 = scmp.ne.s32.totalorder %s140, %s141
      %p153 = scmp.eq.s32.totalorder %s31, 1
      %p154 = por %p152, %p153
      %p156 = scmp.ne.s32.totalorder %s141, %s155
      %p157 = scmp.eq.s32.totalorder %s31, 0
      %p158 = por %p156, %p157
      %s160 = sadd.s32 %s159, 1
      %p163 = scmp.eq.s32.totalorder %s25, 1
      %p164 = scmp.ne.s32.totalorder %s159, %s161
      %p165 = scmp.eq.s32.totalorder %s25, 0
      %p166 = por %p164, %p165
      %p167 = scmp.ne.s32.totalorder %s159, %s161
      %p168 = scmp.eq.s32.totalorder %s30, 1
      %p169 = por %p167, %p168
      %p170 = scmp.ne.s32.totalorder %s161, %s162
      %p171 = scmp.eq.s32.totalorder %s30, 0
      %p172 = por %p170, %p171
      %p173 = scmp.ne.s32.totalorder %s161, %s162
      %p174 = scmp.eq.s32.totalorder %s31, 1
      %p175 = por %p173, %p174
      %p177 = scmp.ne.s32.totalorder %s162, %s176
      %p178 = scmp.eq.s32.totalorder %s31, 0
      %p179 = por %p177, %p178
      %s180 = ssub.s32 %s25, %s32
      %p181 = scmp.eq.s32.totalorder %s180, 0
      %s183 = sadd.s32 %s182, 1
      %s184 = scalar_select %p181, %s182, %s183
      %p187 = pneg %p181
      %p188 = scmp.eq.s32.totalorder %s25, 1
      %p189 = por %p187, %p188
      %p190 = scmp.ne.s32.totalorder %s182, %s185
      %p191 = scmp.eq.s32.totalorder %s25, 0
      %p192 = por %p190, %p191
      %p193 = scmp.ne.s32.totalorder %s182, %s185
      %p194 = scmp.eq.s32.totalorder %s30, 1
      %p195 = por %p193, %p194
      %p196 = scmp.ne.s32.totalorder %s185, %s186
      %p197 = scmp.eq.s32.totalorder %s30, 0
      %p198 = por %p196, %p197
      %p199 = scmp.ne.s32.totalorder %s185, %s186
      %p200 = scmp.eq.s32.totalorder %s31, 1
      %p201 = por %p199, %p200
      %p203 = scmp.ne.s32.totalorder %s186, %s202
      %p204 = scmp.eq.s32.totalorder %s31, 0
      %p205 = por %p203, %p204
      %s206 = ssub.s32 %s25, %s32
      %p207 = scmp.eq.s32.totalorder %s206, 0
      %s209 = sadd.s32 %s208, 1
      %s210 = scalar_select %p207, %s208, %s209
      %p213 = pneg %p207
      %p214 = scmp.eq.s32.totalorder %s25, 1
      %p215 = por %p213, %p214
      %p216 = scmp.ne.s32.totalorder %s208, %s211
      %p217 = scmp.eq.s32.totalorder %s25, 0
      %p218 = por %p216, %p217
      %p219 = scmp.ne.s32.totalorder %s208, %s211
      %p220 = scmp.eq.s32.totalorder %s30, 1
      %p221 = por %p219, %p220
      %p222 = scmp.ne.s32.totalorder %s211, %s212
      %p223 = scmp.eq.s32.totalorder %s30, 0
      %p224 = por %p222, %p223
      %p225 = scmp.ne.s32.totalorder %s211, %s212
      %p226 = scmp.eq.s32.totalorder %s31, 1
      %p227 = por %p225, %p226
      %p229 = scmp.ne.s32.totalorder %s212, %s228
      %p230 = scmp.eq.s32.totalorder %s31, 0
      %p231 = por %p229, %p230
      %s232 = ssub.s32 %s25, %s32
      %p233 = scmp.eq.s32.totalorder %s232, 0
      %s235 = sadd.s32 %s234, 1
      %s236 = scalar_select %p233, %s234, %s235
      %p239 = pneg %p233
      %p240 = scmp.eq.s32.totalorder %s25, 1
      %p241 = por %p239, %p240
      %p242 = scmp.ne.s32.totalorder %s234, %s237
      %p243 = scmp.eq.s32.totalorder %s25, 0
      %p244 = por %p242, %p243
      %p245 = scmp.ne.s32.totalorder %s234, %s237
      %p246 = scmp.eq.s32.totalorder %s30, 1
      %p247 = por %p245, %p246
      %p248 = scmp.ne.s32.totalorder %s237, %s238
      %p249 = scmp.eq.s32.totalorder %s30, 0
      %p250 = por %p248, %p249
      %p251 = scmp.ne.s32.totalorder %s237, %s238
      %p252 = scmp.eq.s32.totalorder %s31, 1
      %p253 = por %p251, %p252
      %p255 = scmp.ne.s32.totalorder %s238, %s254
      %p256 = scmp.eq.s32.totalorder %s31, 0
      %p257 = por %p255, %p256
      %s259 = sadd.s32 %s258, 1
      %p262 = scmp.eq.s32.totalorder %s25, 1
      %p263 = scmp.ne.s32.totalorder %s258, %s260
      %p264 = scmp.eq.s32.totalorder %s25, 0
      %p265 = por %p263, %p264
      %p266 = scmp.ne.s32.totalorder %s258, %s260
      %p267 = scmp.eq.s32.totalorder %s30, 1
      %p268 = por %p266, %p267
      %p269 = scmp.ne.s32.totalorder %s260, %s261
      %p270 = scmp.eq.s32.totalorder %s30, 0
      %p271 = por %p269, %p270
      %p272 = scmp.ne.s32.totalorder %s260, %s261
      %p273 = scmp.eq.s32.totalorder %s31, 1
      %p274 = por %p272, %p273
      %p276 = scmp.ne.s32.totalorder %s261, %s275
      %p277 = scmp.eq.s32.totalorder %s31, 0
      %p278 = por %p276, %p277
      %s280 = sadd.s32 %s279, 1
      %p283 = scmp.eq.s32.totalorder %s25, 1
      %p284 = scmp.ne.s32.totalorder %s279, %s281
      %p285 = scmp.eq.s32.totalorder %s25, 0
      %p286 = por %p284, %p285
      %p287 = scmp.ne.s32.totalorder %s279, %s281
      %p288 = scmp.eq.s32.totalorder %s30, 1
      %p289 = por %p287, %p288
      %p290 = scmp.ne.s32.totalorder %s281, %s282
      %p291 = scmp.eq.s32.totalorder %s30, 0
      %p292 = por %p290, %p291
      %p293 = scmp.ne.s32.totalorder %s281, %s282
      %p294 = scmp.eq.s32.totalorder %s31, 1
      %p295 = por %p293, %p294
      %p297 = scmp.ne.s32.totalorder %s282, %s296
      %p298 = scmp.eq.s32.totalorder %s31, 0
      %p299 = por %p297, %p298
      %s301 = sadd.s32 %s300, 1
      %p304 = scmp.eq.s32.totalorder %s25, 1
      %p305 = scmp.ne.s32.totalorder %s300, %s302
      %p306 = scmp.eq.s32.totalorder %s25, 0
      %p307 = por %p305, %p306
      %p308 = scmp.ne.s32.totalorder %s300, %s302
      %p309 = scmp.eq.s32.totalorder %s30, 1
      %p310 = por %p308, %p309
      %p311 = scmp.ne.s32.totalorder %s302, %s303
      %p312 = scmp.eq.s32.totalorder %s30, 0
      %p313 = por %p311, %p312
      %p314 = scmp.ne.s32.totalorder %s302, %s303
      %p315 = scmp.eq.s32.totalorder %s31, 1
      %p316 = por %p314, %p315
      %p318 = scmp.ne.s32.totalorder %s303, %s317
      %p319 = scmp.eq.s32.totalorder %s31, 0
      %p320 = por %p318, %p319
      %s322 = sadd.s32 %s321, 1
      %p325 = scmp.eq.s32.totalorder %s25, 1
      %p326 = scmp.ne.s32.totalorder %s321, %s323
      %p327 = scmp.eq.s32.totalorder %s25, 0
      %p328 = por %p326, %p327
      %p329 = scmp.ne.s32.totalorder %s321, %s323
      %p330 = scmp.eq.s32.totalorder %s30, 1
      %p331 = por %p329, %p330
      %p332 = scmp.ne.s32.totalorder %s323, %s324
      %p333 = scmp.eq.s32.totalorder %s30, 0
      %p334 = por %p332, %p333
      %p335 = scmp.ne.s32.totalorder %s323, %s324
      %p336 = scmp.eq.s32.totalorder %s31, 1
      %p337 = por %p335, %p336
      %p339 = scmp.ne.s32.totalorder %s324, %s338
      %p340 = scmp.eq.s32.totalorder %s31, 0
      %p341 = por %p339, %p340
      %p342 = scmp.le.s32.totalorder 1, %s25
      %p343 = scmp.lt.s32.totalorder %s25, 3
      %p344 = pnand %p342, %p343
      %p345 = pneg %p344
      // Predicated region
      $region9: #{mlvae_forward.1} parent=5 // pred_check
        _
      $region10: #{mlvae_forward.1} parent=5 // pred_check_branch
        %347 = sbr.rel (%p344) target = $region12
      $region11: #{mlvae_forward.1} parent=5 // pred_region
        %s348 = ssub.s32 %s25, 1
        // Predicated region
        $region13: #{mlvae_forward.1} parent=11 // pred_check
          %p349 = pneg %p46
        $region14: #{mlvae_forward.1} parent=11 // pred_check_branch
          %351 = sbr.rel (%p349) target = $region16
        $region15: #{mlvae_forward.1} parent=11 // pred_region
          _
        $region16: #{mlvae_forward.1} parent=11 // pred_fallthru
          _
        // Predicated region
        $region17: #{mlvae_forward.1} parent=11 // pred_check
          %p352 = pneg %p67
        $region18: #{mlvae_forward.1} parent=11 // pred_check_branch
          %354 = sbr.rel (%p352) target = $region20
        $region19: #{mlvae_forward.1} parent=11 // pred_region
          _
        $region20: #{mlvae_forward.1} parent=11 // pred_fallthru
          _
        // Predicated region
        $region21: #{mlvae_forward.1} parent=11 // pred_check
          %p355 = pneg %p88
        $region22: #{mlvae_forward.1} parent=11 // pred_check_branch
          %357 = sbr.rel (%p355) target = $region24
        $region23: #{mlvae_forward.1} parent=11 // pred_region
          _
        $region24: #{mlvae_forward.1} parent=11 // pred_fallthru
          _
        // Predicated region
        $region25: #{mlvae_forward.1} parent=11 // pred_check
          %p358 = pneg %p109
        $region26: #{mlvae_forward.1} parent=11 // pred_check_branch
          %360 = sbr.rel (%p358) target = $region28
        $region27: #{mlvae_forward.1} parent=11 // pred_region
          %362 = vsyncadd [#allocation4], 0
          %s363 = sshll.u32 %s3, 4
          %s364 = int_to_ptr.hbm [resolvable:$true] %s363
          %s365 = sshll.u32 [#allocation3], 4
          %s366 = int_to_ptr.vmem [resolvable:$true] %s365
          %371 = dma.hbm_to_vmem [thread:$0]  %s364, 25088, %s366, [#allocation4], 256, 256, 16
        $region28: #{mlvae_forward.1} parent=11 // pred_fallthru
          _
        // Predicated region
        $region29: #{mlvae_forward.1} parent=11 // pred_check
          %p372 = pneg %p130
        $region30: #{mlvae_forward.1} parent=11 // pred_check_branch
          %374 = sbr.rel (%p372) target = $region32
        $region31: #{mlvae_forward.1} parent=11 // pred_region
          %376 = vsyncadd [#allocation6], 0
          %s377 = sshll.u32 %s4, 4
          %s378 = int_to_ptr.hbm [resolvable:$true] %s377
          %s379 = sshll.u32 [#allocation5], 4
          %s380 = int_to_ptr.vmem [resolvable:$true] %s379
          %385 = dma.hbm_to_vmem [thread:$0]  %s378, 16384, %s380, [#allocation6], 256, 256, 16
        $region32: #{mlvae_forward.1} parent=11 // pred_fallthru
          _
        // Predicated region
        $region33: #{mlvae_forward.1} parent=11 // pred_check
          %p386 = pneg %p151
        $region34: #{mlvae_forward.1} parent=11 // pred_check_branch
          %388 = sbr.rel (%p386) target = $region36
        $region35: #{mlvae_forward.1} parent=11 // pred_region
          %390 = vsyncadd [#allocation6], 0
          %s391 = sshll.u32 %s5, 4
          %s392 = int_to_ptr.hbm [resolvable:$true] %s391
          %s393 = sshll.u32 [#allocation7], 4
          %s394 = int_to_ptr.vmem [resolvable:$true] %s393
          %399 = dma.hbm_to_vmem [thread:$0]  %s392, 8192, %s394, [#allocation6], 256, 256, 16
        $region36: #{mlvae_forward.1} parent=11 // pred_fallthru
          _
        // Predicated region
        $region37: #{mlvae_forward.1} parent=11 // pred_check
          %p400 = pneg %p172
        $region38: #{mlvae_forward.1} parent=11 // pred_check_branch
          %402 = sbr.rel (%p400) target = $region40
        $region39: #{mlvae_forward.1} parent=11 // pred_region
          _
        $region40: #{mlvae_forward.1} parent=11 // pred_fallthru
          _
      $region12: #{mlvae_forward.1} parent=5 // pred_fallthru
        _
      %p403 = scmp.lt.s32.totalorder %s25, 2
      // Predicated region
      $region41: #{mlvae_forward.1} parent=5 // pred_check
        %p404 = pneg %p403
      $region42: #{mlvae_forward.1} parent=5 // pred_check_branch
        %406 = sbr.rel (%p404) target = $region44
      $region43: #{mlvae_forward.1} parent=5 // pred_region
        // Predicated region
        $region45: #{mlvae_forward.1} parent=43 // pred_check
          %p407 = pneg %p192
        $region46: #{mlvae_forward.1} parent=43 // pred_check_branch
          %409 = sbr.rel (%p407) target = $region48
        $region47: #{mlvae_forward.1} parent=43 // pred_region
          %s410 = sand.u32 %s182, 1
          %s411 = scalar_lea.sflag [#allocation9], %s410
          %s412 = sand.u32 %s182, 1
          %s413 = smul.addr %s412, 1024
          %s414 = scalar_lea.vmem [#allocation8], %s413
          %s415 = smul.u32 4, %s25
          %417 = vsyncadd %s411, 0
          %s418 = smul.addr %s415, 4
          %s419 = scalar_lea.hbm %s7, %s418
          %s420 = sshll.u32 %s419, 4
          %s421 = int_to_ptr.hbm [resolvable:$true] %s420
          %s422 = sshll.u32 %s414, 4
          %s423 = int_to_ptr.vmem [resolvable:$true] %s422
          %428 = dma.hbm_to_vmem [thread:$0]  %s421, 16384, %s423, %s411, 512, 256, 16
        $region48: #{mlvae_forward.1} parent=43 // pred_fallthru
          _
        // Predicated region
        $region49: #{mlvae_forward.1} parent=43 // pred_check
          %p429 = pneg %p218
        $region50: #{mlvae_forward.1} parent=43 // pred_check_branch
          %431 = sbr.rel (%p429) target = $region52
        $region51: #{mlvae_forward.1} parent=43 // pred_region
          %s432 = smul.u32 4, %s25
          %p433 = scmp.lt.s32.totalorder %s432, 7
          %s434 = scalar_select %p433, %s432, 7
          %s435 = scalar_lea.vmem %s8, %s434
          %s436 = smul.u32 4, %s25
        $region52: #{mlvae_forward.1} parent=43 // pred_fallthru
          _
      $region44: #{mlvae_forward.1} parent=5 // pred_fallthru
        _
      %p437 = scmp.le.s32.totalorder 1, %s25
      %p438 = scmp.lt.s32.totalorder %s25, 3
      %p439 = pnand %p437, %p438
      %p440 = pneg %p439
      // Predicated region
      $region53: #{mlvae_forward.1} parent=5 // pred_check
        _
      $region54: #{mlvae_forward.1} parent=5 // pred_check_branch
        %442 = sbr.rel (%p439) target = $region56
      $region55: #{mlvae_forward.1} parent=5 // pred_region
        %s443 = ssub.s32 %s25, 1
        // Predicated region
        $region57: #{mlvae_forward.1} parent=55 // pred_check
          %p444 = pneg %p109
        $region58: #{mlvae_forward.1} parent=55 // pred_check_branch
          %446 = sbr.rel (%p444) target = $region60
        $region59: #{mlvae_forward.1} parent=55 // pred_region
          %448 = dma.done [#allocation4], 25088
        $region60: #{mlvae_forward.1} parent=55 // pred_fallthru
          _
        // Predicated region
        $region61: #{mlvae_forward.1} parent=55 // pred_check
          %p449 = pneg %p130
        $region62: #{mlvae_forward.1} parent=55 // pred_check_branch
          %451 = sbr.rel (%p449) target = $region64
        $region63: #{mlvae_forward.1} parent=55 // pred_region
          %453 = dma.done [#allocation6], 16384
        $region64: #{mlvae_forward.1} parent=55 // pred_fallthru
          _
        // Predicated region
        $region65: #{mlvae_forward.1} parent=55 // pred_check
          %p454 = pneg %p151
        $region66: #{mlvae_forward.1} parent=55 // pred_check_branch
          %456 = sbr.rel (%p454) target = $region68
        $region67: #{mlvae_forward.1} parent=55 // pred_region
          %458 = dma.done [#allocation6], 8192
        $region68: #{mlvae_forward.1} parent=55 // pred_fallthru
          _
        %s459 = sand.u32 %s185, 1
        %s460 = scalar_lea.sflag [#allocation9], %s459
        %s461 = sand.u32 %s185, 1
        %s462 = smul.addr %s461, 1024
        %s463 = scalar_lea.vmem [#allocation8], %s462
        // Predicated region
        $region69: #{mlvae_forward.1} parent=55 // pred_check
          %p464 = pneg %p198
        $region70: #{mlvae_forward.1} parent=55 // pred_check_branch
          %466 = sbr.rel (%p464) target = $region72
        $region71: #{mlvae_forward.1} parent=55 // pred_region
          %468 = dma.done %s460, 16384
        $region72: #{mlvae_forward.1} parent=55 // pred_fallthru
          _
        %p469 = pneg %p46
        %p470 = pneg %p43
        %p471 = pneg %p67
        %p472 = pneg %p64
        %p473 = pneg %p88
        %p474 = pneg %p85
        %p475 = pneg %p109
        %p476 = pneg %p106
        %p477 = pneg %p130
        %p478 = pneg %p127
        %p479 = pneg %p151
        %p480 = pneg %p148
        %p481 = pneg %p172
        %p482 = pneg %p169
        %s483 = sand.u32 %s185, 1
        %s484 = scalar_lea.sflag [#allocation9], %s483
        %s485 = sand.u32 %s185, 1
        %s486 = smul.addr %s485, 1024
        %s487 = scalar_lea.vmem [#allocation8], %s486
        %p488 = pneg %p198
        %p489 = pneg %p195
        %s490 = smul.u32 4, %s30
        %p491 = scmp.lt.s32.totalorder %s490, 7
        %s492 = scalar_select %p491, %s490, 7
        %s493 = scalar_lea.vmem %s8, %s492
        %p494 = pneg %p224
        %p495 = pneg %p221
        %p496 = pneg %p250
        %p497 = pneg %p247
        %s498 = smul.u32 4, %s30
        %p499 = scmp.lt.s32.totalorder %s498, 7
        %s500 = scalar_select %p499, %s498, 7
        %s501 = smul.addr %s500, 8
        %s502 = scalar_lea.vmem %s9, %s501
        %p503 = pneg %p271
        %p504 = pneg %p268
        %p505 = pneg %p292
        %p506 = pneg %p289
        %p507 = pneg %p313
        %p508 = pneg %p310
        %p509 = pneg %p334
        %p510 = pneg %p331
        %s511 = smul.u32 4, %s30
        %s512 = smul.u32 4, %s30
        %p513 = scmp.lt.s32.totalorder %s512, 7
        %s514 = scalar_select %p513, %s512, 7
        %s515 = scalar_lea.vmem %s8, %s514
        %s516 = smul.u32 4, %s30
        %s517 = smul.u32 4, %s30
        %p518 = scmp.lt.s32.totalorder %s517, 7
        %s519 = scalar_select %p518, %s517, 7
        %s520 = smul.addr %s519, 8
        %s521 = scalar_lea.vmem %s9, %s520
        %s522 = smul.u32 4, %s30
        %p524 = scmp.eq.s32.totalorder %s30, 0
        // Predicated region
        $region73: #{mlvae_forward.1} parent=55 // pred_check
          %p525 = pneg %p524
        $region74: #{mlvae_forward.1} parent=55 // pred_check_branch
          %527 = sbr.rel (%p525) target = $region76
        $region75: #{mlvae_forward.1} parent=55 // pred_region
          %v528 = vld [vmem:[%s6] sm:$0x77]
          %v529 = vld [vmem:[%s6 + $0x8] sm:$0x77]
          %v530 = vld [vmem:[%s0] sm:$0xff]
          %v531 = vld [vmem:[%s0 + $0x8] sm:$0xff]
          %v532 = vld [vmem:[%s0 + $0x10] sm:$0xff]
          %v533 = vld [vmem:[%s0 + $0x18] sm:$0xff]
          %v534 = vld [vmem:[%s0 + $0x20] sm:$0xff]
          %v535 = vld [vmem:[%s0 + $0x28] sm:$0xff]
          %v536 = vld [vmem:[%s0 + $0x30] sm:$0xff]
          %v537 = vpack.c.bf16 %v530, %v530
          %v538 = vpack.c.bf16 %v531, %v531
          %v539 = vpack.c.bf16 %v532, %v532
          %v540 = vpack.c.bf16 %v533, %v533
          %v541 = vpack.c.bf16 %v534, %v534
          %v542 = vpack.c.bf16 %v535, %v535
          %v543 = vpack.c.bf16 %v536, %v536
          %v544 = vld [vmem:[#allocation3] sm:$0xff]
          %v545 = vld [vmem:[#allocation3 + $0x8] sm:$0xff]
          %v546 = vld [vmem:[#allocation3 + $0x10] sm:$0xff]
          %v547 = vld [vmem:[#allocation3 + $0x18] sm:$0xff]
          %v548 = vld [vmem:[#allocation3 + $0x20] sm:$0xff]
          %v549 = vld [vmem:[#allocation3 + $0x28] sm:$0xff]
          %v550 = vld [vmem:[#allocation3 + $0x30] sm:$0xff]
          %v551 = vld [vmem:[#allocation3 + $0x38] sm:$0xff]
          %v552 = vld [vmem:[#allocation3 + $0x40] sm:$0xff]
          %v553 = vld [vmem:[#allocation3 + $0x48] sm:$0xff]
          %v554 = vld [vmem:[#allocation3 + $0x50] sm:$0xff]
          %v555 = vld [vmem:[#allocation3 + $0x58] sm:$0xff]
          %v556 = vld [vmem:[#allocation3 + $0x60] sm:$0xff]
          %v557 = vld [vmem:[#allocation3 + $0x68] sm:$0xff]
          %v558 = vld [vmem:[#allocation3 + $0x70] sm:$0xff]
          %v559 = vld [vmem:[#allocation3 + $0x78] sm:$0xff]
          %v560 = vld [vmem:[#allocation3 + $0x80] sm:$0xff]
          %v561 = vld [vmem:[#allocation3 + $0x88] sm:$0xff]
          %v562 = vld [vmem:[#allocation3 + $0x90] sm:$0xff]
          %v563 = vld [vmem:[#allocation3 + $0x98] sm:$0xff]
          %v564 = vld [vmem:[#allocation3 + $0xa0] sm:$0xff]
          %v565 = vld [vmem:[#allocation3 + $0xa8] sm:$0xff]
          %v566 = vld [vmem:[#allocation3 + $0xb0] sm:$0xff]
          %v567 = vld [vmem:[#allocation3 + $0xb8] sm:$0xff]
          %v568 = vld [vmem:[#allocation3 + $0xc0] sm:$0xff]
          %v569 = vld [vmem:[#allocation3 + $0xc8] sm:$0xff]
          %v570 = vld [vmem:[#allocation3 + $0xd0] sm:$0xff]
          %v571 = vld [vmem:[#allocation3 + $0xd8] sm:$0xff]
          %v572 = vld [vmem:[#allocation3 + $0xe0] sm:$0xff]
          %v573 = vld [vmem:[#allocation3 + $0xe8] sm:$0xff]
          %v574 = vld [vmem:[#allocation3 + $0xf0] sm:$0xff]
          %v575 = vld [vmem:[#allocation3 + $0xf8] sm:$0xff]
          %v576 = vld [vmem:[#allocation3 + $0x100] sm:$0xff]
          %v577 = vld [vmem:[#allocation3 + $0x108] sm:$0xff]
          %v578 = vld [vmem:[#allocation3 + $0x110] sm:$0xff]
          %v579 = vld [vmem:[#allocation3 + $0x118] sm:$0xff]
          %v580 = vld [vmem:[#allocation3 + $0x120] sm:$0xff]
          %v581 = vld [vmem:[#allocation3 + $0x128] sm:$0xff]
          %v582 = vld [vmem:[#allocation3 + $0x130] sm:$0xff]
          %v583 = vld [vmem:[#allocation3 + $0x138] sm:$0xff]
          %v584 = vld [vmem:[#allocation3 + $0x140] sm:$0xff]
          %v585 = vld [vmem:[#allocation3 + $0x148] sm:$0xff]
          %v586 = vld [vmem:[#allocation3 + $0x150] sm:$0xff]
          %v587 = vld [vmem:[#allocation3 + $0x158] sm:$0xff]
          %v588 = vld [vmem:[#allocation3 + $0x160] sm:$0xff]
          %v589 = vld [vmem:[#allocation3 + $0x168] sm:$0xff]
          %v590 = vld [vmem:[#allocation3 + $0x170] sm:$0xff]
          %v591 = vld [vmem:[#allocation3 + $0x178] sm:$0xff]
          %v592 = vld [vmem:[#allocation3 + $0x180] sm:$0xff]
          %v593 = vld [vmem:[#allocation3 + $0x188] sm:$0xff]
          %v594 = vld [vmem:[#allocation3 + $0x190] sm:$0xff]
          %v595 = vld [vmem:[#allocation3 + $0x198] sm:$0xff]
          %v596 = vld [vmem:[#allocation3 + $0x1a0] sm:$0xff]
          %v597 = vld [vmem:[#allocation3 + $0x1a8] sm:$0xff]
          %v598 = vld [vmem:[#allocation3 + $0x1b0] sm:$0xff]
          %v599 = vld [vmem:[#allocation3 + $0x1b8] sm:$0xff]
          %v600 = vld [vmem:[#allocation3 + $0x1c0] sm:$0xff]
          %v601 = vld [vmem:[#allocation3 + $0x1c8] sm:$0xff]
          %v602 = vld [vmem:[#allocation3 + $0x1d0] sm:$0xff]
          %v603 = vld [vmem:[#allocation3 + $0x1d8] sm:$0xff]
          %v604 = vld [vmem:[#allocation3 + $0x1e0] sm:$0xff]
          %v605 = vld [vmem:[#allocation3 + $0x1e8] sm:$0xff]
          %v606 = vld [vmem:[#allocation3 + $0x1f0] sm:$0xff]
          %v607 = vld [vmem:[#allocation3 + $0x1f8] sm:$0xff]
          %v608 = vld [vmem:[#allocation3 + $0x200] sm:$0xff]
          %v609 = vld [vmem:[#allocation3 + $0x208] sm:$0xff]
          %v610 = vld [vmem:[#allocation3 + $0x210] sm:$0xff]
          %v611 = vld [vmem:[#allocation3 + $0x218] sm:$0xff]
          %v612 = vld [vmem:[#allocation3 + $0x220] sm:$0xff]
          %v613 = vld [vmem:[#allocation3 + $0x228] sm:$0xff]
          %v614 = vld [vmem:[#allocation3 + $0x230] sm:$0xff]
          %v615 = vld [vmem:[#allocation3 + $0x238] sm:$0xff]
          %v616 = vld [vmem:[#allocation3 + $0x240] sm:$0xff]
          %v617 = vld [vmem:[#allocation3 + $0x248] sm:$0xff]
          %v618 = vld [vmem:[#allocation3 + $0x250] sm:$0xff]
          %v619 = vld [vmem:[#allocation3 + $0x258] sm:$0xff]
          %v620 = vld [vmem:[#allocation3 + $0x260] sm:$0xff]
          %v621 = vld [vmem:[#allocation3 + $0x268] sm:$0xff]
          %v622 = vld [vmem:[#allocation3 + $0x270] sm:$0xff]
          %v623 = vld [vmem:[#allocation3 + $0x278] sm:$0xff]
          %v624 = vld [vmem:[#allocation3 + $0x280] sm:$0xff]
          %v625 = vld [vmem:[#allocation3 + $0x288] sm:$0xff]
          %v626 = vld [vmem:[#allocation3 + $0x290] sm:$0xff]
          %v627 = vld [vmem:[#allocation3 + $0x298] sm:$0xff]
          %v628 = vld [vmem:[#allocation3 + $0x2a0] sm:$0xff]
          %v629 = vld [vmem:[#allocation3 + $0x2a8] sm:$0xff]
          %v630 = vld [vmem:[#allocation3 + $0x2b0] sm:$0xff]
          %v631 = vld [vmem:[#allocation3 + $0x2b8] sm:$0xff]
          %v632 = vld [vmem:[#allocation3 + $0x2c0] sm:$0xff]
          %v633 = vld [vmem:[#allocation3 + $0x2c8] sm:$0xff]
          %v634 = vld [vmem:[#allocation3 + $0x2d0] sm:$0xff]
          %v635 = vld [vmem:[#allocation3 + $0x2d8] sm:$0xff]
          %v636 = vld [vmem:[#allocation3 + $0x2e0] sm:$0xff]
          %v637 = vld [vmem:[#allocation3 + $0x2e8] sm:$0xff]
          %v638 = vld [vmem:[#allocation3 + $0x2f0] sm:$0xff]
          %v639 = vld [vmem:[#allocation3 + $0x2f8] sm:$0xff]
          %v640 = vld [vmem:[#allocation3 + $0x300] sm:$0xff]
          %v641 = vld [vmem:[#allocation3 + $0x308] sm:$0xff]
          %v642 = vld [vmem:[#allocation3 + $0x310] sm:$0xff]
          %v643 = vld [vmem:[#allocation3 + $0x318] sm:$0xff]
          %v644 = vld [vmem:[#allocation3 + $0x320] sm:$0xff]
          %v645 = vld [vmem:[#allocation3 + $0x328] sm:$0xff]
          %v646 = vld [vmem:[#allocation3 + $0x330] sm:$0xff]
          %v647 = vld [vmem:[#allocation3 + $0x338] sm:$0xff]
          %v648 = vld [vmem:[#allocation3 + $0x340] sm:$0xff]
          %v649 = vld [vmem:[#allocation3 + $0x348] sm:$0xff]
          %v650 = vld [vmem:[#allocation3 + $0x350] sm:$0xff]
          %v651 = vld [vmem:[#allocation3 + $0x358] sm:$0xff]
          %v652 = vld [vmem:[#allocation3 + $0x360] sm:$0xff]
          %v653 = vld [vmem:[#allocation3 + $0x368] sm:$0xff]
          %v654 = vld [vmem:[#allocation3 + $0x370] sm:$0xff]
          %v655 = vld [vmem:[#allocation3 + $0x378] sm:$0xff]
          %v656 = vld [vmem:[#allocation3 + $0x380] sm:$0xff]
          %v657 = vld [vmem:[#allocation3 + $0x388] sm:$0xff]
          %v658 = vld [vmem:[#allocation3 + $0x390] sm:$0xff]
          %v659 = vld [vmem:[#allocation3 + $0x398] sm:$0xff]
          %v660 = vld [vmem:[#allocation3 + $0x3a0] sm:$0xff]
          %v661 = vld [vmem:[#allocation3 + $0x3a8] sm:$0xff]
          %v662 = vld [vmem:[#allocation3 + $0x3b0] sm:$0xff]
          %v663 = vld [vmem:[#allocation3 + $0x3b8] sm:$0xff]
          %v664 = vld [vmem:[#allocation3 + $0x3c0] sm:$0xff]
          %v665 = vld [vmem:[#allocation3 + $0x3c8] sm:$0xff]
          %v666 = vld [vmem:[#allocation3 + $0x3d0] sm:$0xff]
          %v667 = vld [vmem:[#allocation3 + $0x3d8] sm:$0xff]
          %v668 = vld [vmem:[#allocation3 + $0x3e0] sm:$0xff]
          %v669 = vld [vmem:[#allocation3 + $0x3e8] sm:$0xff]
          %v670 = vld [vmem:[#allocation3 + $0x3f0] sm:$0xff]
          %v671 = vld [vmem:[#allocation3 + $0x3f8] sm:$0xff]
          %v672 = vld [vmem:[#allocation3 + $0x400] sm:$0xff]
          %v673 = vld [vmem:[#allocation3 + $0x408] sm:$0xff]
          %v674 = vld [vmem:[#allocation3 + $0x410] sm:$0xff]
          %v675 = vld [vmem:[#allocation3 + $0x418] sm:$0xff]
          %v676 = vld [vmem:[#allocation3 + $0x420] sm:$0xff]
          %v677 = vld [vmem:[#allocation3 + $0x428] sm:$0xff]
          %v678 = vld [vmem:[#allocation3 + $0x430] sm:$0xff]
          %v679 = vld [vmem:[#allocation3 + $0x438] sm:$0xff]
          %v680 = vld [vmem:[#allocation3 + $0x440] sm:$0xff]
          %v681 = vld [vmem:[#allocation3 + $0x448] sm:$0xff]
          %v682 = vld [vmem:[#allocation3 + $0x450] sm:$0xff]
          %v683 = vld [vmem:[#allocation3 + $0x458] sm:$0xff]
          %v684 = vld [vmem:[#allocation3 + $0x460] sm:$0xff]
          %v685 = vld [vmem:[#allocation3 + $0x468] sm:$0xff]
          %v686 = vld [vmem:[#allocation3 + $0x470] sm:$0xff]
          %v687 = vld [vmem:[#allocation3 + $0x478] sm:$0xff]
          %v688 = vld [vmem:[#allocation3 + $0x480] sm:$0xff]
          %v689 = vld [vmem:[#allocation3 + $0x488] sm:$0xff]
          %v690 = vld [vmem:[#allocation3 + $0x490] sm:$0xff]
          %v691 = vld [vmem:[#allocation3 + $0x498] sm:$0xff]
          %v692 = vld [vmem:[#allocation3 + $0x4a0] sm:$0xff]
          %v693 = vld [vmem:[#allocation3 + $0x4a8] sm:$0xff]
          %v694 = vld [vmem:[#allocation3 + $0x4b0] sm:$0xff]
          %v695 = vld [vmem:[#allocation3 + $0x4b8] sm:$0xff]
          %v696 = vld [vmem:[#allocation3 + $0x4c0] sm:$0xff]
          %v697 = vld [vmem:[#allocation3 + $0x4c8] sm:$0xff]
          %v698 = vld [vmem:[#allocation3 + $0x4d0] sm:$0xff]
          %v699 = vld [vmem:[#allocation3 + $0x4d8] sm:$0xff]
          %v700 = vld [vmem:[#allocation3 + $0x4e0] sm:$0xff]
          %v701 = vld [vmem:[#allocation3 + $0x4e8] sm:$0xff]
          %v702 = vld [vmem:[#allocation3 + $0x4f0] sm:$0xff]
          %v703 = vld [vmem:[#allocation3 + $0x4f8] sm:$0xff]
          %v704 = vld [vmem:[#allocation3 + $0x500] sm:$0xff]
          %v705 = vld [vmem:[#allocation3 + $0x508] sm:$0xff]
          %v706 = vld [vmem:[#allocation3 + $0x510] sm:$0xff]
          %v707 = vld [vmem:[#allocation3 + $0x518] sm:$0xff]
          %v708 = vld [vmem:[#allocation3 + $0x520] sm:$0xff]
          %v709 = vld [vmem:[#allocation3 + $0x528] sm:$0xff]
          %v710 = vld [vmem:[#allocation3 + $0x530] sm:$0xff]
          %v711 = vld [vmem:[#allocation3 + $0x538] sm:$0xff]
          %v712 = vld [vmem:[#allocation3 + $0x540] sm:$0xff]
          %v713 = vld [vmem:[#allocation3 + $0x548] sm:$0xff]
          %v714 = vld [vmem:[#allocation3 + $0x550] sm:$0xff]
          %v715 = vld [vmem:[#allocation3 + $0x558] sm:$0xff]
          %v716 = vld [vmem:[#allocation3 + $0x560] sm:$0xff]
          %v717 = vld [vmem:[#allocation3 + $0x568] sm:$0xff]
          %v718 = vld [vmem:[#allocation3 + $0x570] sm:$0xff]
          %v719 = vld [vmem:[#allocation3 + $0x578] sm:$0xff]
          %v720 = vld [vmem:[#allocation3 + $0x580] sm:$0xff]
          %v721 = vld [vmem:[#allocation3 + $0x588] sm:$0xff]
          %v722 = vld [vmem:[#allocation3 + $0x590] sm:$0xff]
          %v723 = vld [vmem:[#allocation3 + $0x598] sm:$0xff]
          %v724 = vld [vmem:[#allocation3 + $0x5a0] sm:$0xff]
          %v725 = vld [vmem:[#allocation3 + $0x5a8] sm:$0xff]
          %v726 = vld [vmem:[#allocation3 + $0x5b0] sm:$0xff]
          %v727 = vld [vmem:[#allocation3 + $0x5b8] sm:$0xff]
          %v728 = vld [vmem:[#allocation3 + $0x5c0] sm:$0xff]
          %v729 = vld [vmem:[#allocation3 + $0x5c8] sm:$0xff]
          %v730 = vld [vmem:[#allocation3 + $0x5d0] sm:$0xff]
          %v731 = vld [vmem:[#allocation3 + $0x5d8] sm:$0xff]
          %v732 = vld [vmem:[#allocation3 + $0x5e0] sm:$0xff]
          %v733 = vld [vmem:[#allocation3 + $0x5e8] sm:$0xff]
          %v734 = vld [vmem:[#allocation3 + $0x5f0] sm:$0xff]
          %v735 = vld [vmem:[#allocation3 + $0x5f8] sm:$0xff]
          %v736 = vld [vmem:[#allocation3 + $0x600] sm:$0xff]
          %v737 = vld [vmem:[#allocation3 + $0x608] sm:$0xff]
          %v738 = vld [vmem:[#allocation3 + $0x610] sm:$0xff]
          %v739 = vld [vmem:[#allocation3 + $0x618] sm:$0xff]
          %v742 = vperm.slane %v528, 0
          %v743 = vperm.slane %v528, 4
          %v744 = vperm.slane %v529, 0
          %v745 = vperm.slane %v529, 4
          %v750 = vperm.slane %v742, 0
          %v751 = vperm.slane %v743, 0
          %v752 = vperm.slane %v744, 0
          %v753 = vperm.slane %v745, 0
          %v950 = vunpack.c.l.b16 %v544
          %v951 = vunpack.c.h.b16 %v544
          %v952 = vunpack.c.l.b16 %v545
          %v953 = vunpack.c.h.b16 %v545
          %v954 = vunpack.c.l.b16 %v546
          %v955 = vunpack.c.h.b16 %v546
          %v956 = vunpack.c.l.b16 %v547
          %v957 = vunpack.c.h.b16 %v547
          %v958 = vunpack.c.l.b16 %v548
          %v959 = vunpack.c.h.b16 %v548
          %v960 = vunpack.c.l.b16 %v549
          %v961 = vunpack.c.h.b16 %v549
          %v962 = vunpack.c.l.b16 %v550
          %v963 = vunpack.c.h.b16 %v550
          %v964 = vunpack.c.l.b16 %v551
          %v965 = vunpack.c.h.b16 %v551
          %v966 = vunpack.c.l.b16 %v552
          %v967 = vunpack.c.h.b16 %v552
          %v968 = vunpack.c.l.b16 %v553
          %v969 = vunpack.c.h.b16 %v553
          %v970 = vunpack.c.l.b16 %v554
          %v971 = vunpack.c.h.b16 %v554
          %v972 = vunpack.c.l.b16 %v555
          %v973 = vunpack.c.h.b16 %v555
          %v974 = vunpack.c.l.b16 %v556
          %v975 = vunpack.c.h.b16 %v556
          %v976 = vunpack.c.l.b16 %v557
          %v977 = vunpack.c.h.b16 %v557
          %v978 = vunpack.c.l.b16 %v558
          %v979 = vunpack.c.h.b16 %v558
          %v980 = vunpack.c.l.b16 %v559
          %v981 = vunpack.c.h.b16 %v559
          %v982 = vunpack.c.l.b16 %v560
          %v983 = vunpack.c.h.b16 %v560
          %v984 = vunpack.c.l.b16 %v561
          %v985 = vunpack.c.h.b16 %v561
          %v986 = vunpack.c.l.b16 %v562
          %v987 = vunpack.c.h.b16 %v562
          %v988 = vunpack.c.l.b16 %v563
          %v989 = vunpack.c.h.b16 %v563
          %v990 = vunpack.c.l.b16 %v564
          %v991 = vunpack.c.h.b16 %v564
          %v992 = vunpack.c.l.b16 %v565
          %v993 = vunpack.c.h.b16 %v565
          %v994 = vunpack.c.l.b16 %v566
          %v995 = vunpack.c.h.b16 %v566
          %v996 = vunpack.c.l.b16 %v567
          %v997 = vunpack.c.h.b16 %v567
          %v998 = vunpack.c.l.b16 %v568
          %v999 = vunpack.c.h.b16 %v568
          %v1000 = vunpack.c.l.b16 %v569
          %v1001 = vunpack.c.h.b16 %v569
          %v1002 = vunpack.c.l.b16 %v570
          %v1003 = vunpack.c.h.b16 %v570
          %v1004 = vunpack.c.l.b16 %v571
          %v1005 = vunpack.c.h.b16 %v571
          %v1006 = vunpack.c.l.b16 %v572
          %v1007 = vunpack.c.h.b16 %v572
          %v1008 = vunpack.c.l.b16 %v573
          %v1009 = vunpack.c.h.b16 %v573
          %v1010 = vunpack.c.l.b16 %v574
          %v1011 = vunpack.c.h.b16 %v574
          %v1012 = vunpack.c.l.b16 %v575
          %v1013 = vunpack.c.h.b16 %v575
          %v1014 = vunpack.c.l.b16 %v576
          %v1015 = vunpack.c.h.b16 %v576
          %v1016 = vunpack.c.l.b16 %v577
          %v1017 = vunpack.c.h.b16 %v577
          %v1018 = vunpack.c.l.b16 %v578
          %v1019 = vunpack.c.h.b16 %v578
          %v1020 = vunpack.c.l.b16 %v579
          %v1021 = vunpack.c.h.b16 %v579
          %v1022 = vunpack.c.l.b16 %v580
          %v1023 = vunpack.c.h.b16 %v580
          %v1024 = vunpack.c.l.b16 %v581
          %v1025 = vunpack.c.h.b16 %v581
          %v1026 = vunpack.c.l.b16 %v582
          %v1027 = vunpack.c.h.b16 %v582
          %v1028 = vunpack.c.l.b16 %v583
          %v1029 = vunpack.c.h.b16 %v583
          %v1030 = vunpack.c.l.b16 %v584
          %v1031 = vunpack.c.h.b16 %v584
          %v1032 = vunpack.c.l.b16 %v585
          %v1033 = vunpack.c.h.b16 %v585
          %v1034 = vunpack.c.l.b16 %v586
          %v1035 = vunpack.c.h.b16 %v586
          %v1036 = vunpack.c.l.b16 %v587
          %v1037 = vunpack.c.h.b16 %v587
          %v1038 = vunpack.c.l.b16 %v588
          %v1039 = vunpack.c.h.b16 %v588
          %v1040 = vunpack.c.l.b16 %v589
          %v1041 = vunpack.c.h.b16 %v589
          %v1042 = vunpack.c.l.b16 %v590
          %v1043 = vunpack.c.h.b16 %v590
          %v1044 = vunpack.c.l.b16 %v591
          %v1045 = vunpack.c.h.b16 %v591
          %v1046 = vunpack.c.l.b16 %v592
          %v1047 = vunpack.c.h.b16 %v592
          %v1048 = vunpack.c.l.b16 %v593
          %v1049 = vunpack.c.h.b16 %v593
          %v1050 = vunpack.c.l.b16 %v594
          %v1051 = vunpack.c.h.b16 %v594
          %v1052 = vunpack.c.l.b16 %v595
          %v1053 = vunpack.c.h.b16 %v595
          %v1054 = vunpack.c.l.b16 %v596
          %v1055 = vunpack.c.h.b16 %v596
          %v1056 = vunpack.c.l.b16 %v597
          %v1057 = vunpack.c.h.b16 %v597
          %v1058 = vunpack.c.l.b16 %v598
          %v1059 = vunpack.c.h.b16 %v598
          %v1060 = vunpack.c.l.b16 %v599
          %v1061 = vunpack.c.h.b16 %v599
          %v1062 = vunpack.c.l.b16 %v600
          %v1063 = vunpack.c.h.b16 %v600
          %v1064 = vunpack.c.l.b16 %v601
          %v1065 = vunpack.c.h.b16 %v601
          %v1066 = vunpack.c.l.b16 %v602
          %v1067 = vunpack.c.h.b16 %v602
          %v1068 = vunpack.c.l.b16 %v603
          %v1069 = vunpack.c.h.b16 %v603
          %v1070 = vunpack.c.l.b16 %v604
          %v1071 = vunpack.c.h.b16 %v604
          %v1072 = vunpack.c.l.b16 %v605
          %v1073 = vunpack.c.h.b16 %v605
          %v1074 = vunpack.c.l.b16 %v606
          %v1075 = vunpack.c.h.b16 %v606
          %v1076 = vunpack.c.l.b16 %v607
          %v1077 = vunpack.c.h.b16 %v607
          %v1078 = vunpack.c.l.b16 %v608
          %v1079 = vunpack.c.h.b16 %v608
          %v1080 = vunpack.c.l.b16 %v609
          %v1081 = vunpack.c.h.b16 %v609
          %v1082 = vunpack.c.l.b16 %v610
          %v1083 = vunpack.c.h.b16 %v610
          %v1084 = vunpack.c.l.b16 %v611
          %v1085 = vunpack.c.h.b16 %v611
          %v1086 = vunpack.c.l.b16 %v612
          %v1087 = vunpack.c.h.b16 %v612
          %v1088 = vunpack.c.l.b16 %v613
          %v1089 = vunpack.c.h.b16 %v613
          %v1090 = vunpack.c.l.b16 %v614
          %v1091 = vunpack.c.h.b16 %v614
          %v1092 = vunpack.c.l.b16 %v615
          %v1093 = vunpack.c.h.b16 %v615
          %v1094 = vunpack.c.l.b16 %v616
          %v1095 = vunpack.c.h.b16 %v616
          %v1096 = vunpack.c.l.b16 %v617
          %v1097 = vunpack.c.h.b16 %v617
          %v1098 = vunpack.c.l.b16 %v618
          %v1099 = vunpack.c.h.b16 %v618
          %v1100 = vunpack.c.l.b16 %v619
          %v1101 = vunpack.c.h.b16 %v619
          %v1102 = vunpack.c.l.b16 %v620
          %v1103 = vunpack.c.h.b16 %v620
          %v1104 = vunpack.c.l.b16 %v621
          %v1105 = vunpack.c.h.b16 %v621
          %v1106 = vunpack.c.l.b16 %v622
          %v1107 = vunpack.c.h.b16 %v622
          %v1108 = vunpack.c.l.b16 %v623
          %v1109 = vunpack.c.h.b16 %v623
          %v1110 = vunpack.c.l.b16 %v624
          %v1111 = vunpack.c.h.b16 %v624
          %v1112 = vunpack.c.l.b16 %v625
          %v1113 = vunpack.c.h.b16 %v625
          %v1114 = vunpack.c.l.b16 %v626
          %v1115 = vunpack.c.h.b16 %v626
          %v1116 = vunpack.c.l.b16 %v627
          %v1117 = vunpack.c.h.b16 %v627
          %v1118 = vunpack.c.l.b16 %v628
          %v1119 = vunpack.c.h.b16 %v628
          %v1120 = vunpack.c.l.b16 %v629
          %v1121 = vunpack.c.h.b16 %v629
          %v1122 = vunpack.c.l.b16 %v630
          %v1123 = vunpack.c.h.b16 %v630
          %v1124 = vunpack.c.l.b16 %v631
          %v1125 = vunpack.c.h.b16 %v631
          %v1126 = vunpack.c.l.b16 %v632
          %v1127 = vunpack.c.h.b16 %v632
          %v1128 = vunpack.c.l.b16 %v633
          %v1129 = vunpack.c.h.b16 %v633
          %v1130 = vunpack.c.l.b16 %v634
          %v1131 = vunpack.c.h.b16 %v634
          %v1132 = vunpack.c.l.b16 %v635
          %v1133 = vunpack.c.h.b16 %v635
          %v1134 = vunpack.c.l.b16 %v636
          %v1135 = vunpack.c.h.b16 %v636
          %v1136 = vunpack.c.l.b16 %v637
          %v1137 = vunpack.c.h.b16 %v637
          %v1138 = vunpack.c.l.b16 %v638
          %v1139 = vunpack.c.h.b16 %v638
          %v1140 = vunpack.c.l.b16 %v639
          %v1141 = vunpack.c.h.b16 %v639
          %v1142 = vunpack.c.l.b16 %v640
          %v1143 = vunpack.c.h.b16 %v640
          %v1144 = vunpack.c.l.b16 %v641
          %v1145 = vunpack.c.h.b16 %v641
          %v1146 = vunpack.c.l.b16 %v642
          %v1147 = vunpack.c.h.b16 %v642
          %v1148 = vunpack.c.l.b16 %v643
          %v1149 = vunpack.c.h.b16 %v643
          %v1150 = vunpack.c.l.b16 %v644
          %v1151 = vunpack.c.h.b16 %v644
          %v1152 = vunpack.c.l.b16 %v645
          %v1153 = vunpack.c.h.b16 %v645
          %v1154 = vunpack.c.l.b16 %v646
          %v1155 = vunpack.c.h.b16 %v646
          %v1156 = vunpack.c.l.b16 %v647
          %v1157 = vunpack.c.h.b16 %v647
          %v1158 = vunpack.c.l.b16 %v648
          %v1159 = vunpack.c.h.b16 %v648
          %v1160 = vunpack.c.l.b16 %v649
          %v1161 = vunpack.c.h.b16 %v649
          %v1162 = vunpack.c.l.b16 %v650
          %v1163 = vunpack.c.h.b16 %v650
          %v1164 = vunpack.c.l.b16 %v651
          %v1165 = vunpack.c.h.b16 %v651
          %v1166 = vunpack.c.l.b16 %v652
          %v1167 = vunpack.c.h.b16 %v652
          %v1168 = vunpack.c.l.b16 %v653
          %v1169 = vunpack.c.h.b16 %v653
          %v1170 = vunpack.c.l.b16 %v654
          %v1171 = vunpack.c.h.b16 %v654
          %v1172 = vunpack.c.l.b16 %v655
          %v1173 = vunpack.c.h.b16 %v655
          %v1174 = vunpack.c.l.b16 %v656
          %v1175 = vunpack.c.h.b16 %v656
          %v1176 = vunpack.c.l.b16 %v657
          %v1177 = vunpack.c.h.b16 %v657
          %v1178 = vunpack.c.l.b16 %v658
          %v1179 = vunpack.c.h.b16 %v658
          %v1180 = vunpack.c.l.b16 %v659
          %v1181 = vunpack.c.h.b16 %v659
          %v1182 = vunpack.c.l.b16 %v660
          %v1183 = vunpack.c.h.b16 %v660
          %v1184 = vunpack.c.l.b16 %v661
          %v1185 = vunpack.c.h.b16 %v661
          %v1186 = vunpack.c.l.b16 %v662
          %v1187 = vunpack.c.h.b16 %v662
          %v1188 = vunpack.c.l.b16 %v663
          %v1189 = vunpack.c.h.b16 %v663
          %v1190 = vunpack.c.l.b16 %v664
          %v1191 = vunpack.c.h.b16 %v664
          %v1192 = vunpack.c.l.b16 %v665
          %v1193 = vunpack.c.h.b16 %v665
          %v1194 = vunpack.c.l.b16 %v666
          %v1195 = vunpack.c.h.b16 %v666
          %v1196 = vunpack.c.l.b16 %v667
          %v1197 = vunpack.c.h.b16 %v667
          %v1198 = vunpack.c.l.b16 %v668
          %v1199 = vunpack.c.h.b16 %v668
          %v1200 = vunpack.c.l.b16 %v669
          %v1201 = vunpack.c.h.b16 %v669
          %v1202 = vunpack.c.l.b16 %v670
          %v1203 = vunpack.c.h.b16 %v670
          %v1204 = vunpack.c.l.b16 %v671
          %v1205 = vunpack.c.h.b16 %v671
          %v1206 = vunpack.c.l.b16 %v672
          %v1207 = vunpack.c.h.b16 %v672
          %v1208 = vunpack.c.l.b16 %v673
          %v1209 = vunpack.c.h.b16 %v673
          %v1210 = vunpack.c.l.b16 %v674
          %v1211 = vunpack.c.h.b16 %v674
          %v1212 = vunpack.c.l.b16 %v675
          %v1213 = vunpack.c.h.b16 %v675
          %v1214 = vunpack.c.l.b16 %v676
          %v1215 = vunpack.c.h.b16 %v676
          %v1216 = vunpack.c.l.b16 %v677
          %v1217 = vunpack.c.h.b16 %v677
          %v1218 = vunpack.c.l.b16 %v678
          %v1219 = vunpack.c.h.b16 %v678
          %v1220 = vunpack.c.l.b16 %v679
          %v1221 = vunpack.c.h.b16 %v679
          %v1222 = vunpack.c.l.b16 %v680
          %v1223 = vunpack.c.h.b16 %v680
          %v1224 = vunpack.c.l.b16 %v681
          %v1225 = vunpack.c.h.b16 %v681
          %v1226 = vunpack.c.l.b16 %v682
          %v1227 = vunpack.c.h.b16 %v682
          %v1228 = vunpack.c.l.b16 %v683
          %v1229 = vunpack.c.h.b16 %v683
          %v1230 = vunpack.c.l.b16 %v684
          %v1231 = vunpack.c.h.b16 %v684
          %v1232 = vunpack.c.l.b16 %v685
          %v1233 = vunpack.c.h.b16 %v685
          %v1234 = vunpack.c.l.b16 %v686
          %v1235 = vunpack.c.h.b16 %v686
          %v1236 = vunpack.c.l.b16 %v687
          %v1237 = vunpack.c.h.b16 %v687
          %v1238 = vunpack.c.l.b16 %v688
          %v1239 = vunpack.c.h.b16 %v688
          %v1240 = vunpack.c.l.b16 %v689
          %v1241 = vunpack.c.h.b16 %v689
          %v1242 = vunpack.c.l.b16 %v690
          %v1243 = vunpack.c.h.b16 %v690
          %v1244 = vunpack.c.l.b16 %v691
          %v1245 = vunpack.c.h.b16 %v691
          %v1246 = vunpack.c.l.b16 %v692
          %v1247 = vunpack.c.h.b16 %v692
          %v1248 = vunpack.c.l.b16 %v693
          %v1249 = vunpack.c.h.b16 %v693
          %v1250 = vunpack.c.l.b16 %v694
          %v1251 = vunpack.c.h.b16 %v694
          %v1252 = vunpack.c.l.b16 %v695
          %v1253 = vunpack.c.h.b16 %v695
          %v1254 = vunpack.c.l.b16 %v696
          %v1255 = vunpack.c.h.b16 %v696
          %v1256 = vunpack.c.l.b16 %v697
          %v1257 = vunpack.c.h.b16 %v697
          %v1258 = vunpack.c.l.b16 %v698
          %v1259 = vunpack.c.h.b16 %v698
          %v1260 = vunpack.c.l.b16 %v699
          %v1261 = vunpack.c.h.b16 %v699
          %v1262 = vunpack.c.l.b16 %v700
          %v1263 = vunpack.c.h.b16 %v700
          %v1264 = vunpack.c.l.b16 %v701
          %v1265 = vunpack.c.h.b16 %v701
          %v1266 = vunpack.c.l.b16 %v702
          %v1267 = vunpack.c.h.b16 %v702
          %v1268 = vunpack.c.l.b16 %v703
          %v1269 = vunpack.c.h.b16 %v703
          %v1270 = vunpack.c.l.b16 %v704
          %v1271 = vunpack.c.h.b16 %v704
          %v1272 = vunpack.c.l.b16 %v705
          %v1273 = vunpack.c.h.b16 %v705
          %v1274 = vunpack.c.l.b16 %v706
          %v1275 = vunpack.c.h.b16 %v706
          %v1276 = vunpack.c.l.b16 %v707
          %v1277 = vunpack.c.h.b16 %v707
          %v1278 = vunpack.c.l.b16 %v708
          %v1279 = vunpack.c.h.b16 %v708
          %v1280 = vunpack.c.l.b16 %v709
          %v1281 = vunpack.c.h.b16 %v709
          %v1282 = vunpack.c.l.b16 %v710
          %v1283 = vunpack.c.h.b16 %v710
          %v1284 = vunpack.c.l.b16 %v711
          %v1285 = vunpack.c.h.b16 %v711
          %v1286 = vunpack.c.l.b16 %v712
          %v1287 = vunpack.c.h.b16 %v712
          %v1288 = vunpack.c.l.b16 %v713
          %v1289 = vunpack.c.h.b16 %v713
          %v1290 = vunpack.c.l.b16 %v714
          %v1291 = vunpack.c.h.b16 %v714
          %v1292 = vunpack.c.l.b16 %v715
          %v1293 = vunpack.c.h.b16 %v715
          %v1294 = vunpack.c.l.b16 %v716
          %v1295 = vunpack.c.h.b16 %v716
          %v1296 = vunpack.c.l.b16 %v717
          %v1297 = vunpack.c.h.b16 %v717
          %v1298 = vunpack.c.l.b16 %v718
          %v1299 = vunpack.c.h.b16 %v718
          %v1300 = vunpack.c.l.b16 %v719
          %v1301 = vunpack.c.h.b16 %v719
          %v1302 = vunpack.c.l.b16 %v720
          %v1303 = vunpack.c.h.b16 %v720
          %v1304 = vunpack.c.l.b16 %v721
          %v1305 = vunpack.c.h.b16 %v721
          %v1306 = vunpack.c.l.b16 %v722
          %v1307 = vunpack.c.h.b16 %v722
          %v1308 = vunpack.c.l.b16 %v723
          %v1309 = vunpack.c.h.b16 %v723
          %v1310 = vunpack.c.l.b16 %v724
          %v1311 = vunpack.c.h.b16 %v724
          %v1312 = vunpack.c.l.b16 %v725
          %v1313 = vunpack.c.h.b16 %v725
          %v1314 = vunpack.c.l.b16 %v726
          %v1315 = vunpack.c.h.b16 %v726
          %v1316 = vunpack.c.l.b16 %v727
          %v1317 = vunpack.c.h.b16 %v727
          %v1318 = vunpack.c.l.b16 %v728
          %v1319 = vunpack.c.h.b16 %v728
          %v1320 = vunpack.c.l.b16 %v729
          %v1321 = vunpack.c.h.b16 %v729
          %v1322 = vunpack.c.l.b16 %v730
          %v1323 = vunpack.c.h.b16 %v730
          %v1324 = vunpack.c.l.b16 %v731
          %v1325 = vunpack.c.h.b16 %v731
          %v1326 = vunpack.c.l.b16 %v732
          %v1327 = vunpack.c.h.b16 %v732
          %v1328 = vunpack.c.l.b16 %v733
          %v1329 = vunpack.c.h.b16 %v733
          %v1330 = vunpack.c.l.b16 %v734
          %v1331 = vunpack.c.h.b16 %v734
          %v1332 = vunpack.c.l.b16 %v735
          %v1333 = vunpack.c.h.b16 %v735
          %v1334 = vunpack.c.l.b16 %v736
          %v1335 = vunpack.c.h.b16 %v736
          %v1336 = vunpack.c.l.b16 %v737
          %v1337 = vunpack.c.h.b16 %v737
          %v1338 = vunpack.c.l.b16 %v738
          %v1339 = vunpack.c.h.b16 %v738
          %v1340 = vunpack.c.l.b16 %v739
          %v1341 = vunpack.c.h.b16 %v739
          %v1342 = vpack.c.b16 %v954, %v950
          %v1343 = vpack.c.b16 %v955, %v951
          %v1344 = vpack.c.b16 %v956, %v952
          %v1345 = vpack.c.b16 %v957, %v953
          %v1346 = vpack.c.b16 %v962, %v958
          %v1347 = vpack.c.b16 %v963, %v959
          %v1348 = vpack.c.b16 %v964, %v960
          %v1349 = vpack.c.b16 %v965, %v961
          %v1350 = vpack.c.b16 %v970, %v966
          %v1351 = vpack.c.b16 %v971, %v967
          %v1352 = vpack.c.b16 %v972, %v968
          %v1353 = vpack.c.b16 %v973, %v969
          %v1354 = vpack.c.b16 %v978, %v974
          %v1355 = vpack.c.b16 %v979, %v975
          %v1356 = vpack.c.b16 %v980, %v976
          %v1357 = vpack.c.b16 %v981, %v977
          %v1358 = vpack.c.b16 %v986, %v982
          %v1359 = vpack.c.b16 %v987, %v983
          %v1360 = vpack.c.b16 %v988, %v984
          %v1361 = vpack.c.b16 %v989, %v985
          %v1362 = vpack.c.b16 %v994, %v990
          %v1363 = vpack.c.b16 %v995, %v991
          %v1364 = vpack.c.b16 %v996, %v992
          %v1365 = vpack.c.b16 %v997, %v993
          %v1366 = vpack.c.b16 %v1002, %v998
          %v1367 = vpack.c.b16 %v1003, %v999
          %v1368 = vpack.c.b16 %v1004, %v1000
          %v1369 = vpack.c.b16 %v1005, %v1001
          %v1370 = vpack.c.b16 %v1010, %v1006
          %v1371 = vpack.c.b16 %v1011, %v1007
          %v1372 = vpack.c.b16 %v1012, %v1008
          %v1373 = vpack.c.b16 %v1013, %v1009
          %v1374 = vpack.c.b16 %v1018, %v1014
          %v1375 = vpack.c.b16 %v1019, %v1015
          %v1376 = vpack.c.b16 %v1020, %v1016
          %v1377 = vpack.c.b16 %v1021, %v1017
          %v1378 = vpack.c.b16 %v1026, %v1022
          %v1379 = vpack.c.b16 %v1027, %v1023
          %v1380 = vpack.c.b16 %v1028, %v1024
          %v1381 = vpack.c.b16 %v1029, %v1025
          %v1382 = vpack.c.b16 %v1034, %v1030
          %v1383 = vpack.c.b16 %v1035, %v1031
          %v1384 = vpack.c.b16 %v1036, %v1032
          %v1385 = vpack.c.b16 %v1037, %v1033
          %v1386 = vpack.c.b16 %v1042, %v1038
          %v1387 = vpack.c.b16 %v1043, %v1039
          %v1388 = vpack.c.b16 %v1044, %v1040
          %v1389 = vpack.c.b16 %v1045, %v1041
          %v1390 = vpack.c.b16 %v1050, %v1046
          %v1391 = vpack.c.b16 %v1051, %v1047
          %v1392 = vpack.c.b16 %v1052, %v1048
          %v1393 = vpack.c.b16 %v1053, %v1049
          %v1394 = vpack.c.b16 %v1058, %v1054
          %v1395 = vpack.c.b16 %v1059, %v1055
          %v1396 = vpack.c.b16 %v1060, %v1056
          %v1397 = vpack.c.b16 %v1061, %v1057
          %v1398 = vpack.c.b16 %v1066, %v1062
          %v1399 = vpack.c.b16 %v1067, %v1063
          %v1400 = vpack.c.b16 %v1068, %v1064
          %v1401 = vpack.c.b16 %v1069, %v1065
          %v1402 = vpack.c.b16 %v1074, %v1070
          %v1403 = vpack.c.b16 %v1075, %v1071
          %v1404 = vpack.c.b16 %v1076, %v1072
          %v1405 = vpack.c.b16 %v1077, %v1073
          %v1406 = vpack.c.b16 %v1082, %v1078
          %v1407 = vpack.c.b16 %v1083, %v1079
          %v1408 = vpack.c.b16 %v1084, %v1080
          %v1409 = vpack.c.b16 %v1085, %v1081
          %v1410 = vpack.c.b16 %v1090, %v1086
          %v1411 = vpack.c.b16 %v1091, %v1087
          %v1412 = vpack.c.b16 %v1092, %v1088
          %v1413 = vpack.c.b16 %v1093, %v1089
          %v1414 = vpack.c.b16 %v1098, %v1094
          %v1415 = vpack.c.b16 %v1099, %v1095
          %v1416 = vpack.c.b16 %v1100, %v1096
          %v1417 = vpack.c.b16 %v1101, %v1097
          %v1418 = vpack.c.b16 %v1106, %v1102
          %v1419 = vpack.c.b16 %v1107, %v1103
          %v1420 = vpack.c.b16 %v1108, %v1104
          %v1421 = vpack.c.b16 %v1109, %v1105
          %v1422 = vpack.c.b16 %v1114, %v1110
          %v1423 = vpack.c.b16 %v1115, %v1111
          %v1424 = vpack.c.b16 %v1116, %v1112
          %v1425 = vpack.c.b16 %v1117, %v1113
          %v1426 = vpack.c.b16 %v1122, %v1118
          %v1427 = vpack.c.b16 %v1123, %v1119
          %v1428 = vpack.c.b16 %v1124, %v1120
          %v1429 = vpack.c.b16 %v1125, %v1121
          %v1430 = vpack.c.b16 %v1130, %v1126
          %v1431 = vpack.c.b16 %v1131, %v1127
          %v1432 = vpack.c.b16 %v1132, %v1128
          %v1433 = vpack.c.b16 %v1133, %v1129
          %v1434 = vpack.c.b16 %v1138, %v1134
          %v1435 = vpack.c.b16 %v1139, %v1135
          %v1436 = vpack.c.b16 %v1140, %v1136
          %v1437 = vpack.c.b16 %v1141, %v1137
          %v1438 = vpack.c.b16 %v1146, %v1142
          %v1439 = vpack.c.b16 %v1147, %v1143
          %v1440 = vpack.c.b16 %v1148, %v1144
          %v1441 = vpack.c.b16 %v1149, %v1145
          %v1442 = vpack.c.b16 %v1154, %v1150
          %v1443 = vpack.c.b16 %v1155, %v1151
          %v1444 = vpack.c.b16 %v1156, %v1152
          %v1445 = vpack.c.b16 %v1157, %v1153
          %v1446 = vpack.c.b16 %v1162, %v1158
          %v1447 = vpack.c.b16 %v1163, %v1159
          %v1448 = vpack.c.b16 %v1164, %v1160
          %v1449 = vpack.c.b16 %v1165, %v1161
          %v1450 = vpack.c.b16 %v1170, %v1166
          %v1451 = vpack.c.b16 %v1171, %v1167
          %v1452 = vpack.c.b16 %v1172, %v1168
          %v1453 = vpack.c.b16 %v1173, %v1169
          %v1454 = vpack.c.b16 %v1178, %v1174
          %v1455 = vpack.c.b16 %v1179, %v1175
          %v1456 = vpack.c.b16 %v1180, %v1176
          %v1457 = vpack.c.b16 %v1181, %v1177
          %v1458 = vpack.c.b16 %v1186, %v1182
          %v1459 = vpack.c.b16 %v1187, %v1183
          %v1460 = vpack.c.b16 %v1188, %v1184
          %v1461 = vpack.c.b16 %v1189, %v1185
          %v1462 = vpack.c.b16 %v1194, %v1190
          %v1463 = vpack.c.b16 %v1195, %v1191
          %v1464 = vpack.c.b16 %v1196, %v1192
          %v1465 = vpack.c.b16 %v1197, %v1193
          %v1466 = vpack.c.b16 %v1202, %v1198
          %v1467 = vpack.c.b16 %v1203, %v1199
          %v1468 = vpack.c.b16 %v1204, %v1200
          %v1469 = vpack.c.b16 %v1205, %v1201
          %v1470 = vpack.c.b16 %v1210, %v1206
          %v1471 = vpack.c.b16 %v1211, %v1207
          %v1472 = vpack.c.b16 %v1212, %v1208
          %v1473 = vpack.c.b16 %v1213, %v1209
          %v1474 = vpack.c.b16 %v1218, %v1214
          %v1475 = vpack.c.b16 %v1219, %v1215
          %v1476 = vpack.c.b16 %v1220, %v1216
          %v1477 = vpack.c.b16 %v1221, %v1217
          %v1478 = vpack.c.b16 %v1226, %v1222
          %v1479 = vpack.c.b16 %v1227, %v1223
          %v1480 = vpack.c.b16 %v1228, %v1224
          %v1481 = vpack.c.b16 %v1229, %v1225
          %v1482 = vpack.c.b16 %v1234, %v1230
          %v1483 = vpack.c.b16 %v1235, %v1231
          %v1484 = vpack.c.b16 %v1236, %v1232
          %v1485 = vpack.c.b16 %v1237, %v1233
          %v1486 = vpack.c.b16 %v1242, %v1238
          %v1487 = vpack.c.b16 %v1243, %v1239
          %v1488 = vpack.c.b16 %v1244, %v1240
          %v1489 = vpack.c.b16 %v1245, %v1241
          %v1490 = vpack.c.b16 %v1250, %v1246
          %v1491 = vpack.c.b16 %v1251, %v1247
          %v1492 = vpack.c.b16 %v1252, %v1248
          %v1493 = vpack.c.b16 %v1253, %v1249
          %v1494 = vpack.c.b16 %v1258, %v1254
          %v1495 = vpack.c.b16 %v1259, %v1255
          %v1496 = vpack.c.b16 %v1260, %v1256
          %v1497 = vpack.c.b16 %v1261, %v1257
          %v1498 = vpack.c.b16 %v1266, %v1262
          %v1499 = vpack.c.b16 %v1267, %v1263
          %v1500 = vpack.c.b16 %v1268, %v1264
          %v1501 = vpack.c.b16 %v1269, %v1265
          %v1502 = vpack.c.b16 %v1274, %v1270
          %v1503 = vpack.c.b16 %v1275, %v1271
          %v1504 = vpack.c.b16 %v1276, %v1272
          %v1505 = vpack.c.b16 %v1277, %v1273
          %v1506 = vpack.c.b16 %v1282, %v1278
          %v1507 = vpack.c.b16 %v1283, %v1279
          %v1508 = vpack.c.b16 %v1284, %v1280
          %v1509 = vpack.c.b16 %v1285, %v1281
          %v1510 = vpack.c.b16 %v1290, %v1286
          %v1511 = vpack.c.b16 %v1291, %v1287
          %v1512 = vpack.c.b16 %v1292, %v1288
          %v1513 = vpack.c.b16 %v1293, %v1289
          %v1514 = vpack.c.b16 %v1298, %v1294
          %v1515 = vpack.c.b16 %v1299, %v1295
          %v1516 = vpack.c.b16 %v1300, %v1296
          %v1517 = vpack.c.b16 %v1301, %v1297
          %v1518 = vpack.c.b16 %v1306, %v1302
          %v1519 = vpack.c.b16 %v1307, %v1303
          %v1520 = vpack.c.b16 %v1308, %v1304
          %v1521 = vpack.c.b16 %v1309, %v1305
          %v1522 = vpack.c.b16 %v1314, %v1310
          %v1523 = vpack.c.b16 %v1315, %v1311
          %v1524 = vpack.c.b16 %v1316, %v1312
          %v1525 = vpack.c.b16 %v1317, %v1313
          %v1526 = vpack.c.b16 %v1322, %v1318
          %v1527 = vpack.c.b16 %v1323, %v1319
          %v1528 = vpack.c.b16 %v1324, %v1320
          %v1529 = vpack.c.b16 %v1325, %v1321
          %v1530 = vpack.c.b16 %v1330, %v1326
          %v1531 = vpack.c.b16 %v1331, %v1327
          %v1532 = vpack.c.b16 %v1332, %v1328
          %v1533 = vpack.c.b16 %v1333, %v1329
          %v1534 = vpack.c.b16 %v1338, %v1334
          %v1535 = vpack.c.b16 %v1339, %v1335
          %v1536 = vpack.c.b16 %v1340, %v1336
          %v1537 = vpack.c.b16 %v1341, %v1337
          %vm1734 = vcmask 130048
          %v1736 = vsel %vm1734, %v543, 0
          %1738 = vmatpush.bf16.msra.mxu0 %v1370
          %1739 = vmatpush.bf16.msra.mxu0 %v1366
          %1740 = vmatpush.bf16.msra.mxu0 %v1362
          %1741 = vmatpush.bf16.msra.mxu0 %v1358
          %1742 = vmatpush.bf16.msra.mxu0 %v1354
          %1743 = vmatpush.bf16.msra.mxu0 %v1350
          %1744 = vmatpush.bf16.msra.mxu0 %v1346
          %1745 = vmatpush.bf16.msra.mxu0 %v1342
          %1746 = vmatmul.bf16.gmra.mxu0 %v537
          %v1747 = vpop.f32.mrf.mxu0
          %v1748 = vadd.f32 %v750, %v1747
          %v1749 = vpop.f32.mrf.mxu0
          %1750 = vdwg.mxu0
          %1751 = vmatpush.bf16.msra.mxu0 %v1402
          %1752 = vmatpush.bf16.msra.mxu0 %v1398
          %1753 = vmatpush.bf16.msra.mxu0 %v1394
          %1754 = vmatpush.bf16.msra.mxu0 %v1390
          %1755 = vmatpush.bf16.msra.mxu0 %v1386
          %1756 = vmatpush.bf16.msra.mxu0 %v1382
          %1757 = vmatpush.bf16.msra.mxu0 %v1378
          %1758 = vmatpush.bf16.msra.mxu0 %v1374
          %1759 = vmatmul.bf16.gmra.mxu0 %v538
          %v1760 = vpop.f32.mrf.mxu0
          %v1761 = vadd.f32 %v1748, %v1760
          %v1762 = vpop.f32.mrf.mxu0
          %1763 = vdwg.mxu0
          %1764 = vmatpush.bf16.msra.mxu0 %v1434
          %1765 = vmatpush.bf16.msra.mxu0 %v1430
          %1766 = vmatpush.bf16.msra.mxu0 %v1426
          %1767 = vmatpush.bf16.msra.mxu0 %v1422
          %1768 = vmatpush.bf16.msra.mxu0 %v1418
          %1769 = vmatpush.bf16.msra.mxu0 %v1414
          %1770 = vmatpush.bf16.msra.mxu0 %v1410
          %1771 = vmatpush.bf16.msra.mxu0 %v1406
          %1772 = vmatmul.bf16.gmra.mxu0 %v539
          %v1773 = vpop.f32.mrf.mxu0
          %v1774 = vadd.f32 %v1761, %v1773
          %v1775 = vpop.f32.mrf.mxu0
          %1776 = vdwg.mxu0
          %1777 = vmatpush.bf16.msra.mxu0 %v1466
          %1778 = vmatpush.bf16.msra.mxu0 %v1462
          %1779 = vmatpush.bf16.msra.mxu0 %v1458
          %1780 = vmatpush.bf16.msra.mxu0 %v1454
          %1781 = vmatpush.bf16.msra.mxu0 %v1450
          %1782 = vmatpush.bf16.msra.mxu0 %v1446
          %1783 = vmatpush.bf16.msra.mxu0 %v1442
          %1784 = vmatpush.bf16.msra.mxu0 %v1438
          %1785 = vmatmul.bf16.gmra.mxu0 %v540
          %v1786 = vpop.f32.mrf.mxu0
          %v1787 = vadd.f32 %v1774, %v1786
          %v1788 = vpop.f32.mrf.mxu0
          %1789 = vdwg.mxu0
          %1790 = vmatpush.bf16.msra.mxu0 %v1498
          %1791 = vmatpush.bf16.msra.mxu0 %v1494
          %1792 = vmatpush.bf16.msra.mxu0 %v1490
          %1793 = vmatpush.bf16.msra.mxu0 %v1486
          %1794 = vmatpush.bf16.msra.mxu0 %v1482
          %1795 = vmatpush.bf16.msra.mxu0 %v1478
          %1796 = vmatpush.bf16.msra.mxu0 %v1474
          %1797 = vmatpush.bf16.msra.mxu0 %v1470
          %1798 = vmatmul.bf16.gmra.mxu0 %v541
          %v1799 = vpop.f32.mrf.mxu0
          %v1800 = vadd.f32 %v1787, %v1799
          %v1801 = vpop.f32.mrf.mxu0
          %1802 = vdwg.mxu0
          %1803 = vmatpush.bf16.msra.mxu0 %v1530
          %1804 = vmatpush.bf16.msra.mxu0 %v1526
          %1805 = vmatpush.bf16.msra.mxu0 %v1522
          %1806 = vmatpush.bf16.msra.mxu0 %v1518
          %1807 = vmatpush.bf16.msra.mxu0 %v1514
          %1808 = vmatpush.bf16.msra.mxu0 %v1510
          %1809 = vmatpush.bf16.msra.mxu0 %v1506
          %1810 = vmatpush.bf16.msra.mxu0 %v1502
          %1811 = vmatmul.bf16.gmra.mxu0 %v542
          %v1812 = vpop.f32.mrf.mxu0
          %v1813 = vadd.f32 %v1800, %v1812
          %v1814 = vpop.f32.mrf.mxu0
          %1815 = vdwg.mxu0
          %1816 = vmatpush.bf16.msra.mxu0 0
          %1817 = vmatpush.bf16.msra.mxu0 0
          %1818 = vmatpush.bf16.msra.mxu0 0
          %1819 = vmatpush.bf16.msra.mxu0 0
          %1820 = vmatpush.bf16.msra.mxu0 0
          %1821 = vmatpush.bf16.msra.mxu0 0
          %1822 = vmatpush.bf16.msra.mxu0 0
          %1823 = vmatpush.bf16.msra.mxu0 %v1534
          %1824 = vmatmul.bf16.gmra.mxu0 %v1736
          %v1825 = vpop.f32.mrf.mxu0
          %v1826 = vadd.f32 %v1813, %v1825
          %v1827 = vpop.f32.mrf.mxu0
          %1828 = vdwg.mxu0
          %1829 = vmatpush.bf16.msra.mxu0 %v1371
          %1830 = vmatpush.bf16.msra.mxu0 %v1367
          %1831 = vmatpush.bf16.msra.mxu0 %v1363
          %1832 = vmatpush.bf16.msra.mxu0 %v1359
          %1833 = vmatpush.bf16.msra.mxu0 %v1355
          %1834 = vmatpush.bf16.msra.mxu0 %v1351
          %1835 = vmatpush.bf16.msra.mxu0 %v1347
          %1836 = vmatpush.bf16.msra.mxu0 %v1343
          %1837 = vmatmul.bf16.gmra.mxu0 %v537
          %v1838 = vpop.f32.mrf.mxu0
          %v1839 = vadd.f32 %v751, %v1838
          %v1840 = vpop.f32.mrf.mxu0
          %1841 = vdwg.mxu0
          %1842 = vmatpush.bf16.msra.mxu0 %v1403
          %1843 = vmatpush.bf16.msra.mxu0 %v1399
          %1844 = vmatpush.bf16.msra.mxu0 %v1395
          %1845 = vmatpush.bf16.msra.mxu0 %v1391
          %1846 = vmatpush.bf16.msra.mxu0 %v1387
          %1847 = vmatpush.bf16.msra.mxu0 %v1383
          %1848 = vmatpush.bf16.msra.mxu0 %v1379
          %1849 = vmatpush.bf16.msra.mxu0 %v1375
          %1850 = vmatmul.bf16.gmra.mxu0 %v538
          %v1851 = vpop.f32.mrf.mxu0
          %v1852 = vadd.f32 %v1839, %v1851
          %v1853 = vpop.f32.mrf.mxu0
          %1854 = vdwg.mxu0
          %1855 = vmatpush.bf16.msra.mxu0 %v1435
          %1856 = vmatpush.bf16.msra.mxu0 %v1431
          %1857 = vmatpush.bf16.msra.mxu0 %v1427
          %1858 = vmatpush.bf16.msra.mxu0 %v1423
          %1859 = vmatpush.bf16.msra.mxu0 %v1419
          %1860 = vmatpush.bf16.msra.mxu0 %v1415
          %1861 = vmatpush.bf16.msra.mxu0 %v1411
          %1862 = vmatpush.bf16.msra.mxu0 %v1407
          %1863 = vmatmul.bf16.gmra.mxu0 %v539
          %v1864 = vpop.f32.mrf.mxu0
          %v1865 = vadd.f32 %v1852, %v1864
          %v1866 = vpop.f32.mrf.mxu0
          %1867 = vdwg.mxu0
          %1868 = vmatpush.bf16.msra.mxu0 %v1467
          %1869 = vmatpush.bf16.msra.mxu0 %v1463
          %1870 = vmatpush.bf16.msra.mxu0 %v1459
          %1871 = vmatpush.bf16.msra.mxu0 %v1455
          %1872 = vmatpush.bf16.msra.mxu0 %v1451
          %1873 = vmatpush.bf16.msra.mxu0 %v1447
          %1874 = vmatpush.bf16.msra.mxu0 %v1443
          %1875 = vmatpush.bf16.msra.mxu0 %v1439
          %1876 = vmatmul.bf16.gmra.mxu0 %v540
          %v1877 = vpop.f32.mrf.mxu0
          %v1878 = vadd.f32 %v1865, %v1877
          %v1879 = vpop.f32.mrf.mxu0
          %1880 = vdwg.mxu0
          %1881 = vmatpush.bf16.msra.mxu0 %v1499
          %1882 = vmatpush.bf16.msra.mxu0 %v1495
          %1883 = vmatpush.bf16.msra.mxu0 %v1491
          %1884 = vmatpush.bf16.msra.mxu0 %v1487
          %1885 = vmatpush.bf16.msra.mxu0 %v1483
          %1886 = vmatpush.bf16.msra.mxu0 %v1479
          %1887 = vmatpush.bf16.msra.mxu0 %v1475
          %1888 = vmatpush.bf16.msra.mxu0 %v1471
          %1889 = vmatmul.bf16.gmra.mxu0 %v541
          %v1890 = vpop.f32.mrf.mxu0
          %v1891 = vadd.f32 %v1878, %v1890
          %v1892 = vpop.f32.mrf.mxu0
          %1893 = vdwg.mxu0
          %1894 = vmatpush.bf16.msra.mxu0 %v1531
          %1895 = vmatpush.bf16.msra.mxu0 %v1527
          %1896 = vmatpush.bf16.msra.mxu0 %v1523
          %1897 = vmatpush.bf16.msra.mxu0 %v1519
          %1898 = vmatpush.bf16.msra.mxu0 %v1515
          %1899 = vmatpush.bf16.msra.mxu0 %v1511
          %1900 = vmatpush.bf16.msra.mxu0 %v1507
          %1901 = vmatpush.bf16.msra.mxu0 %v1503
          %1902 = vmatmul.bf16.gmra.mxu0 %v542
          %v1903 = vpop.f32.mrf.mxu0
          %v1904 = vadd.f32 %v1891, %v1903
          %v1905 = vpop.f32.mrf.mxu0
          %1906 = vdwg.mxu0
          %1907 = vmatpush.bf16.msra.mxu0 0
          %1908 = vmatpush.bf16.msra.mxu0 0
          %1909 = vmatpush.bf16.msra.mxu0 0
          %1910 = vmatpush.bf16.msra.mxu0 0
          %1911 = vmatpush.bf16.msra.mxu0 0
          %1912 = vmatpush.bf16.msra.mxu0 0
          %1913 = vmatpush.bf16.msra.mxu0 0
          %1914 = vmatpush.bf16.msra.mxu0 %v1535
          %1915 = vmatmul.bf16.gmra.mxu0 %v1736
          %v1916 = vpop.f32.mrf.mxu0
          %v1917 = vadd.f32 %v1904, %v1916
          %v1918 = vpop.f32.mrf.mxu0
          %1919 = vdwg.mxu0
          %1920 = vmatpush.bf16.msra.mxu0 %v1372
          %1921 = vmatpush.bf16.msra.mxu0 %v1368
          %1922 = vmatpush.bf16.msra.mxu0 %v1364
          %1923 = vmatpush.bf16.msra.mxu0 %v1360
          %1924 = vmatpush.bf16.msra.mxu0 %v1356
          %1925 = vmatpush.bf16.msra.mxu0 %v1352
          %1926 = vmatpush.bf16.msra.mxu0 %v1348
          %1927 = vmatpush.bf16.msra.mxu0 %v1344
          %1928 = vmatmul.bf16.gmra.mxu0 %v537
          %v1929 = vpop.f32.mrf.mxu0
          %v1930 = vadd.f32 %v752, %v1929
          %v1931 = vpop.f32.mrf.mxu0
          %1932 = vdwg.mxu0
          %1933 = vmatpush.bf16.msra.mxu0 %v1404
          %1934 = vmatpush.bf16.msra.mxu0 %v1400
          %1935 = vmatpush.bf16.msra.mxu0 %v1396
          %1936 = vmatpush.bf16.msra.mxu0 %v1392
          %1937 = vmatpush.bf16.msra.mxu0 %v1388
          %1938 = vmatpush.bf16.msra.mxu0 %v1384
          %1939 = vmatpush.bf16.msra.mxu0 %v1380
          %1940 = vmatpush.bf16.msra.mxu0 %v1376
          %1941 = vmatmul.bf16.gmra.mxu0 %v538
          %v1942 = vpop.f32.mrf.mxu0
          %v1943 = vadd.f32 %v1930, %v1942
          %v1944 = vpop.f32.mrf.mxu0
          %1945 = vdwg.mxu0
          %1946 = vmatpush.bf16.msra.mxu0 %v1436
          %1947 = vmatpush.bf16.msra.mxu0 %v1432
          %1948 = vmatpush.bf16.msra.mxu0 %v1428
          %1949 = vmatpush.bf16.msra.mxu0 %v1424
          %1950 = vmatpush.bf16.msra.mxu0 %v1420
          %1951 = vmatpush.bf16.msra.mxu0 %v1416
          %1952 = vmatpush.bf16.msra.mxu0 %v1412
          %1953 = vmatpush.bf16.msra.mxu0 %v1408
          %1954 = vmatmul.bf16.gmra.mxu0 %v539
          %v1955 = vpop.f32.mrf.mxu0
          %v1956 = vadd.f32 %v1943, %v1955
          %v1957 = vpop.f32.mrf.mxu0
          %1958 = vdwg.mxu0
          %1959 = vmatpush.bf16.msra.mxu0 %v1468
          %1960 = vmatpush.bf16.msra.mxu0 %v1464
          %1961 = vmatpush.bf16.msra.mxu0 %v1460
          %1962 = vmatpush.bf16.msra.mxu0 %v1456
          %1963 = vmatpush.bf16.msra.mxu0 %v1452
          %1964 = vmatpush.bf16.msra.mxu0 %v1448
          %1965 = vmatpush.bf16.msra.mxu0 %v1444
          %1966 = vmatpush.bf16.msra.mxu0 %v1440
          %1967 = vmatmul.bf16.gmra.mxu0 %v540
          %v1968 = vpop.f32.mrf.mxu0
          %v1969 = vadd.f32 %v1956, %v1968
          %v1970 = vpop.f32.mrf.mxu0
          %1971 = vdwg.mxu0
          %1972 = vmatpush.bf16.msra.mxu0 %v1500
          %1973 = vmatpush.bf16.msra.mxu0 %v1496
          %1974 = vmatpush.bf16.msra.mxu0 %v1492
          %1975 = vmatpush.bf16.msra.mxu0 %v1488
          %1976 = vmatpush.bf16.msra.mxu0 %v1484
          %1977 = vmatpush.bf16.msra.mxu0 %v1480
          %1978 = vmatpush.bf16.msra.mxu0 %v1476
          %1979 = vmatpush.bf16.msra.mxu0 %v1472
          %1980 = vmatmul.bf16.gmra.mxu0 %v541
          %v1981 = vpop.f32.mrf.mxu0
          %v1982 = vadd.f32 %v1969, %v1981
          %v1983 = vpop.f32.mrf.mxu0
          %1984 = vdwg.mxu0
          %1985 = vmatpush.bf16.msra.mxu0 %v1532
          %1986 = vmatpush.bf16.msra.mxu0 %v1528
          %1987 = vmatpush.bf16.msra.mxu0 %v1524
          %1988 = vmatpush.bf16.msra.mxu0 %v1520
          %1989 = vmatpush.bf16.msra.mxu0 %v1516
          %1990 = vmatpush.bf16.msra.mxu0 %v1512
          %1991 = vmatpush.bf16.msra.mxu0 %v1508
          %1992 = vmatpush.bf16.msra.mxu0 %v1504
          %1993 = vmatmul.bf16.gmra.mxu0 %v542
          %v1994 = vpop.f32.mrf.mxu0
          %v1995 = vadd.f32 %v1982, %v1994
          %v1996 = vpop.f32.mrf.mxu0
          %1997 = vdwg.mxu0
          %1998 = vmatpush.bf16.msra.mxu0 0
          %1999 = vmatpush.bf16.msra.mxu0 0
          %2000 = vmatpush.bf16.msra.mxu0 0
          %2001 = vmatpush.bf16.msra.mxu0 0
          %2002 = vmatpush.bf16.msra.mxu0 0
          %2003 = vmatpush.bf16.msra.mxu0 0
          %2004 = vmatpush.bf16.msra.mxu0 0
          %2005 = vmatpush.bf16.msra.mxu0 %v1536
          %2006 = vmatmul.bf16.gmra.mxu0 %v1736
          %v2007 = vpop.f32.mrf.mxu0
          %v2008 = vadd.f32 %v1995, %v2007
          %v2009 = vpop.f32.mrf.mxu0
          %2010 = vdwg.mxu0
          %2011 = vmatpush.bf16.msra.mxu0 %v1373
          %2012 = vmatpush.bf16.msra.mxu0 %v1369
          %2013 = vmatpush.bf16.msra.mxu0 %v1365
          %2014 = vmatpush.bf16.msra.mxu0 %v1361
          %2015 = vmatpush.bf16.msra.mxu0 %v1357
          %2016 = vmatpush.bf16.msra.mxu0 %v1353
          %2017 = vmatpush.bf16.msra.mxu0 %v1349
          %2018 = vmatpush.bf16.msra.mxu0 %v1345
          %2019 = vmatmul.bf16.gmra.mxu0 %v537
          %v2020 = vpop.f32.mrf.mxu0
          %v2021 = vadd.f32 %v753, %v2020
          %v2022 = vpop.f32.mrf.mxu0
          %2023 = vdwg.mxu0
          %2024 = vmatpush.bf16.msra.mxu0 %v1405
          %2025 = vmatpush.bf16.msra.mxu0 %v1401
          %2026 = vmatpush.bf16.msra.mxu0 %v1397
          %2027 = vmatpush.bf16.msra.mxu0 %v1393
          %2028 = vmatpush.bf16.msra.mxu0 %v1389
          %2029 = vmatpush.bf16.msra.mxu0 %v1385
          %2030 = vmatpush.bf16.msra.mxu0 %v1381
          %2031 = vmatpush.bf16.msra.mxu0 %v1377
          %2032 = vmatmul.bf16.gmra.mxu0 %v538
          %v2033 = vpop.f32.mrf.mxu0
          %v2034 = vadd.f32 %v2021, %v2033
          %v2035 = vpop.f32.mrf.mxu0
          %2036 = vdwg.mxu0
          %2037 = vmatpush.bf16.msra.mxu0 %v1437
          %2038 = vmatpush.bf16.msra.mxu0 %v1433
          %2039 = vmatpush.bf16.msra.mxu0 %v1429
          %2040 = vmatpush.bf16.msra.mxu0 %v1425
          %2041 = vmatpush.bf16.msra.mxu0 %v1421
          %2042 = vmatpush.bf16.msra.mxu0 %v1417
          %2043 = vmatpush.bf16.msra.mxu0 %v1413
          %2044 = vmatpush.bf16.msra.mxu0 %v1409
          %2045 = vmatmul.bf16.gmra.mxu0 %v539
          %v2046 = vpop.f32.mrf.mxu0
          %v2047 = vadd.f32 %v2034, %v2046
          %v2048 = vpop.f32.mrf.mxu0
          %2049 = vdwg.mxu0
          %2050 = vmatpush.bf16.msra.mxu0 %v1469
          %2051 = vmatpush.bf16.msra.mxu0 %v1465
          %2052 = vmatpush.bf16.msra.mxu0 %v1461
          %2053 = vmatpush.bf16.msra.mxu0 %v1457
          %2054 = vmatpush.bf16.msra.mxu0 %v1453
          %2055 = vmatpush.bf16.msra.mxu0 %v1449
          %2056 = vmatpush.bf16.msra.mxu0 %v1445
          %2057 = vmatpush.bf16.msra.mxu0 %v1441
          %2058 = vmatmul.bf16.gmra.mxu0 %v540
          %v2059 = vpop.f32.mrf.mxu0
          %v2060 = vadd.f32 %v2047, %v2059
          %v2061 = vpop.f32.mrf.mxu0
          %2062 = vdwg.mxu0
          %2063 = vmatpush.bf16.msra.mxu0 %v1501
          %2064 = vmatpush.bf16.msra.mxu0 %v1497
          %2065 = vmatpush.bf16.msra.mxu0 %v1493
          %2066 = vmatpush.bf16.msra.mxu0 %v1489
          %2067 = vmatpush.bf16.msra.mxu0 %v1485
          %2068 = vmatpush.bf16.msra.mxu0 %v1481
          %2069 = vmatpush.bf16.msra.mxu0 %v1477
          %2070 = vmatpush.bf16.msra.mxu0 %v1473
          %2071 = vmatmul.bf16.gmra.mxu0 %v541
          %v2072 = vpop.f32.mrf.mxu0
          %v2073 = vadd.f32 %v2060, %v2072
          %v2074 = vpop.f32.mrf.mxu0
          %2075 = vdwg.mxu0
          %2076 = vmatpush.bf16.msra.mxu0 %v1533
          %2077 = vmatpush.bf16.msra.mxu0 %v1529
          %2078 = vmatpush.bf16.msra.mxu0 %v1525
          %2079 = vmatpush.bf16.msra.mxu0 %v1521
          %2080 = vmatpush.bf16.msra.mxu0 %v1517
          %2081 = vmatpush.bf16.msra.mxu0 %v1513
          %2082 = vmatpush.bf16.msra.mxu0 %v1509
          %2083 = vmatpush.bf16.msra.mxu0 %v1505
          %2084 = vmatmul.bf16.gmra.mxu0 %v542
          %v2085 = vpop.f32.mrf.mxu0
          %v2086 = vadd.f32 %v2073, %v2085
          %v2087 = vpop.f32.mrf.mxu0
          %2088 = vdwg.mxu0
          %2089 = vmatpush.bf16.msra.mxu0 0
          %2090 = vmatpush.bf16.msra.mxu0 0
          %2091 = vmatpush.bf16.msra.mxu0 0
          %2092 = vmatpush.bf16.msra.mxu0 0
          %2093 = vmatpush.bf16.msra.mxu0 0
          %2094 = vmatpush.bf16.msra.mxu0 0
          %2095 = vmatpush.bf16.msra.mxu0 0
          %2096 = vmatpush.bf16.msra.mxu0 %v1537
          %2097 = vmatmul.bf16.gmra.mxu0 %v1736
          %v2098 = vpop.f32.mrf.mxu0
          %v2099 = vadd.f32 %v2086, %v2098
          %v2100 = vpop.f32.mrf.mxu0
          %2101 = vdwg.mxu0
          %v2102 = vmax.f32 %v1826, 0.0
          %v2103 = vmax.f32 %v1917, 0.0
          %v2104 = vmax.f32 %v2008, 0.0
          %v2105 = vmax.f32 %v2099, 0.0
          %v2106 = vpack.c.bf16 %v2102, %v2102
          %v2107 = vpack.c.bf16 %v2103, %v2103
          %v2108 = vpack.c.bf16 %v2104, %v2104
          %v2109 = vpack.c.bf16 %v2105, %v2105
          %v2110 = vld [vmem:[#allocation5] sm:$0xff]
          %v2111 = vld [vmem:[#allocation5 + $0x8] sm:$0xff]
          %v2112 = vld [vmem:[#allocation5 + $0x10] sm:$0xff]
          %v2113 = vld [vmem:[#allocation5 + $0x18] sm:$0xff]
          %v2114 = vld [vmem:[#allocation5 + $0x20] sm:$0xff]
          %v2115 = vld [vmem:[#allocation5 + $0x28] sm:$0xff]
          %v2116 = vld [vmem:[#allocation5 + $0x30] sm:$0xff]
          %v2117 = vld [vmem:[#allocation5 + $0x38] sm:$0xff]
          %v2118 = vld [vmem:[#allocation5 + $0x40] sm:$0xff]
          %v2119 = vld [vmem:[#allocation5 + $0x48] sm:$0xff]
          %v2120 = vld [vmem:[#allocation5 + $0x50] sm:$0xff]
          %v2121 = vld [vmem:[#allocation5 + $0x58] sm:$0xff]
          %v2122 = vld [vmem:[#allocation5 + $0x60] sm:$0xff]
          %v2123 = vld [vmem:[#allocation5 + $0x68] sm:$0xff]
          %v2124 = vld [vmem:[#allocation5 + $0x70] sm:$0xff]
          %v2125 = vld [vmem:[#allocation5 + $0x78] sm:$0xff]
          %v2126 = vld [vmem:[#allocation5 + $0x80] sm:$0xff]
          %v2127 = vld [vmem:[#allocation5 + $0x88] sm:$0xff]
          %v2128 = vld [vmem:[#allocation5 + $0x90] sm:$0xff]
          %v2129 = vld [vmem:[#allocation5 + $0x98] sm:$0xff]
          %v2130 = vld [vmem:[#allocation5 + $0xa0] sm:$0xff]
          %v2131 = vld [vmem:[#allocation5 + $0xa8] sm:$0xff]
          %v2132 = vld [vmem:[#allocation5 + $0xb0] sm:$0xff]
          %v2133 = vld [vmem:[#allocation5 + $0xb8] sm:$0xff]
          %v2134 = vld [vmem:[#allocation5 + $0xc0] sm:$0xff]
          %v2135 = vld [vmem:[#allocation5 + $0xc8] sm:$0xff]
          %v2136 = vld [vmem:[#allocation5 + $0xd0] sm:$0xff]
          %v2137 = vld [vmem:[#allocation5 + $0xd8] sm:$0xff]
          %v2138 = vld [vmem:[#allocation5 + $0xe0] sm:$0xff]
          %v2139 = vld [vmem:[#allocation5 + $0xe8] sm:$0xff]
          %v2140 = vld [vmem:[#allocation5 + $0xf0] sm:$0xff]
          %v2141 = vld [vmem:[#allocation5 + $0xf8] sm:$0xff]
          %v2142 = vld [vmem:[#allocation5 + $0x100] sm:$0xff]
          %v2143 = vld [vmem:[#allocation5 + $0x108] sm:$0xff]
          %v2144 = vld [vmem:[#allocation5 + $0x110] sm:$0xff]
          %v2145 = vld [vmem:[#allocation5 + $0x118] sm:$0xff]
          %v2146 = vld [vmem:[#allocation5 + $0x120] sm:$0xff]
          %v2147 = vld [vmem:[#allocation5 + $0x128] sm:$0xff]
          %v2148 = vld [vmem:[#allocation5 + $0x130] sm:$0xff]
          %v2149 = vld [vmem:[#allocation5 + $0x138] sm:$0xff]
          %v2150 = vld [vmem:[#allocation5 + $0x140] sm:$0xff]
          %v2151 = vld [vmem:[#allocation5 + $0x148] sm:$0xff]
          %v2152 = vld [vmem:[#allocation5 + $0x150] sm:$0xff]
          %v2153 = vld [vmem:[#allocation5 + $0x158] sm:$0xff]
          %v2154 = vld [vmem:[#allocation5 + $0x160] sm:$0xff]
          %v2155 = vld [vmem:[#allocation5 + $0x168] sm:$0xff]
          %v2156 = vld [vmem:[#allocation5 + $0x170] sm:$0xff]
          %v2157 = vld [vmem:[#allocation5 + $0x178] sm:$0xff]
          %v2158 = vld [vmem:[#allocation5 + $0x180] sm:$0xff]
          %v2159 = vld [vmem:[#allocation5 + $0x188] sm:$0xff]
          %v2160 = vld [vmem:[#allocation5 + $0x190] sm:$0xff]
          %v2161 = vld [vmem:[#allocation5 + $0x198] sm:$0xff]
          %v2162 = vld [vmem:[#allocation5 + $0x1a0] sm:$0xff]
          %v2163 = vld [vmem:[#allocation5 + $0x1a8] sm:$0xff]
          %v2164 = vld [vmem:[#allocation5 + $0x1b0] sm:$0xff]
          %v2165 = vld [vmem:[#allocation5 + $0x1b8] sm:$0xff]
          %v2166 = vld [vmem:[#allocation5 + $0x1c0] sm:$0xff]
          %v2167 = vld [vmem:[#allocation5 + $0x1c8] sm:$0xff]
          %v2168 = vld [vmem:[#allocation5 + $0x1d0] sm:$0xff]
          %v2169 = vld [vmem:[#allocation5 + $0x1d8] sm:$0xff]
          %v2170 = vld [vmem:[#allocation5 + $0x1e0] sm:$0xff]
          %v2171 = vld [vmem:[#allocation5 + $0x1e8] sm:$0xff]
          %v2172 = vld [vmem:[#allocation5 + $0x1f0] sm:$0xff]
          %v2173 = vld [vmem:[#allocation5 + $0x1f8] sm:$0xff]
          %v2174 = vld [vmem:[#allocation5 + $0x200] sm:$0xff]
          %v2175 = vld [vmem:[#allocation5 + $0x208] sm:$0xff]
          %v2176 = vld [vmem:[#allocation5 + $0x210] sm:$0xff]
          %v2177 = vld [vmem:[#allocation5 + $0x218] sm:$0xff]
          %v2178 = vld [vmem:[#allocation5 + $0x220] sm:$0xff]
          %v2179 = vld [vmem:[#allocation5 + $0x228] sm:$0xff]
          %v2180 = vld [vmem:[#allocation5 + $0x230] sm:$0xff]
          %v2181 = vld [vmem:[#allocation5 + $0x238] sm:$0xff]
          %v2182 = vld [vmem:[#allocation5 + $0x240] sm:$0xff]
          %v2183 = vld [vmem:[#allocation5 + $0x248] sm:$0xff]
          %v2184 = vld [vmem:[#allocation5 + $0x250] sm:$0xff]
          %v2185 = vld [vmem:[#allocation5 + $0x258] sm:$0xff]
          %v2186 = vld [vmem:[#allocation5 + $0x260] sm:$0xff]
          %v2187 = vld [vmem:[#allocation5 + $0x268] sm:$0xff]
          %v2188 = vld [vmem:[#allocation5 + $0x270] sm:$0xff]
          %v2189 = vld [vmem:[#allocation5 + $0x278] sm:$0xff]
          %v2190 = vld [vmem:[#allocation5 + $0x280] sm:$0xff]
          %v2191 = vld [vmem:[#allocation5 + $0x288] sm:$0xff]
          %v2192 = vld [vmem:[#allocation5 + $0x290] sm:$0xff]
          %v2193 = vld [vmem:[#allocation5 + $0x298] sm:$0xff]
          %v2194 = vld [vmem:[#allocation5 + $0x2a0] sm:$0xff]
          %v2195 = vld [vmem:[#allocation5 + $0x2a8] sm:$0xff]
          %v2196 = vld [vmem:[#allocation5 + $0x2b0] sm:$0xff]
          %v2197 = vld [vmem:[#allocation5 + $0x2b8] sm:$0xff]
          %v2198 = vld [vmem:[#allocation5 + $0x2c0] sm:$0xff]
          %v2199 = vld [vmem:[#allocation5 + $0x2c8] sm:$0xff]
          %v2200 = vld [vmem:[#allocation5 + $0x2d0] sm:$0xff]
          %v2201 = vld [vmem:[#allocation5 + $0x2d8] sm:$0xff]
          %v2202 = vld [vmem:[#allocation5 + $0x2e0] sm:$0xff]
          %v2203 = vld [vmem:[#allocation5 + $0x2e8] sm:$0xff]
          %v2204 = vld [vmem:[#allocation5 + $0x2f0] sm:$0xff]
          %v2205 = vld [vmem:[#allocation5 + $0x2f8] sm:$0xff]
          %v2206 = vld [vmem:[#allocation5 + $0x300] sm:$0xff]
          %v2207 = vld [vmem:[#allocation5 + $0x308] sm:$0xff]
          %v2208 = vld [vmem:[#allocation5 + $0x310] sm:$0xff]
          %v2209 = vld [vmem:[#allocation5 + $0x318] sm:$0xff]
          %v2210 = vld [vmem:[#allocation5 + $0x320] sm:$0xff]
          %v2211 = vld [vmem:[#allocation5 + $0x328] sm:$0xff]
          %v2212 = vld [vmem:[#allocation5 + $0x330] sm:$0xff]
          %v2213 = vld [vmem:[#allocation5 + $0x338] sm:$0xff]
          %v2214 = vld [vmem:[#allocation5 + $0x340] sm:$0xff]
          %v2215 = vld [vmem:[#allocation5 + $0x348] sm:$0xff]
          %v2216 = vld [vmem:[#allocation5 + $0x350] sm:$0xff]
          %v2217 = vld [vmem:[#allocation5 + $0x358] sm:$0xff]
          %v2218 = vld [vmem:[#allocation5 + $0x360] sm:$0xff]
          %v2219 = vld [vmem:[#allocation5 + $0x368] sm:$0xff]
          %v2220 = vld [vmem:[#allocation5 + $0x370] sm:$0xff]
          %v2221 = vld [vmem:[#allocation5 + $0x378] sm:$0xff]
          %v2222 = vld [vmem:[#allocation5 + $0x380] sm:$0xff]
          %v2223 = vld [vmem:[#allocation5 + $0x388] sm:$0xff]
          %v2224 = vld [vmem:[#allocation5 + $0x390] sm:$0xff]
          %v2225 = vld [vmem:[#allocation5 + $0x398] sm:$0xff]
          %v2226 = vld [vmem:[#allocation5 + $0x3a0] sm:$0xff]
          %v2227 = vld [vmem:[#allocation5 + $0x3a8] sm:$0xff]
          %v2228 = vld [vmem:[#allocation5 + $0x3b0] sm:$0xff]
          %v2229 = vld [vmem:[#allocation5 + $0x3b8] sm:$0xff]
          %v2230 = vld [vmem:[#allocation5 + $0x3c0] sm:$0xff]
          %v2231 = vld [vmem:[#allocation5 + $0x3c8] sm:$0xff]
          %v2232 = vld [vmem:[#allocation5 + $0x3d0] sm:$0xff]
          %v2233 = vld [vmem:[#allocation5 + $0x3d8] sm:$0xff]
          %v2234 = vld [vmem:[#allocation5 + $0x3e0] sm:$0xff]
          %v2235 = vld [vmem:[#allocation5 + $0x3e8] sm:$0xff]
          %v2236 = vld [vmem:[#allocation5 + $0x3f0] sm:$0xff]
          %v2237 = vld [vmem:[#allocation5 + $0x3f8] sm:$0xff]
          %v2238 = vperm.slane %v528, 1
          %v2239 = vperm.slane %v528, 5
          %v2240 = vperm.slane %v529, 1
          %v2241 = vperm.slane %v529, 5
          %v2246 = vperm.slane %v2238, 1
          %v2247 = vperm.slane %v2239, 1
          %v2248 = vperm.slane %v2240, 1
          %v2249 = vperm.slane %v2241, 1
          %v2378 = vunpack.c.l.b16 %v2110
          %v2379 = vunpack.c.h.b16 %v2110
          %v2380 = vunpack.c.l.b16 %v2111
          %v2381 = vunpack.c.h.b16 %v2111
          %v2382 = vunpack.c.l.b16 %v2112
          %v2383 = vunpack.c.h.b16 %v2112
          %v2384 = vunpack.c.l.b16 %v2113
          %v2385 = vunpack.c.h.b16 %v2113
          %v2386 = vunpack.c.l.b16 %v2114
          %v2387 = vunpack.c.h.b16 %v2114
          %v2388 = vunpack.c.l.b16 %v2115
          %v2389 = vunpack.c.h.b16 %v2115
          %v2390 = vunpack.c.l.b16 %v2116
          %v2391 = vunpack.c.h.b16 %v2116
          %v2392 = vunpack.c.l.b16 %v2117
          %v2393 = vunpack.c.h.b16 %v2117
          %v2394 = vunpack.c.l.b16 %v2118
          %v2395 = vunpack.c.h.b16 %v2118
          %v2396 = vunpack.c.l.b16 %v2119
          %v2397 = vunpack.c.h.b16 %v2119
          %v2398 = vunpack.c.l.b16 %v2120
          %v2399 = vunpack.c.h.b16 %v2120
          %v2400 = vunpack.c.l.b16 %v2121
          %v2401 = vunpack.c.h.b16 %v2121
          %v2402 = vunpack.c.l.b16 %v2122
          %v2403 = vunpack.c.h.b16 %v2122
          %v2404 = vunpack.c.l.b16 %v2123
          %v2405 = vunpack.c.h.b16 %v2123
          %v2406 = vunpack.c.l.b16 %v2124
          %v2407 = vunpack.c.h.b16 %v2124
          %v2408 = vunpack.c.l.b16 %v2125
          %v2409 = vunpack.c.h.b16 %v2125
          %v2410 = vunpack.c.l.b16 %v2126
          %v2411 = vunpack.c.h.b16 %v2126
          %v2412 = vunpack.c.l.b16 %v2127
          %v2413 = vunpack.c.h.b16 %v2127
          %v2414 = vunpack.c.l.b16 %v2128
          %v2415 = vunpack.c.h.b16 %v2128
          %v2416 = vunpack.c.l.b16 %v2129
          %v2417 = vunpack.c.h.b16 %v2129
          %v2418 = vunpack.c.l.b16 %v2130
          %v2419 = vunpack.c.h.b16 %v2130
          %v2420 = vunpack.c.l.b16 %v2131
          %v2421 = vunpack.c.h.b16 %v2131
          %v2422 = vunpack.c.l.b16 %v2132
          %v2423 = vunpack.c.h.b16 %v2132
          %v2424 = vunpack.c.l.b16 %v2133
          %v2425 = vunpack.c.h.b16 %v2133
          %v2426 = vunpack.c.l.b16 %v2134
          %v2427 = vunpack.c.h.b16 %v2134
          %v2428 = vunpack.c.l.b16 %v2135
          %v2429 = vunpack.c.h.b16 %v2135
          %v2430 = vunpack.c.l.b16 %v2136
          %v2431 = vunpack.c.h.b16 %v2136
          %v2432 = vunpack.c.l.b16 %v2137
          %v2433 = vunpack.c.h.b16 %v2137
          %v2434 = vunpack.c.l.b16 %v2138
          %v2435 = vunpack.c.h.b16 %v2138
          %v2436 = vunpack.c.l.b16 %v2139
          %v2437 = vunpack.c.h.b16 %v2139
          %v2438 = vunpack.c.l.b16 %v2140
          %v2439 = vunpack.c.h.b16 %v2140
          %v2440 = vunpack.c.l.b16 %v2141
          %v2441 = vunpack.c.h.b16 %v2141
          %v2442 = vunpack.c.l.b16 %v2142
          %v2443 = vunpack.c.h.b16 %v2142
          %v2444 = vunpack.c.l.b16 %v2143
          %v2445 = vunpack.c.h.b16 %v2143
          %v2446 = vunpack.c.l.b16 %v2144
          %v2447 = vunpack.c.h.b16 %v2144
          %v2448 = vunpack.c.l.b16 %v2145
          %v2449 = vunpack.c.h.b16 %v2145
          %v2450 = vunpack.c.l.b16 %v2146
          %v2451 = vunpack.c.h.b16 %v2146
          %v2452 = vunpack.c.l.b16 %v2147
          %v2453 = vunpack.c.h.b16 %v2147
          %v2454 = vunpack.c.l.b16 %v2148
          %v2455 = vunpack.c.h.b16 %v2148
          %v2456 = vunpack.c.l.b16 %v2149
          %v2457 = vunpack.c.h.b16 %v2149
          %v2458 = vunpack.c.l.b16 %v2150
          %v2459 = vunpack.c.h.b16 %v2150
          %v2460 = vunpack.c.l.b16 %v2151
          %v2461 = vunpack.c.h.b16 %v2151
          %v2462 = vunpack.c.l.b16 %v2152
          %v2463 = vunpack.c.h.b16 %v2152
          %v2464 = vunpack.c.l.b16 %v2153
          %v2465 = vunpack.c.h.b16 %v2153
          %v2466 = vunpack.c.l.b16 %v2154
          %v2467 = vunpack.c.h.b16 %v2154
          %v2468 = vunpack.c.l.b16 %v2155
          %v2469 = vunpack.c.h.b16 %v2155
          %v2470 = vunpack.c.l.b16 %v2156
          %v2471 = vunpack.c.h.b16 %v2156
          %v2472 = vunpack.c.l.b16 %v2157
          %v2473 = vunpack.c.h.b16 %v2157
          %v2474 = vunpack.c.l.b16 %v2158
          %v2475 = vunpack.c.h.b16 %v2158
          %v2476 = vunpack.c.l.b16 %v2159
          %v2477 = vunpack.c.h.b16 %v2159
          %v2478 = vunpack.c.l.b16 %v2160
          %v2479 = vunpack.c.h.b16 %v2160
          %v2480 = vunpack.c.l.b16 %v2161
          %v2481 = vunpack.c.h.b16 %v2161
          %v2482 = vunpack.c.l.b16 %v2162
          %v2483 = vunpack.c.h.b16 %v2162
          %v2484 = vunpack.c.l.b16 %v2163
          %v2485 = vunpack.c.h.b16 %v2163
          %v2486 = vunpack.c.l.b16 %v2164
          %v2487 = vunpack.c.h.b16 %v2164
          %v2488 = vunpack.c.l.b16 %v2165
          %v2489 = vunpack.c.h.b16 %v2165
          %v2490 = vunpack.c.l.b16 %v2166
          %v2491 = vunpack.c.h.b16 %v2166
          %v2492 = vunpack.c.l.b16 %v2167
          %v2493 = vunpack.c.h.b16 %v2167
          %v2494 = vunpack.c.l.b16 %v2168
          %v2495 = vunpack.c.h.b16 %v2168
          %v2496 = vunpack.c.l.b16 %v2169
          %v2497 = vunpack.c.h.b16 %v2169
          %v2498 = vunpack.c.l.b16 %v2170
          %v2499 = vunpack.c.h.b16 %v2170
          %v2500 = vunpack.c.l.b16 %v2171
          %v2501 = vunpack.c.h.b16 %v2171
          %v2502 = vunpack.c.l.b16 %v2172
          %v2503 = vunpack.c.h.b16 %v2172
          %v2504 = vunpack.c.l.b16 %v2173
          %v2505 = vunpack.c.h.b16 %v2173
          %v2506 = vunpack.c.l.b16 %v2174
          %v2507 = vunpack.c.h.b16 %v2174
          %v2508 = vunpack.c.l.b16 %v2175
          %v2509 = vunpack.c.h.b16 %v2175
          %v2510 = vunpack.c.l.b16 %v2176
          %v2511 = vunpack.c.h.b16 %v2176
          %v2512 = vunpack.c.l.b16 %v2177
          %v2513 = vunpack.c.h.b16 %v2177
          %v2514 = vunpack.c.l.b16 %v2178
          %v2515 = vunpack.c.h.b16 %v2178
          %v2516 = vunpack.c.l.b16 %v2179
          %v2517 = vunpack.c.h.b16 %v2179
          %v2518 = vunpack.c.l.b16 %v2180
          %v2519 = vunpack.c.h.b16 %v2180
          %v2520 = vunpack.c.l.b16 %v2181
          %v2521 = vunpack.c.h.b16 %v2181
          %v2522 = vunpack.c.l.b16 %v2182
          %v2523 = vunpack.c.h.b16 %v2182
          %v2524 = vunpack.c.l.b16 %v2183
          %v2525 = vunpack.c.h.b16 %v2183
          %v2526 = vunpack.c.l.b16 %v2184
          %v2527 = vunpack.c.h.b16 %v2184
          %v2528 = vunpack.c.l.b16 %v2185
          %v2529 = vunpack.c.h.b16 %v2185
          %v2530 = vunpack.c.l.b16 %v2186
          %v2531 = vunpack.c.h.b16 %v2186
          %v2532 = vunpack.c.l.b16 %v2187
          %v2533 = vunpack.c.h.b16 %v2187
          %v2534 = vunpack.c.l.b16 %v2188
          %v2535 = vunpack.c.h.b16 %v2188
          %v2536 = vunpack.c.l.b16 %v2189
          %v2537 = vunpack.c.h.b16 %v2189
          %v2538 = vunpack.c.l.b16 %v2190
          %v2539 = vunpack.c.h.b16 %v2190
          %v2540 = vunpack.c.l.b16 %v2191
          %v2541 = vunpack.c.h.b16 %v2191
          %v2542 = vunpack.c.l.b16 %v2192
          %v2543 = vunpack.c.h.b16 %v2192
          %v2544 = vunpack.c.l.b16 %v2193
          %v2545 = vunpack.c.h.b16 %v2193
          %v2546 = vunpack.c.l.b16 %v2194
          %v2547 = vunpack.c.h.b16 %v2194
          %v2548 = vunpack.c.l.b16 %v2195
          %v2549 = vunpack.c.h.b16 %v2195
          %v2550 = vunpack.c.l.b16 %v2196
          %v2551 = vunpack.c.h.b16 %v2196
          %v2552 = vunpack.c.l.b16 %v2197
          %v2553 = vunpack.c.h.b16 %v2197
          %v2554 = vunpack.c.l.b16 %v2198
          %v2555 = vunpack.c.h.b16 %v2198
          %v2556 = vunpack.c.l.b16 %v2199
          %v2557 = vunpack.c.h.b16 %v2199
          %v2558 = vunpack.c.l.b16 %v2200
          %v2559 = vunpack.c.h.b16 %v2200
          %v2560 = vunpack.c.l.b16 %v2201
          %v2561 = vunpack.c.h.b16 %v2201
          %v2562 = vunpack.c.l.b16 %v2202
          %v2563 = vunpack.c.h.b16 %v2202
          %v2564 = vunpack.c.l.b16 %v2203
          %v2565 = vunpack.c.h.b16 %v2203
          %v2566 = vunpack.c.l.b16 %v2204
          %v2567 = vunpack.c.h.b16 %v2204
          %v2568 = vunpack.c.l.b16 %v2205
          %v2569 = vunpack.c.h.b16 %v2205
          %v2570 = vunpack.c.l.b16 %v2206
          %v2571 = vunpack.c.h.b16 %v2206
          %v2572 = vunpack.c.l.b16 %v2207
          %v2573 = vunpack.c.h.b16 %v2207
          %v2574 = vunpack.c.l.b16 %v2208
          %v2575 = vunpack.c.h.b16 %v2208
          %v2576 = vunpack.c.l.b16 %v2209
          %v2577 = vunpack.c.h.b16 %v2209
          %v2578 = vunpack.c.l.b16 %v2210
          %v2579 = vunpack.c.h.b16 %v2210
          %v2580 = vunpack.c.l.b16 %v2211
          %v2581 = vunpack.c.h.b16 %v2211
          %v2582 = vunpack.c.l.b16 %v2212
          %v2583 = vunpack.c.h.b16 %v2212
          %v2584 = vunpack.c.l.b16 %v2213
          %v2585 = vunpack.c.h.b16 %v2213
          %v2586 = vunpack.c.l.b16 %v2214
          %v2587 = vunpack.c.h.b16 %v2214
          %v2588 = vunpack.c.l.b16 %v2215
          %v2589 = vunpack.c.h.b16 %v2215
          %v2590 = vunpack.c.l.b16 %v2216
          %v2591 = vunpack.c.h.b16 %v2216
          %v2592 = vunpack.c.l.b16 %v2217
          %v2593 = vunpack.c.h.b16 %v2217
          %v2594 = vunpack.c.l.b16 %v2218
          %v2595 = vunpack.c.h.b16 %v2218
          %v2596 = vunpack.c.l.b16 %v2219
          %v2597 = vunpack.c.h.b16 %v2219
          %v2598 = vunpack.c.l.b16 %v2220
          %v2599 = vunpack.c.h.b16 %v2220
          %v2600 = vunpack.c.l.b16 %v2221
          %v2601 = vunpack.c.h.b16 %v2221
          %v2602 = vunpack.c.l.b16 %v2222
          %v2603 = vunpack.c.h.b16 %v2222
          %v2604 = vunpack.c.l.b16 %v2223
          %v2605 = vunpack.c.h.b16 %v2223
          %v2606 = vunpack.c.l.b16 %v2224
          %v2607 = vunpack.c.h.b16 %v2224
          %v2608 = vunpack.c.l.b16 %v2225
          %v2609 = vunpack.c.h.b16 %v2225
          %v2610 = vunpack.c.l.b16 %v2226
          %v2611 = vunpack.c.h.b16 %v2226
          %v2612 = vunpack.c.l.b16 %v2227
          %v2613 = vunpack.c.h.b16 %v2227
          %v2614 = vunpack.c.l.b16 %v2228
          %v2615 = vunpack.c.h.b16 %v2228
          %v2616 = vunpack.c.l.b16 %v2229
          %v2617 = vunpack.c.h.b16 %v2229
          %v2618 = vunpack.c.l.b16 %v2230
          %v2619 = vunpack.c.h.b16 %v2230
          %v2620 = vunpack.c.l.b16 %v2231
          %v2621 = vunpack.c.h.b16 %v2231
          %v2622 = vunpack.c.l.b16 %v2232
          %v2623 = vunpack.c.h.b16 %v2232
          %v2624 = vunpack.c.l.b16 %v2233
          %v2625 = vunpack.c.h.b16 %v2233
          %v2626 = vunpack.c.l.b16 %v2234
          %v2627 = vunpack.c.h.b16 %v2234
          %v2628 = vunpack.c.l.b16 %v2235
          %v2629 = vunpack.c.h.b16 %v2235
          %v2630 = vunpack.c.l.b16 %v2236
          %v2631 = vunpack.c.h.b16 %v2236
          %v2632 = vunpack.c.l.b16 %v2237
          %v2633 = vunpack.c.h.b16 %v2237
          %v2634 = vpack.c.b16 %v2382, %v2378
          %v2635 = vpack.c.b16 %v2383, %v2379
          %v2636 = vpack.c.b16 %v2384, %v2380
          %v2637 = vpack.c.b16 %v2385, %v2381
          %v2638 = vpack.c.b16 %v2390, %v2386
          %v2639 = vpack.c.b16 %v2391, %v2387
          %v2640 = vpack.c.b16 %v2392, %v2388
          %v2641 = vpack.c.b16 %v2393, %v2389
          %v2642 = vpack.c.b16 %v2398, %v2394
          %v2643 = vpack.c.b16 %v2399, %v2395
          %v2644 = vpack.c.b16 %v2400, %v2396
          %v2645 = vpack.c.b16 %v2401, %v2397
          %v2646 = vpack.c.b16 %v2406, %v2402
          %v2647 = vpack.c.b16 %v2407, %v2403
          %v2648 = vpack.c.b16 %v2408, %v2404
          %v2649 = vpack.c.b16 %v2409, %v2405
          %v2650 = vpack.c.b16 %v2414, %v2410
          %v2651 = vpack.c.b16 %v2415, %v2411
          %v2652 = vpack.c.b16 %v2416, %v2412
          %v2653 = vpack.c.b16 %v2417, %v2413
          %v2654 = vpack.c.b16 %v2422, %v2418
          %v2655 = vpack.c.b16 %v2423, %v2419
          %v2656 = vpack.c.b16 %v2424, %v2420
          %v2657 = vpack.c.b16 %v2425, %v2421
          %v2658 = vpack.c.b16 %v2430, %v2426
          %v2659 = vpack.c.b16 %v2431, %v2427
          %v2660 = vpack.c.b16 %v2432, %v2428
          %v2661 = vpack.c.b16 %v2433, %v2429
          %v2662 = vpack.c.b16 %v2438, %v2434
          %v2663 = vpack.c.b16 %v2439, %v2435
          %v2664 = vpack.c.b16 %v2440, %v2436
          %v2665 = vpack.c.b16 %v2441, %v2437
          %v2666 = vpack.c.b16 %v2446, %v2442
          %v2667 = vpack.c.b16 %v2447, %v2443
          %v2668 = vpack.c.b16 %v2448, %v2444
          %v2669 = vpack.c.b16 %v2449, %v2445
          %v2670 = vpack.c.b16 %v2454, %v2450
          %v2671 = vpack.c.b16 %v2455, %v2451
          %v2672 = vpack.c.b16 %v2456, %v2452
          %v2673 = vpack.c.b16 %v2457, %v2453
          %v2674 = vpack.c.b16 %v2462, %v2458
          %v2675 = vpack.c.b16 %v2463, %v2459
          %v2676 = vpack.c.b16 %v2464, %v2460
          %v2677 = vpack.c.b16 %v2465, %v2461
          %v2678 = vpack.c.b16 %v2470, %v2466
          %v2679 = vpack.c.b16 %v2471, %v2467
          %v2680 = vpack.c.b16 %v2472, %v2468
          %v2681 = vpack.c.b16 %v2473, %v2469
          %v2682 = vpack.c.b16 %v2478, %v2474
          %v2683 = vpack.c.b16 %v2479, %v2475
          %v2684 = vpack.c.b16 %v2480, %v2476
          %v2685 = vpack.c.b16 %v2481, %v2477
          %v2686 = vpack.c.b16 %v2486, %v2482
          %v2687 = vpack.c.b16 %v2487, %v2483
          %v2688 = vpack.c.b16 %v2488, %v2484
          %v2689 = vpack.c.b16 %v2489, %v2485
          %v2690 = vpack.c.b16 %v2494, %v2490
          %v2691 = vpack.c.b16 %v2495, %v2491
          %v2692 = vpack.c.b16 %v2496, %v2492
          %v2693 = vpack.c.b16 %v2497, %v2493
          %v2694 = vpack.c.b16 %v2502, %v2498
          %v2695 = vpack.c.b16 %v2503, %v2499
          %v2696 = vpack.c.b16 %v2504, %v2500
          %v2697 = vpack.c.b16 %v2505, %v2501
          %v2698 = vpack.c.b16 %v2510, %v2506
          %v2699 = vpack.c.b16 %v2511, %v2507
          %v2700 = vpack.c.b16 %v2512, %v2508
          %v2701 = vpack.c.b16 %v2513, %v2509
          %v2702 = vpack.c.b16 %v2518, %v2514
          %v2703 = vpack.c.b16 %v2519, %v2515
          %v2704 = vpack.c.b16 %v2520, %v2516
          %v2705 = vpack.c.b16 %v2521, %v2517
          %v2706 = vpack.c.b16 %v2526, %v2522
          %v2707 = vpack.c.b16 %v2527, %v2523
          %v2708 = vpack.c.b16 %v2528, %v2524
          %v2709 = vpack.c.b16 %v2529, %v2525
          %v2710 = vpack.c.b16 %v2534, %v2530
          %v2711 = vpack.c.b16 %v2535, %v2531
          %v2712 = vpack.c.b16 %v2536, %v2532
          %v2713 = vpack.c.b16 %v2537, %v2533
          %v2714 = vpack.c.b16 %v2542, %v2538
          %v2715 = vpack.c.b16 %v2543, %v2539
          %v2716 = vpack.c.b16 %v2544, %v2540
          %v2717 = vpack.c.b16 %v2545, %v2541
          %v2718 = vpack.c.b16 %v2550, %v2546
          %v2719 = vpack.c.b16 %v2551, %v2547
          %v2720 = vpack.c.b16 %v2552, %v2548
          %v2721 = vpack.c.b16 %v2553, %v2549
          %v2722 = vpack.c.b16 %v2558, %v2554
          %v2723 = vpack.c.b16 %v2559, %v2555
          %v2724 = vpack.c.b16 %v2560, %v2556
          %v2725 = vpack.c.b16 %v2561, %v2557
          %v2726 = vpack.c.b16 %v2566, %v2562
          %v2727 = vpack.c.b16 %v2567, %v2563
          %v2728 = vpack.c.b16 %v2568, %v2564
          %v2729 = vpack.c.b16 %v2569, %v2565
          %v2730 = vpack.c.b16 %v2574, %v2570
          %v2731 = vpack.c.b16 %v2575, %v2571
          %v2732 = vpack.c.b16 %v2576, %v2572
          %v2733 = vpack.c.b16 %v2577, %v2573
          %v2734 = vpack.c.b16 %v2582, %v2578
          %v2735 = vpack.c.b16 %v2583, %v2579
          %v2736 = vpack.c.b16 %v2584, %v2580
          %v2737 = vpack.c.b16 %v2585, %v2581
          %v2738 = vpack.c.b16 %v2590, %v2586
          %v2739 = vpack.c.b16 %v2591, %v2587
          %v2740 = vpack.c.b16 %v2592, %v2588
          %v2741 = vpack.c.b16 %v2593, %v2589
          %v2742 = vpack.c.b16 %v2598, %v2594
          %v2743 = vpack.c.b16 %v2599, %v2595
          %v2744 = vpack.c.b16 %v2600, %v2596
          %v2745 = vpack.c.b16 %v2601, %v2597
          %v2746 = vpack.c.b16 %v2606, %v2602
          %v2747 = vpack.c.b16 %v2607, %v2603
          %v2748 = vpack.c.b16 %v2608, %v2604
          %v2749 = vpack.c.b16 %v2609, %v2605
          %v2750 = vpack.c.b16 %v2614, %v2610
          %v2751 = vpack.c.b16 %v2615, %v2611
          %v2752 = vpack.c.b16 %v2616, %v2612
          %v2753 = vpack.c.b16 %v2617, %v2613
          %v2754 = vpack.c.b16 %v2622, %v2618
          %v2755 = vpack.c.b16 %v2623, %v2619
          %v2756 = vpack.c.b16 %v2624, %v2620
          %v2757 = vpack.c.b16 %v2625, %v2621
          %v2758 = vpack.c.b16 %v2630, %v2626
          %v2759 = vpack.c.b16 %v2631, %v2627
          %v2760 = vpack.c.b16 %v2632, %v2628
          %v2761 = vpack.c.b16 %v2633, %v2629
          %2890 = vmatpush.bf16.msra.mxu0 %v2662
          %2891 = vmatpush.bf16.msra.mxu0 %v2658
          %2892 = vmatpush.bf16.msra.mxu0 %v2654
          %2893 = vmatpush.bf16.msra.mxu0 %v2650
          %2894 = vmatpush.bf16.msra.mxu0 %v2646
          %2895 = vmatpush.bf16.msra.mxu0 %v2642
          %2896 = vmatpush.bf16.msra.mxu0 %v2638
          %2897 = vmatpush.bf16.msra.mxu0 %v2634
          %2898 = vmatmul.bf16.gmra.mxu0 %v2106
          %v2899 = vpop.f32.mrf.mxu0
          %v2900 = vadd.f32 %v2246, %v2899
          %v2901 = vpop.f32.mrf.mxu0
          %2902 = vdwg.mxu0
          %2903 = vmatpush.bf16.msra.mxu0 %v2694
          %2904 = vmatpush.bf16.msra.mxu0 %v2690
          %2905 = vmatpush.bf16.msra.mxu0 %v2686
          %2906 = vmatpush.bf16.msra.mxu0 %v2682
          %2907 = vmatpush.bf16.msra.mxu0 %v2678
          %2908 = vmatpush.bf16.msra.mxu0 %v2674
          %2909 = vmatpush.bf16.msra.mxu0 %v2670
          %2910 = vmatpush.bf16.msra.mxu0 %v2666
          %2911 = vmatmul.bf16.gmra.mxu0 %v2107
          %v2912 = vpop.f32.mrf.mxu0
          %v2913 = vadd.f32 %v2900, %v2912
          %v2914 = vpop.f32.mrf.mxu0
          %2915 = vdwg.mxu0
          %2916 = vmatpush.bf16.msra.mxu0 %v2726
          %2917 = vmatpush.bf16.msra.mxu0 %v2722
          %2918 = vmatpush.bf16.msra.mxu0 %v2718
          %2919 = vmatpush.bf16.msra.mxu0 %v2714
          %2920 = vmatpush.bf16.msra.mxu0 %v2710
          %2921 = vmatpush.bf16.msra.mxu0 %v2706
          %2922 = vmatpush.bf16.msra.mxu0 %v2702
          %2923 = vmatpush.bf16.msra.mxu0 %v2698
          %2924 = vmatmul.bf16.gmra.mxu0 %v2108
          %v2925 = vpop.f32.mrf.mxu0
          %v2926 = vadd.f32 %v2913, %v2925
          %v2927 = vpop.f32.mrf.mxu0
          %2928 = vdwg.mxu0
          %2929 = vmatpush.bf16.msra.mxu0 %v2758
          %2930 = vmatpush.bf16.msra.mxu0 %v2754
          %2931 = vmatpush.bf16.msra.mxu0 %v2750
          %2932 = vmatpush.bf16.msra.mxu0 %v2746
          %2933 = vmatpush.bf16.msra.mxu0 %v2742
          %2934 = vmatpush.bf16.msra.mxu0 %v2738
          %2935 = vmatpush.bf16.msra.mxu0 %v2734
          %2936 = vmatpush.bf16.msra.mxu0 %v2730
          %2937 = vmatmul.bf16.gmra.mxu0 %v2109
          %v2938 = vpop.f32.mrf.mxu0
          %v2939 = vadd.f32 %v2926, %v2938
          %v2940 = vpop.f32.mrf.mxu0
          %2941 = vdwg.mxu0
          %2942 = vmatpush.bf16.msra.mxu0 %v2663
          %2943 = vmatpush.bf16.msra.mxu0 %v2659
          %2944 = vmatpush.bf16.msra.mxu0 %v2655
          %2945 = vmatpush.bf16.msra.mxu0 %v2651
          %2946 = vmatpush.bf16.msra.mxu0 %v2647
          %2947 = vmatpush.bf16.msra.mxu0 %v2643
          %2948 = vmatpush.bf16.msra.mxu0 %v2639
          %2949 = vmatpush.bf16.msra.mxu0 %v2635
          %2950 = vmatmul.bf16.gmra.mxu0 %v2106
          %v2951 = vpop.f32.mrf.mxu0
          %v2952 = vadd.f32 %v2247, %v2951
          %v2953 = vpop.f32.mrf.mxu0
          %2954 = vdwg.mxu0
          %2955 = vmatpush.bf16.msra.mxu0 %v2695
          %2956 = vmatpush.bf16.msra.mxu0 %v2691
          %2957 = vmatpush.bf16.msra.mxu0 %v2687
          %2958 = vmatpush.bf16.msra.mxu0 %v2683
          %2959 = vmatpush.bf16.msra.mxu0 %v2679
          %2960 = vmatpush.bf16.msra.mxu0 %v2675
          %2961 = vmatpush.bf16.msra.mxu0 %v2671
          %2962 = vmatpush.bf16.msra.mxu0 %v2667
          %2963 = vmatmul.bf16.gmra.mxu0 %v2107
          %v2964 = vpop.f32.mrf.mxu0
          %v2965 = vadd.f32 %v2952, %v2964
          %v2966 = vpop.f32.mrf.mxu0
          %2967 = vdwg.mxu0
          %2968 = vmatpush.bf16.msra.mxu0 %v2727
          %2969 = vmatpush.bf16.msra.mxu0 %v2723
          %2970 = vmatpush.bf16.msra.mxu0 %v2719
          %2971 = vmatpush.bf16.msra.mxu0 %v2715
          %2972 = vmatpush.bf16.msra.mxu0 %v2711
          %2973 = vmatpush.bf16.msra.mxu0 %v2707
          %2974 = vmatpush.bf16.msra.mxu0 %v2703
          %2975 = vmatpush.bf16.msra.mxu0 %v2699
          %2976 = vmatmul.bf16.gmra.mxu0 %v2108
          %v2977 = vpop.f32.mrf.mxu0
          %v2978 = vadd.f32 %v2965, %v2977
          %v2979 = vpop.f32.mrf.mxu0
          %2980 = vdwg.mxu0
          %2981 = vmatpush.bf16.msra.mxu0 %v2759
          %2982 = vmatpush.bf16.msra.mxu0 %v2755
          %2983 = vmatpush.bf16.msra.mxu0 %v2751
          %2984 = vmatpush.bf16.msra.mxu0 %v2747
          %2985 = vmatpush.bf16.msra.mxu0 %v2743
          %2986 = vmatpush.bf16.msra.mxu0 %v2739
          %2987 = vmatpush.bf16.msra.mxu0 %v2735
          %2988 = vmatpush.bf16.msra.mxu0 %v2731
          %2989 = vmatmul.bf16.gmra.mxu0 %v2109
          %v2990 = vpop.f32.mrf.mxu0
          %v2991 = vadd.f32 %v2978, %v2990
          %v2992 = vpop.f32.mrf.mxu0
          %2993 = vdwg.mxu0
          %2994 = vmatpush.bf16.msra.mxu0 %v2664
          %2995 = vmatpush.bf16.msra.mxu0 %v2660
          %2996 = vmatpush.bf16.msra.mxu0 %v2656
          %2997 = vmatpush.bf16.msra.mxu0 %v2652
          %2998 = vmatpush.bf16.msra.mxu0 %v2648
          %2999 = vmatpush.bf16.msra.mxu0 %v2644
          %3000 = vmatpush.bf16.msra.mxu0 %v2640
          %3001 = vmatpush.bf16.msra.mxu0 %v2636
          %3002 = vmatmul.bf16.gmra.mxu0 %v2106
          %v3003 = vpop.f32.mrf.mxu0
          %v3004 = vadd.f32 %v2248, %v3003
          %v3005 = vpop.f32.mrf.mxu0
          %3006 = vdwg.mxu0
          %3007 = vmatpush.bf16.msra.mxu0 %v2696
          %3008 = vmatpush.bf16.msra.mxu0 %v2692
          %3009 = vmatpush.bf16.msra.mxu0 %v2688
          %3010 = vmatpush.bf16.msra.mxu0 %v2684
          %3011 = vmatpush.bf16.msra.mxu0 %v2680
          %3012 = vmatpush.bf16.msra.mxu0 %v2676
          %3013 = vmatpush.bf16.msra.mxu0 %v2672
          %3014 = vmatpush.bf16.msra.mxu0 %v2668
          %3015 = vmatmul.bf16.gmra.mxu0 %v2107
          %v3016 = vpop.f32.mrf.mxu0
          %v3017 = vadd.f32 %v3004, %v3016
          %v3018 = vpop.f32.mrf.mxu0
          %3019 = vdwg.mxu0
          %3020 = vmatpush.bf16.msra.mxu0 %v2728
          %3021 = vmatpush.bf16.msra.mxu0 %v2724
          %3022 = vmatpush.bf16.msra.mxu0 %v2720
          %3023 = vmatpush.bf16.msra.mxu0 %v2716
          %3024 = vmatpush.bf16.msra.mxu0 %v2712
          %3025 = vmatpush.bf16.msra.mxu0 %v2708
          %3026 = vmatpush.bf16.msra.mxu0 %v2704
          %3027 = vmatpush.bf16.msra.mxu0 %v2700
          %3028 = vmatmul.bf16.gmra.mxu0 %v2108
          %v3029 = vpop.f32.mrf.mxu0
          %v3030 = vadd.f32 %v3017, %v3029
          %v3031 = vpop.f32.mrf.mxu0
          %3032 = vdwg.mxu0
          %3033 = vmatpush.bf16.msra.mxu0 %v2760
          %3034 = vmatpush.bf16.msra.mxu0 %v2756
          %3035 = vmatpush.bf16.msra.mxu0 %v2752
          %3036 = vmatpush.bf16.msra.mxu0 %v2748
          %3037 = vmatpush.bf16.msra.mxu0 %v2744
          %3038 = vmatpush.bf16.msra.mxu0 %v2740
          %3039 = vmatpush.bf16.msra.mxu0 %v2736
          %3040 = vmatpush.bf16.msra.mxu0 %v2732
          %3041 = vmatmul.bf16.gmra.mxu0 %v2109
          %v3042 = vpop.f32.mrf.mxu0
          %v3043 = vadd.f32 %v3030, %v3042
          %v3044 = vpop.f32.mrf.mxu0
          %3045 = vdwg.mxu0
          %3046 = vmatpush.bf16.msra.mxu0 %v2665
          %3047 = vmatpush.bf16.msra.mxu0 %v2661
          %3048 = vmatpush.bf16.msra.mxu0 %v2657
          %3049 = vmatpush.bf16.msra.mxu0 %v2653
          %3050 = vmatpush.bf16.msra.mxu0 %v2649
          %3051 = vmatpush.bf16.msra.mxu0 %v2645
          %3052 = vmatpush.bf16.msra.mxu0 %v2641
          %3053 = vmatpush.bf16.msra.mxu0 %v2637
          %3054 = vmatmul.bf16.gmra.mxu0 %v2106
          %v3055 = vpop.f32.mrf.mxu0
          %v3056 = vadd.f32 %v2249, %v3055
          %v3057 = vpop.f32.mrf.mxu0
          %3058 = vdwg.mxu0
          %3059 = vmatpush.bf16.msra.mxu0 %v2697
          %3060 = vmatpush.bf16.msra.mxu0 %v2693
          %3061 = vmatpush.bf16.msra.mxu0 %v2689
          %3062 = vmatpush.bf16.msra.mxu0 %v2685
          %3063 = vmatpush.bf16.msra.mxu0 %v2681
          %3064 = vmatpush.bf16.msra.mxu0 %v2677
          %3065 = vmatpush.bf16.msra.mxu0 %v2673
          %3066 = vmatpush.bf16.msra.mxu0 %v2669
          %3067 = vmatmul.bf16.gmra.mxu0 %v2107
          %v3068 = vpop.f32.mrf.mxu0
          %v3069 = vadd.f32 %v3056, %v3068
          %v3070 = vpop.f32.mrf.mxu0
          %3071 = vdwg.mxu0
          %3072 = vmatpush.bf16.msra.mxu0 %v2729
          %3073 = vmatpush.bf16.msra.mxu0 %v2725
          %3074 = vmatpush.bf16.msra.mxu0 %v2721
          %3075 = vmatpush.bf16.msra.mxu0 %v2717
          %3076 = vmatpush.bf16.msra.mxu0 %v2713
          %3077 = vmatpush.bf16.msra.mxu0 %v2709
          %3078 = vmatpush.bf16.msra.mxu0 %v2705
          %3079 = vmatpush.bf16.msra.mxu0 %v2701
          %3080 = vmatmul.bf16.gmra.mxu0 %v2108
          %v3081 = vpop.f32.mrf.mxu0
          %v3082 = vadd.f32 %v3069, %v3081
          %v3083 = vpop.f32.mrf.mxu0
          %3084 = vdwg.mxu0
          %3085 = vmatpush.bf16.msra.mxu0 %v2761
          %3086 = vmatpush.bf16.msra.mxu0 %v2757
          %3087 = vmatpush.bf16.msra.mxu0 %v2753
          %3088 = vmatpush.bf16.msra.mxu0 %v2749
          %3089 = vmatpush.bf16.msra.mxu0 %v2745
          %3090 = vmatpush.bf16.msra.mxu0 %v2741
          %3091 = vmatpush.bf16.msra.mxu0 %v2737
          %3092 = vmatpush.bf16.msra.mxu0 %v2733
          %3093 = vmatmul.bf16.gmra.mxu0 %v2109
          %v3094 = vpop.f32.mrf.mxu0
          %v3095 = vadd.f32 %v3082, %v3094
          %v3096 = vpop.f32.mrf.mxu0
          %3097 = vdwg.mxu0
          %v3098 = vtanh.pop %v2991
          %v3099 = vtanh.pop %v3095
          %v3100 = vmul.f32 %v3098, 0.5
          %v3101 = vmul.f32 %v3100, 1.442695
          %v3102 = vpow.pop %v3101
          %v3103 = vmul.f32 %v3102, %v3102
          %v3104 = vld [vmem:[%s1] sm:$0xff]
          %v3105 = vmul.f32 %v3104, %v3102
          %v3106 = vadd.f32 %v2939, %v3105
          %3107 = vst [vmem:[%s10] sm:$0xff] %v2939
          %3108 = vst [vmem:[%s11] sm:$0xff] %v3103
          %v3109 = vsub.f32 0.0, %v3099
          %v3110 = vmul.f32 %v3109, 1.442695
          %v3111 = vpow.pop %v3110
          %v3112 = vlaneseq
          %v3113 = vshrl.u32 %v3112, 7
          %vm3114 = vcmp.lt.s32.totalorder %v3113, 4
          %v3115 = vsel %vm3114, %v3111, 0.0
          %v3116 = vrot.slane %v3115, 4
          %v3117 = vadd.f32 %v3115, %v3116
          %v3118 = vrot.slane %v3117, 2
          %v3119 = vadd.f32 %v3117, %v3118
          %v3120 = vrot.slane %v3119, 1
          %v3121 = vadd.f32 %v3119, %v3120
          %v3122 = vrcp.pop %v3121
          %v3123 = vmul.f32 %v3121, %v3122
          %v3124 = vsub.f32 1.0, %v3123
          %v3125 = vmul.f32 %v3122, %v3124
          %v3126 = vadd.f32 %v3122, %v3125
          %vm3127 = vweird.f32 %v3121
          %vm3128 = vweird.f32 %v3122
          %vm3129 = vmor %vm3127, %vm3128
          %v3130 = vsel %vm3129, %v3122, %v3126
          %v3131 = vand.u32 2147483647, %v3121
          %vm3132 = vcmp.eq.f32.partialorder %v3131, 8.507059e+37
          %v3133 = vand.u32 %v3121, 2147483648
          %v3134 = vor.u32 1.1754944e-38, %v3133
          %v3135 = vsel %vm3132, %v3134, %v3130
          %v3136 = vmul.f32 1.0, %v3135
          %v3137 = vmul.f32 %v3115, %v3043
          %v3138 = vrot.slane %v3137, 4
          %v3139 = vadd.f32 %v3137, %v3138
          %v3140 = vrot.slane %v3139, 2
          %v3141 = vadd.f32 %v3139, %v3140
          %v3142 = vrot.slane %v3141, 1
          %v3143 = vadd.f32 %v3141, %v3142
          %v3144 = vmul.f32 %v3136, %v3143
          %v3145 = vld [vmem:[%s2] sm:$0x1]
          %v3146 = vrsqrt.pop %v3121
          %v3147 = vmul.f32 %v3146, %v3121
          %v3148 = vmul.f32 %v3147, %v3146
          %v3149 = vmul.f32 0.5, %v3148
          %v3150 = vsub.f32 1.5, %v3149
          %v3151 = vmul.f32 %v3146, %v3150
          %vm3152 = vweird.f32 %v3121
          %vm3153 = vweird.f32 %v3146
          %vm3154 = vmor %vm3152, %vm3153
          %v3155 = vsel %vm3154, %v3146, %v3151
          %v3156 = vmul.f32 %v3145, %v3155
          %v3157 = vadd.f32 %v3144, %v3156
          %3158 = vst [vmem:[%s12] sm:$0x1] %v3144
          %3159 = vst [vmem:[%s13] sm:$0x1] %v3136
          %v3160 = vperm.slane %v3157, 0
          %v3161 = vpack.c.bf16 %v3106, %v3106
          %v3162 = vpack.c.bf16 %v3160, %v3160
          %v3163 = vld [vmem:[#allocation7] sm:$0xff]
          %v3164 = vld [vmem:[#allocation7 + $0x8] sm:$0xff]
          %v3165 = vld [vmem:[#allocation7 + $0x10] sm:$0xff]
          %v3166 = vld [vmem:[#allocation7 + $0x18] sm:$0xff]
          %v3167 = vld [vmem:[#allocation7 + $0x20] sm:$0xff]
          %v3168 = vld [vmem:[#allocation7 + $0x28] sm:$0xff]
          %v3169 = vld [vmem:[#allocation7 + $0x30] sm:$0xff]
          %v3170 = vld [vmem:[#allocation7 + $0x38] sm:$0xff]
          %v3171 = vld [vmem:[#allocation7 + $0x40] sm:$0xff]
          %v3172 = vld [vmem:[#allocation7 + $0x48] sm:$0xff]
          %v3173 = vld [vmem:[#allocation7 + $0x50] sm:$0xff]
          %v3174 = vld [vmem:[#allocation7 + $0x58] sm:$0xff]
          %v3175 = vld [vmem:[#allocation7 + $0x60] sm:$0xff]
          %v3176 = vld [vmem:[#allocation7 + $0x68] sm:$0xff]
          %v3177 = vld [vmem:[#allocation7 + $0x70] sm:$0xff]
          %v3178 = vld [vmem:[#allocation7 + $0x78] sm:$0xff]
          %v3179 = vld [vmem:[#allocation7 + $0x80] sm:$0xff]
          %v3180 = vld [vmem:[#allocation7 + $0x88] sm:$0xff]
          %v3181 = vld [vmem:[#allocation7 + $0x90] sm:$0xff]
          %v3182 = vld [vmem:[#allocation7 + $0x98] sm:$0xff]
          %v3183 = vld [vmem:[#allocation7 + $0xa0] sm:$0xff]
          %v3184 = vld [vmem:[#allocation7 + $0xa8] sm:$0xff]
          %v3185 = vld [vmem:[#allocation7 + $0xb0] sm:$0xff]
          %v3186 = vld [vmem:[#allocation7 + $0xb8] sm:$0xff]
          %v3187 = vld [vmem:[#allocation7 + $0xc0] sm:$0xff]
          %v3188 = vld [vmem:[#allocation7 + $0xc8] sm:$0xff]
          %v3189 = vld [vmem:[#allocation7 + $0xd0] sm:$0xff]
          %v3190 = vld [vmem:[#allocation7 + $0xd8] sm:$0xff]
          %v3191 = vld [vmem:[#allocation7 + $0xe0] sm:$0xff]
          %v3192 = vld [vmem:[#allocation7 + $0xe8] sm:$0xff]
          %v3193 = vld [vmem:[#allocation7 + $0xf0] sm:$0xff]
          %v3194 = vld [vmem:[#allocation7 + $0xf8] sm:$0xff]
          %v3195 = vld [vmem:[#allocation7 + $0x100] sm:$0xff]
          %v3196 = vld [vmem:[#allocation7 + $0x108] sm:$0xff]
          %v3197 = vld [vmem:[#allocation7 + $0x110] sm:$0xff]
          %v3198 = vld [vmem:[#allocation7 + $0x118] sm:$0xff]
          %v3199 = vld [vmem:[#allocation7 + $0x120] sm:$0xff]
          %v3200 = vld [vmem:[#allocation7 + $0x128] sm:$0xff]
          %v3201 = vld [vmem:[#allocation7 + $0x130] sm:$0xff]
          %v3202 = vld [vmem:[#allocation7 + $0x138] sm:$0xff]
          %v3203 = vld [vmem:[#allocation7 + $0x140] sm:$0xff]
          %v3204 = vld [vmem:[#allocation7 + $0x148] sm:$0xff]
          %v3205 = vld [vmem:[#allocation7 + $0x150] sm:$0xff]
          %v3206 = vld [vmem:[#allocation7 + $0x158] sm:$0xff]
          %v3207 = vld [vmem:[#allocation7 + $0x160] sm:$0xff]
          %v3208 = vld [vmem:[#allocation7 + $0x168] sm:$0xff]
          %v3209 = vld [vmem:[#allocation7 + $0x170] sm:$0xff]
          %v3210 = vld [vmem:[#allocation7 + $0x178] sm:$0xff]
          %v3211 = vld [vmem:[#allocation7 + $0x180] sm:$0xff]
          %v3212 = vld [vmem:[#allocation7 + $0x188] sm:$0xff]
          %v3213 = vld [vmem:[#allocation7 + $0x190] sm:$0xff]
          %v3214 = vld [vmem:[#allocation7 + $0x198] sm:$0xff]
          %v3215 = vld [vmem:[#allocation7 + $0x1a0] sm:$0xff]
          %v3216 = vld [vmem:[#allocation7 + $0x1a8] sm:$0xff]
          %v3217 = vld [vmem:[#allocation7 + $0x1b0] sm:$0xff]
          %v3218 = vld [vmem:[#allocation7 + $0x1b8] sm:$0xff]
          %v3219 = vld [vmem:[#allocation7 + $0x1c0] sm:$0xff]
          %v3220 = vld [vmem:[#allocation7 + $0x1c8] sm:$0xff]
          %v3221 = vld [vmem:[#allocation7 + $0x1d0] sm:$0xff]
          %v3222 = vld [vmem:[#allocation7 + $0x1d8] sm:$0xff]
          %v3223 = vld [vmem:[#allocation7 + $0x1e0] sm:$0xff]
          %v3224 = vld [vmem:[#allocation7 + $0x1e8] sm:$0xff]
          %v3225 = vld [vmem:[#allocation7 + $0x1f0] sm:$0xff]
          %v3226 = vld [vmem:[#allocation7 + $0x1f8] sm:$0xff]
          %v3227 = vperm.slane %v528, 2
          %v3228 = vperm.slane %v528, 6
          %v3229 = vperm.slane %v529, 2
          %v3230 = vperm.slane %v529, 6
          %v3235 = vperm.slane %v3227, 2
          %v3236 = vperm.slane %v3228, 2
          %v3237 = vperm.slane %v3229, 2
          %v3238 = vperm.slane %v3230, 2
          %v3303 = vunpack.c.l.b16 %v3163
          %v3304 = vunpack.c.h.b16 %v3163
          %v3305 = vunpack.c.l.b16 %v3164
          %v3306 = vunpack.c.h.b16 %v3164
          %v3307 = vunpack.c.l.b16 %v3165
          %v3308 = vunpack.c.h.b16 %v3165
          %v3309 = vunpack.c.l.b16 %v3166
          %v3310 = vunpack.c.h.b16 %v3166
          %v3311 = vunpack.c.l.b16 %v3167
          %v3312 = vunpack.c.h.b16 %v3167
          %v3313 = vunpack.c.l.b16 %v3168
          %v3314 = vunpack.c.h.b16 %v3168
          %v3315 = vunpack.c.l.b16 %v3169
          %v3316 = vunpack.c.h.b16 %v3169
          %v3317 = vunpack.c.l.b16 %v3170
          %v3318 = vunpack.c.h.b16 %v3170
          %v3319 = vunpack.c.l.b16 %v3171
          %v3320 = vunpack.c.h.b16 %v3171
          %v3321 = vunpack.c.l.b16 %v3172
          %v3322 = vunpack.c.h.b16 %v3172
          %v3323 = vunpack.c.l.b16 %v3173
          %v3324 = vunpack.c.h.b16 %v3173
          %v3325 = vunpack.c.l.b16 %v3174
          %v3326 = vunpack.c.h.b16 %v3174
          %v3327 = vunpack.c.l.b16 %v3175
          %v3328 = vunpack.c.h.b16 %v3175
          %v3329 = vunpack.c.l.b16 %v3176
          %v3330 = vunpack.c.h.b16 %v3176
          %v3331 = vunpack.c.l.b16 %v3177
          %v3332 = vunpack.c.h.b16 %v3177
          %v3333 = vunpack.c.l.b16 %v3178
          %v3334 = vunpack.c.h.b16 %v3178
          %v3335 = vunpack.c.l.b16 %v3179
          %v3336 = vunpack.c.h.b16 %v3179
          %v3337 = vunpack.c.l.b16 %v3180
          %v3338 = vunpack.c.h.b16 %v3180
          %v3339 = vunpack.c.l.b16 %v3181
          %v3340 = vunpack.c.h.b16 %v3181
          %v3341 = vunpack.c.l.b16 %v3182
          %v3342 = vunpack.c.h.b16 %v3182
          %v3343 = vunpack.c.l.b16 %v3183
          %v3344 = vunpack.c.h.b16 %v3183
          %v3345 = vunpack.c.l.b16 %v3184
          %v3346 = vunpack.c.h.b16 %v3184
          %v3347 = vunpack.c.l.b16 %v3185
          %v3348 = vunpack.c.h.b16 %v3185
          %v3349 = vunpack.c.l.b16 %v3186
          %v3350 = vunpack.c.h.b16 %v3186
          %v3351 = vunpack.c.l.b16 %v3187
          %v3352 = vunpack.c.h.b16 %v3187
          %v3353 = vunpack.c.l.b16 %v3188
          %v3354 = vunpack.c.h.b16 %v3188
          %v3355 = vunpack.c.l.b16 %v3189
          %v3356 = vunpack.c.h.b16 %v3189
          %v3357 = vunpack.c.l.b16 %v3190
          %v3358 = vunpack.c.h.b16 %v3190
          %v3359 = vunpack.c.l.b16 %v3191
          %v3360 = vunpack.c.h.b16 %v3191
          %v3361 = vunpack.c.l.b16 %v3192
          %v3362 = vunpack.c.h.b16 %v3192
          %v3363 = vunpack.c.l.b16 %v3193
          %v3364 = vunpack.c.h.b16 %v3193
          %v3365 = vunpack.c.l.b16 %v3194
          %v3366 = vunpack.c.h.b16 %v3194
          %v3367 = vunpack.c.l.b16 %v3195
          %v3368 = vunpack.c.h.b16 %v3195
          %v3369 = vunpack.c.l.b16 %v3196
          %v3370 = vunpack.c.h.b16 %v3196
          %v3371 = vunpack.c.l.b16 %v3197
          %v3372 = vunpack.c.h.b16 %v3197
          %v3373 = vunpack.c.l.b16 %v3198
          %v3374 = vunpack.c.h.b16 %v3198
          %v3375 = vunpack.c.l.b16 %v3199
          %v3376 = vunpack.c.h.b16 %v3199
          %v3377 = vunpack.c.l.b16 %v3200
          %v3378 = vunpack.c.h.b16 %v3200
          %v3379 = vunpack.c.l.b16 %v3201
          %v3380 = vunpack.c.h.b16 %v3201
          %v3381 = vunpack.c.l.b16 %v3202
          %v3382 = vunpack.c.h.b16 %v3202
          %v3383 = vunpack.c.l.b16 %v3203
          %v3384 = vunpack.c.h.b16 %v3203
          %v3385 = vunpack.c.l.b16 %v3204
          %v3386 = vunpack.c.h.b16 %v3204
          %v3387 = vunpack.c.l.b16 %v3205
          %v3388 = vunpack.c.h.b16 %v3205
          %v3389 = vunpack.c.l.b16 %v3206
          %v3390 = vunpack.c.h.b16 %v3206
          %v3391 = vunpack.c.l.b16 %v3207
          %v3392 = vunpack.c.h.b16 %v3207
          %v3393 = vunpack.c.l.b16 %v3208
          %v3394 = vunpack.c.h.b16 %v3208
          %v3395 = vunpack.c.l.b16 %v3209
          %v3396 = vunpack.c.h.b16 %v3209
          %v3397 = vunpack.c.l.b16 %v3210
          %v3398 = vunpack.c.h.b16 %v3210
          %v3399 = vunpack.c.l.b16 %v3211
          %v3400 = vunpack.c.h.b16 %v3211
          %v3401 = vunpack.c.l.b16 %v3212
          %v3402 = vunpack.c.h.b16 %v3212
          %v3403 = vunpack.c.l.b16 %v3213
          %v3404 = vunpack.c.h.b16 %v3213
          %v3405 = vunpack.c.l.b16 %v3214
          %v3406 = vunpack.c.h.b16 %v3214
          %v3407 = vunpack.c.l.b16 %v3215
          %v3408 = vunpack.c.h.b16 %v3215
          %v3409 = vunpack.c.l.b16 %v3216
          %v3410 = vunpack.c.h.b16 %v3216
          %v3411 = vunpack.c.l.b16 %v3217
          %v3412 = vunpack.c.h.b16 %v3217
          %v3413 = vunpack.c.l.b16 %v3218
          %v3414 = vunpack.c.h.b16 %v3218
          %v3415 = vunpack.c.l.b16 %v3219
          %v3416 = vunpack.c.h.b16 %v3219
          %v3417 = vunpack.c.l.b16 %v3220
          %v3418 = vunpack.c.h.b16 %v3220
          %v3419 = vunpack.c.l.b16 %v3221
          %v3420 = vunpack.c.h.b16 %v3221
          %v3421 = vunpack.c.l.b16 %v3222
          %v3422 = vunpack.c.h.b16 %v3222
          %v3423 = vunpack.c.l.b16 %v3223
          %v3424 = vunpack.c.h.b16 %v3223
          %v3425 = vunpack.c.l.b16 %v3224
          %v3426 = vunpack.c.h.b16 %v3224
          %v3427 = vunpack.c.l.b16 %v3225
          %v3428 = vunpack.c.h.b16 %v3225
          %v3429 = vunpack.c.l.b16 %v3226
          %v3430 = vunpack.c.h.b16 %v3226
          %v3431 = vpack.c.b16 %v3307, %v3303
          %v3432 = vpack.c.b16 %v3308, %v3304
          %v3433 = vpack.c.b16 %v3309, %v3305
          %v3434 = vpack.c.b16 %v3310, %v3306
          %v3435 = vpack.c.b16 %v3315, %v3311
          %v3436 = vpack.c.b16 %v3316, %v3312
          %v3437 = vpack.c.b16 %v3317, %v3313
          %v3438 = vpack.c.b16 %v3318, %v3314
          %v3439 = vpack.c.b16 %v3323, %v3319
          %v3440 = vpack.c.b16 %v3324, %v3320
          %v3441 = vpack.c.b16 %v3325, %v3321
          %v3442 = vpack.c.b16 %v3326, %v3322
          %v3443 = vpack.c.b16 %v3331, %v3327
          %v3444 = vpack.c.b16 %v3332, %v3328
          %v3445 = vpack.c.b16 %v3333, %v3329
          %v3446 = vpack.c.b16 %v3334, %v3330
          %v3447 = vpack.c.b16 %v3339, %v3335
          %v3448 = vpack.c.b16 %v3340, %v3336
          %v3449 = vpack.c.b16 %v3341, %v3337
          %v3450 = vpack.c.b16 %v3342, %v3338
          %v3451 = vpack.c.b16 %v3347, %v3343
          %v3452 = vpack.c.b16 %v3348, %v3344
          %v3453 = vpack.c.b16 %v3349, %v3345
          %v3454 = vpack.c.b16 %v3350, %v3346
          %v3455 = vpack.c.b16 %v3355, %v3351
          %v3456 = vpack.c.b16 %v3356, %v3352
          %v3457 = vpack.c.b16 %v3357, %v3353
          %v3458 = vpack.c.b16 %v3358, %v3354
          %v3459 = vpack.c.b16 %v3363, %v3359
          %v3460 = vpack.c.b16 %v3364, %v3360
          %v3461 = vpack.c.b16 %v3365, %v3361
          %v3462 = vpack.c.b16 %v3366, %v3362
          %v3463 = vpack.c.b16 %v3371, %v3367
          %v3464 = vpack.c.b16 %v3372, %v3368
          %v3465 = vpack.c.b16 %v3373, %v3369
          %v3466 = vpack.c.b16 %v3374, %v3370
          %v3467 = vpack.c.b16 %v3379, %v3375
          %v3468 = vpack.c.b16 %v3380, %v3376
          %v3469 = vpack.c.b16 %v3381, %v3377
          %v3470 = vpack.c.b16 %v3382, %v3378
          %v3471 = vpack.c.b16 %v3387, %v3383
          %v3472 = vpack.c.b16 %v3388, %v3384
          %v3473 = vpack.c.b16 %v3389, %v3385
          %v3474 = vpack.c.b16 %v3390, %v3386
          %v3475 = vpack.c.b16 %v3395, %v3391
          %v3476 = vpack.c.b16 %v3396, %v3392
          %v3477 = vpack.c.b16 %v3397, %v3393
          %v3478 = vpack.c.b16 %v3398, %v3394
          %v3479 = vpack.c.b16 %v3403, %v3399
          %v3480 = vpack.c.b16 %v3404, %v3400
          %v3481 = vpack.c.b16 %v3405, %v3401
          %v3482 = vpack.c.b16 %v3406, %v3402
          %v3483 = vpack.c.b16 %v3411, %v3407
          %v3484 = vpack.c.b16 %v3412, %v3408
          %v3485 = vpack.c.b16 %v3413, %v3409
          %v3486 = vpack.c.b16 %v3414, %v3410
          %v3487 = vpack.c.b16 %v3419, %v3415
          %v3488 = vpack.c.b16 %v3420, %v3416
          %v3489 = vpack.c.b16 %v3421, %v3417
          %v3490 = vpack.c.b16 %v3422, %v3418
          %v3491 = vpack.c.b16 %v3427, %v3423
          %v3492 = vpack.c.b16 %v3428, %v3424
          %v3493 = vpack.c.b16 %v3429, %v3425
          %v3494 = vpack.c.b16 %v3430, %v3426
          %3559 = vmatpush.bf16.msra.mxu0 %v3459
          %3560 = vmatpush.bf16.msra.mxu0 %v3455
          %3561 = vmatpush.bf16.msra.mxu0 %v3451
          %3562 = vmatpush.bf16.msra.mxu0 %v3447
          %3563 = vmatpush.bf16.msra.mxu0 %v3443
          %3564 = vmatpush.bf16.msra.mxu0 %v3439
          %3565 = vmatpush.bf16.msra.mxu0 %v3435
          %3566 = vmatpush.bf16.msra.mxu0 %v3431
          %3567 = vmatmul.bf16.gmra.mxu0 %v3161
          %v3568 = vpop.f32.mrf.mxu0
          %v3569 = vadd.f32 %v3235, %v3568
          %v3570 = vpop.f32.mrf.mxu0
          %3571 = vdwg.mxu0
          %3572 = vmatpush.bf16.msra.mxu0 %v3491
          %3573 = vmatpush.bf16.msra.mxu0 %v3487
          %3574 = vmatpush.bf16.msra.mxu0 %v3483
          %3575 = vmatpush.bf16.msra.mxu0 %v3479
          %3576 = vmatpush.bf16.msra.mxu0 %v3475
          %3577 = vmatpush.bf16.msra.mxu0 %v3471
          %3578 = vmatpush.bf16.msra.mxu0 %v3467
          %3579 = vmatpush.bf16.msra.mxu0 %v3463
          %3580 = vmatmul.bf16.gmra.mxu0 %v3162
          %v3581 = vpop.f32.mrf.mxu0
          %v3582 = vadd.f32 %v3569, %v3581
          %v3583 = vpop.f32.mrf.mxu0
          %3584 = vdwg.mxu0
          %3585 = vmatpush.bf16.msra.mxu0 %v3460
          %3586 = vmatpush.bf16.msra.mxu0 %v3456
          %3587 = vmatpush.bf16.msra.mxu0 %v3452
          %3588 = vmatpush.bf16.msra.mxu0 %v3448
          %3589 = vmatpush.bf16.msra.mxu0 %v3444
          %3590 = vmatpush.bf16.msra.mxu0 %v3440
          %3591 = vmatpush.bf16.msra.mxu0 %v3436
          %3592 = vmatpush.bf16.msra.mxu0 %v3432
          %3593 = vmatmul.bf16.gmra.mxu0 %v3161
          %v3594 = vpop.f32.mrf.mxu0
          %v3595 = vadd.f32 %v3236, %v3594
          %v3596 = vpop.f32.mrf.mxu0
          %3597 = vdwg.mxu0
          %3598 = vmatpush.bf16.msra.mxu0 %v3492
          %3599 = vmatpush.bf16.msra.mxu0 %v3488
          %3600 = vmatpush.bf16.msra.mxu0 %v3484
          %3601 = vmatpush.bf16.msra.mxu0 %v3480
          %3602 = vmatpush.bf16.msra.mxu0 %v3476
          %3603 = vmatpush.bf16.msra.mxu0 %v3472
          %3604 = vmatpush.bf16.msra.mxu0 %v3468
          %3605 = vmatpush.bf16.msra.mxu0 %v3464
          %3606 = vmatmul.bf16.gmra.mxu0 %v3162
          %v3607 = vpop.f32.mrf.mxu0
          %v3608 = vadd.f32 %v3595, %v3607
          %v3609 = vpop.f32.mrf.mxu0
          %3610 = vdwg.mxu0
          %3611 = vmatpush.bf16.msra.mxu0 %v3461
          %3612 = vmatpush.bf16.msra.mxu0 %v3457
          %3613 = vmatpush.bf16.msra.mxu0 %v3453
          %3614 = vmatpush.bf16.msra.mxu0 %v3449
          %3615 = vmatpush.bf16.msra.mxu0 %v3445
          %3616 = vmatpush.bf16.msra.mxu0 %v3441
          %3617 = vmatpush.bf16.msra.mxu0 %v3437
          %3618 = vmatpush.bf16.msra.mxu0 %v3433
          %3619 = vmatmul.bf16.gmra.mxu0 %v3161
          %v3620 = vpop.f32.mrf.mxu0
          %v3621 = vadd.f32 %v3237, %v3620
          %v3622 = vpop.f32.mrf.mxu0
          %3623 = vdwg.mxu0
          %3624 = vmatpush.bf16.msra.mxu0 %v3493
          %3625 = vmatpush.bf16.msra.mxu0 %v3489
          %3626 = vmatpush.bf16.msra.mxu0 %v3485
          %3627 = vmatpush.bf16.msra.mxu0 %v3481
          %3628 = vmatpush.bf16.msra.mxu0 %v3477
          %3629 = vmatpush.bf16.msra.mxu0 %v3473
          %3630 = vmatpush.bf16.msra.mxu0 %v3469
          %3631 = vmatpush.bf16.msra.mxu0 %v3465
          %3632 = vmatmul.bf16.gmra.mxu0 %v3162
          %v3633 = vpop.f32.mrf.mxu0
          %v3634 = vadd.f32 %v3621, %v3633
          %v3635 = vpop.f32.mrf.mxu0
          %3636 = vdwg.mxu0
          %3637 = vmatpush.bf16.msra.mxu0 %v3462
          %3638 = vmatpush.bf16.msra.mxu0 %v3458
          %3639 = vmatpush.bf16.msra.mxu0 %v3454
          %3640 = vmatpush.bf16.msra.mxu0 %v3450
          %3641 = vmatpush.bf16.msra.mxu0 %v3446
          %3642 = vmatpush.bf16.msra.mxu0 %v3442
          %3643 = vmatpush.bf16.msra.mxu0 %v3438
          %3644 = vmatpush.bf16.msra.mxu0 %v3434
          %3645 = vmatmul.bf16.gmra.mxu0 %v3161
          %v3646 = vpop.f32.mrf.mxu0
          %v3647 = vadd.f32 %v3238, %v3646
          %v3648 = vpop.f32.mrf.mxu0
          %3649 = vdwg.mxu0
          %3650 = vmatpush.bf16.msra.mxu0 %v3494
          %3651 = vmatpush.bf16.msra.mxu0 %v3490
          %3652 = vmatpush.bf16.msra.mxu0 %v3486
          %3653 = vmatpush.bf16.msra.mxu0 %v3482
          %3654 = vmatpush.bf16.msra.mxu0 %v3478
          %3655 = vmatpush.bf16.msra.mxu0 %v3474
          %3656 = vmatpush.bf16.msra.mxu0 %v3470
          %3657 = vmatpush.bf16.msra.mxu0 %v3466
          %3658 = vmatmul.bf16.gmra.mxu0 %v3162
          %v3659 = vpop.f32.mrf.mxu0
          %v3660 = vadd.f32 %v3647, %v3659
          %v3661 = vpop.f32.mrf.mxu0
          %3662 = vdwg.mxu0
          %v3663 = vmax.f32 %v3582, 0.0
          %v3664 = vmax.f32 %v3608, 0.0
          %v3665 = vmax.f32 %v3634, 0.0
          %v3666 = vmax.f32 %v3660, 0.0
          %3667 = vst [vmem:[#allocation2] sm:$0xff] %v3663
          %3668 = vst [vmem:[#allocation2 + $0x8] sm:$0xff] %v3664
          %3669 = vst [vmem:[#allocation2 + $0x10] sm:$0xff] %v3665
          %3670 = vst [vmem:[#allocation2 + $0x18] sm:$0xff] %v3666
        $region76: #{mlvae_forward.1} parent=55 // pred_fallthru
          _
        %v3671 = vld [vmem:[#allocation2] sm:$0xff]
        %v3672 = vld [vmem:[#allocation2 + $0x8] sm:$0xff]
        %v3673 = vld [vmem:[#allocation2 + $0x10] sm:$0xff]
        %v3674 = vld [vmem:[#allocation2 + $0x18] sm:$0xff]
        %v3675 = vpack.c.bf16 %v3671, %v3671
        %v3676 = vpack.c.bf16 %v3672, %v3672
        %v3677 = vpack.c.bf16 %v3673, %v3673
        %v3678 = vpack.c.bf16 %v3674, %v3674
        %v3679 = vld [vmem:[%s463] sm:$0xff]
        %v3680 = vld [vmem:[%s463 + $0x8] sm:$0xff]
        %v3681 = vld [vmem:[%s463 + $0x10] sm:$0xff]
        %v3682 = vld [vmem:[%s463 + $0x18] sm:$0xff]
        %v3683 = vld [vmem:[%s463 + $0x20] sm:$0xff]
        %v3684 = vld [vmem:[%s463 + $0x28] sm:$0xff]
        %v3685 = vld [vmem:[%s463 + $0x30] sm:$0xff]
        %v3686 = vld [vmem:[%s463 + $0x38] sm:$0xff]
        %v3687 = vld [vmem:[%s463 + $0x40] sm:$0xff]
        %v3688 = vld [vmem:[%s463 + $0x48] sm:$0xff]
        %v3689 = vld [vmem:[%s463 + $0x50] sm:$0xff]
        %v3690 = vld [vmem:[%s463 + $0x58] sm:$0xff]
        %v3691 = vld [vmem:[%s463 + $0x60] sm:$0xff]
        %v3692 = vld [vmem:[%s463 + $0x68] sm:$0xff]
        %v3693 = vld [vmem:[%s463 + $0x70] sm:$0xff]
        %v3694 = vld [vmem:[%s463 + $0x78] sm:$0xff]
        %v3695 = vld [vmem:[%s463 + $0x80] sm:$0xff]
        %v3696 = vld [vmem:[%s463 + $0x88] sm:$0xff]
        %v3697 = vld [vmem:[%s463 + $0x90] sm:$0xff]
        %v3698 = vld [vmem:[%s463 + $0x98] sm:$0xff]
        %v3699 = vld [vmem:[%s463 + $0xa0] sm:$0xff]
        %v3700 = vld [vmem:[%s463 + $0xa8] sm:$0xff]
        %v3701 = vld [vmem:[%s463 + $0xb0] sm:$0xff]
        %v3702 = vld [vmem:[%s463 + $0xb8] sm:$0xff]
        %v3703 = vld [vmem:[%s463 + $0xc0] sm:$0xff]
        %v3704 = vld [vmem:[%s463 + $0xc8] sm:$0xff]
        %v3705 = vld [vmem:[%s463 + $0xd0] sm:$0xff]
        %v3706 = vld [vmem:[%s463 + $0xd8] sm:$0xff]
        %v3707 = vld [vmem:[%s463 + $0xe0] sm:$0xff]
        %v3708 = vld [vmem:[%s463 + $0xe8] sm:$0xff]
        %v3709 = vld [vmem:[%s463 + $0xf0] sm:$0xff]
        %v3710 = vld [vmem:[%s463 + $0xf8] sm:$0xff]
        %v3711 = vld [vmem:[%s463 + $0x100] sm:$0xff]
        %v3712 = vld [vmem:[%s463 + $0x108] sm:$0xff]
        %v3713 = vld [vmem:[%s463 + $0x110] sm:$0xff]
        %v3714 = vld [vmem:[%s463 + $0x118] sm:$0xff]
        %v3715 = vld [vmem:[%s463 + $0x120] sm:$0xff]
        %v3716 = vld [vmem:[%s463 + $0x128] sm:$0xff]
        %v3717 = vld [vmem:[%s463 + $0x130] sm:$0xff]
        %v3718 = vld [vmem:[%s463 + $0x138] sm:$0xff]
        %v3719 = vld [vmem:[%s463 + $0x140] sm:$0xff]
        %v3720 = vld [vmem:[%s463 + $0x148] sm:$0xff]
        %v3721 = vld [vmem:[%s463 + $0x150] sm:$0xff]
        %v3722 = vld [vmem:[%s463 + $0x158] sm:$0xff]
        %v3723 = vld [vmem:[%s463 + $0x160] sm:$0xff]
        %v3724 = vld [vmem:[%s463 + $0x168] sm:$0xff]
        %v3725 = vld [vmem:[%s463 + $0x170] sm:$0xff]
        %v3726 = vld [vmem:[%s463 + $0x178] sm:$0xff]
        %v3727 = vld [vmem:[%s463 + $0x180] sm:$0xff]
        %v3728 = vld [vmem:[%s463 + $0x188] sm:$0xff]
        %v3729 = vld [vmem:[%s463 + $0x190] sm:$0xff]
        %v3730 = vld [vmem:[%s463 + $0x198] sm:$0xff]
        %v3731 = vld [vmem:[%s463 + $0x1a0] sm:$0xff]
        %v3732 = vld [vmem:[%s463 + $0x1a8] sm:$0xff]
        %v3733 = vld [vmem:[%s463 + $0x1b0] sm:$0xff]
        %v3734 = vld [vmem:[%s463 + $0x1b8] sm:$0xff]
        %v3735 = vld [vmem:[%s463 + $0x1c0] sm:$0xff]
        %v3736 = vld [vmem:[%s463 + $0x1c8] sm:$0xff]
        %v3737 = vld [vmem:[%s463 + $0x1d0] sm:$0xff]
        %v3738 = vld [vmem:[%s463 + $0x1d8] sm:$0xff]
        %v3739 = vld [vmem:[%s463 + $0x1e0] sm:$0xff]
        %v3740 = vld [vmem:[%s463 + $0x1e8] sm:$0xff]
        %v3741 = vld [vmem:[%s463 + $0x1f0] sm:$0xff]
        %v3742 = vld [vmem:[%s463 + $0x1f8] sm:$0xff]
        %v3743 = vld [vmem:[%s463 + $0x200] sm:$0xff]
        %v3744 = vld [vmem:[%s463 + $0x208] sm:$0xff]
        %v3745 = vld [vmem:[%s463 + $0x210] sm:$0xff]
        %v3746 = vld [vmem:[%s463 + $0x218] sm:$0xff]
        %v3747 = vld [vmem:[%s463 + $0x220] sm:$0xff]
        %v3748 = vld [vmem:[%s463 + $0x228] sm:$0xff]
        %v3749 = vld [vmem:[%s463 + $0x230] sm:$0xff]
        %v3750 = vld [vmem:[%s463 + $0x238] sm:$0xff]
        %v3751 = vld [vmem:[%s463 + $0x240] sm:$0xff]
        %v3752 = vld [vmem:[%s463 + $0x248] sm:$0xff]
        %v3753 = vld [vmem:[%s463 + $0x250] sm:$0xff]
        %v3754 = vld [vmem:[%s463 + $0x258] sm:$0xff]
        %v3755 = vld [vmem:[%s463 + $0x260] sm:$0xff]
        %v3756 = vld [vmem:[%s463 + $0x268] sm:$0xff]
        %v3757 = vld [vmem:[%s463 + $0x270] sm:$0xff]
        %v3758 = vld [vmem:[%s463 + $0x278] sm:$0xff]
        %v3759 = vld [vmem:[%s463 + $0x280] sm:$0xff]
        %v3760 = vld [vmem:[%s463 + $0x288] sm:$0xff]
        %v3761 = vld [vmem:[%s463 + $0x290] sm:$0xff]
        %v3762 = vld [vmem:[%s463 + $0x298] sm:$0xff]
        %v3763 = vld [vmem:[%s463 + $0x2a0] sm:$0xff]
        %v3764 = vld [vmem:[%s463 + $0x2a8] sm:$0xff]
        %v3765 = vld [vmem:[%s463 + $0x2b0] sm:$0xff]
        %v3766 = vld [vmem:[%s463 + $0x2b8] sm:$0xff]
        %v3767 = vld [vmem:[%s463 + $0x2c0] sm:$0xff]
        %v3768 = vld [vmem:[%s463 + $0x2c8] sm:$0xff]
        %v3769 = vld [vmem:[%s463 + $0x2d0] sm:$0xff]
        %v3770 = vld [vmem:[%s463 + $0x2d8] sm:$0xff]
        %v3771 = vld [vmem:[%s463 + $0x2e0] sm:$0xff]
        %v3772 = vld [vmem:[%s463 + $0x2e8] sm:$0xff]
        %v3773 = vld [vmem:[%s463 + $0x2f0] sm:$0xff]
        %v3774 = vld [vmem:[%s463 + $0x2f8] sm:$0xff]
        %v3775 = vld [vmem:[%s463 + $0x300] sm:$0xff]
        %v3776 = vld [vmem:[%s463 + $0x308] sm:$0xff]
        %v3777 = vld [vmem:[%s463 + $0x310] sm:$0xff]
        %v3778 = vld [vmem:[%s463 + $0x318] sm:$0xff]
        %v3779 = vld [vmem:[%s463 + $0x320] sm:$0xff]
        %v3780 = vld [vmem:[%s463 + $0x328] sm:$0xff]
        %v3781 = vld [vmem:[%s463 + $0x330] sm:$0xff]
        %v3782 = vld [vmem:[%s463 + $0x338] sm:$0xff]
        %v3783 = vld [vmem:[%s463 + $0x340] sm:$0xff]
        %v3784 = vld [vmem:[%s463 + $0x348] sm:$0xff]
        %v3785 = vld [vmem:[%s463 + $0x350] sm:$0xff]
        %v3786 = vld [vmem:[%s463 + $0x358] sm:$0xff]
        %v3787 = vld [vmem:[%s463 + $0x360] sm:$0xff]
        %v3788 = vld [vmem:[%s463 + $0x368] sm:$0xff]
        %v3789 = vld [vmem:[%s463 + $0x370] sm:$0xff]
        %v3790 = vld [vmem:[%s463 + $0x378] sm:$0xff]
        %v3791 = vld [vmem:[%s463 + $0x380] sm:$0xff]
        %v3792 = vld [vmem:[%s463 + $0x388] sm:$0xff]
        %v3793 = vld [vmem:[%s463 + $0x390] sm:$0xff]
        %v3794 = vld [vmem:[%s463 + $0x398] sm:$0xff]
        %v3795 = vld [vmem:[%s463 + $0x3a0] sm:$0xff]
        %v3796 = vld [vmem:[%s463 + $0x3a8] sm:$0xff]
        %v3797 = vld [vmem:[%s463 + $0x3b0] sm:$0xff]
        %v3798 = vld [vmem:[%s463 + $0x3b8] sm:$0xff]
        %v3799 = vld [vmem:[%s463 + $0x3c0] sm:$0xff]
        %v3800 = vld [vmem:[%s463 + $0x3c8] sm:$0xff]
        %v3801 = vld [vmem:[%s463 + $0x3d0] sm:$0xff]
        %v3802 = vld [vmem:[%s463 + $0x3d8] sm:$0xff]
        %v3803 = vld [vmem:[%s463 + $0x3e0] sm:$0xff]
        %v3804 = vld [vmem:[%s463 + $0x3e8] sm:$0xff]
        %v3805 = vld [vmem:[%s463 + $0x3f0] sm:$0xff]
        %v3806 = vld [vmem:[%s463 + $0x3f8] sm:$0xff]
        %v3807 = vld [vmem:[%s515] sm:$0xf]
        %v3809 = vperm.slane %v3807, 0
        %v3810 = vperm.slane %v3807, 1
        %v3811 = vperm.slane %v3807, 2
        %v3812 = vperm.slane %v3807, 3
        %v3945 = vunpack.c.l.b16 %v3679
        %v3946 = vunpack.c.h.b16 %v3679
        %v3947 = vunpack.c.l.b16 %v3680
        %v3948 = vunpack.c.h.b16 %v3680
        %v3949 = vunpack.c.l.b16 %v3681
        %v3950 = vunpack.c.h.b16 %v3681
        %v3951 = vunpack.c.l.b16 %v3682
        %v3952 = vunpack.c.h.b16 %v3682
        %v3953 = vunpack.c.l.b16 %v3683
        %v3954 = vunpack.c.h.b16 %v3683
        %v3955 = vunpack.c.l.b16 %v3684
        %v3956 = vunpack.c.h.b16 %v3684
        %v3957 = vunpack.c.l.b16 %v3685
        %v3958 = vunpack.c.h.b16 %v3685
        %v3959 = vunpack.c.l.b16 %v3686
        %v3960 = vunpack.c.h.b16 %v3686
        %v3961 = vunpack.c.l.b16 %v3687
        %v3962 = vunpack.c.h.b16 %v3687
        %v3963 = vunpack.c.l.b16 %v3688
        %v3964 = vunpack.c.h.b16 %v3688
        %v3965 = vunpack.c.l.b16 %v3689
        %v3966 = vunpack.c.h.b16 %v3689
        %v3967 = vunpack.c.l.b16 %v3690
        %v3968 = vunpack.c.h.b16 %v3690
        %v3969 = vunpack.c.l.b16 %v3691
        %v3970 = vunpack.c.h.b16 %v3691
        %v3971 = vunpack.c.l.b16 %v3692
        %v3972 = vunpack.c.h.b16 %v3692
        %v3973 = vunpack.c.l.b16 %v3693
        %v3974 = vunpack.c.h.b16 %v3693
        %v3975 = vunpack.c.l.b16 %v3694
        %v3976 = vunpack.c.h.b16 %v3694
        %v3977 = vunpack.c.l.b16 %v3695
        %v3978 = vunpack.c.h.b16 %v3695
        %v3979 = vunpack.c.l.b16 %v3696
        %v3980 = vunpack.c.h.b16 %v3696
        %v3981 = vunpack.c.l.b16 %v3697
        %v3982 = vunpack.c.h.b16 %v3697
        %v3983 = vunpack.c.l.b16 %v3698
        %v3984 = vunpack.c.h.b16 %v3698
        %v3985 = vunpack.c.l.b16 %v3699
        %v3986 = vunpack.c.h.b16 %v3699
        %v3987 = vunpack.c.l.b16 %v3700
        %v3988 = vunpack.c.h.b16 %v3700
        %v3989 = vunpack.c.l.b16 %v3701
        %v3990 = vunpack.c.h.b16 %v3701
        %v3991 = vunpack.c.l.b16 %v3702
        %v3992 = vunpack.c.h.b16 %v3702
        %v3993 = vunpack.c.l.b16 %v3703
        %v3994 = vunpack.c.h.b16 %v3703
        %v3995 = vunpack.c.l.b16 %v3704
        %v3996 = vunpack.c.h.b16 %v3704
        %v3997 = vunpack.c.l.b16 %v3705
        %v3998 = vunpack.c.h.b16 %v3705
        %v3999 = vunpack.c.l.b16 %v3706
        %v4000 = vunpack.c.h.b16 %v3706
        %v4001 = vunpack.c.l.b16 %v3707
        %v4002 = vunpack.c.h.b16 %v3707
        %v4003 = vunpack.c.l.b16 %v3708
        %v4004 = vunpack.c.h.b16 %v3708
        %v4005 = vunpack.c.l.b16 %v3709
        %v4006 = vunpack.c.h.b16 %v3709
        %v4007 = vunpack.c.l.b16 %v3710
        %v4008 = vunpack.c.h.b16 %v3710
        %v4009 = vunpack.c.l.b16 %v3711
        %v4010 = vunpack.c.h.b16 %v3711
        %v4011 = vunpack.c.l.b16 %v3712
        %v4012 = vunpack.c.h.b16 %v3712
        %v4013 = vunpack.c.l.b16 %v3713
        %v4014 = vunpack.c.h.b16 %v3713
        %v4015 = vunpack.c.l.b16 %v3714
        %v4016 = vunpack.c.h.b16 %v3714
        %v4017 = vunpack.c.l.b16 %v3715
        %v4018 = vunpack.c.h.b16 %v3715
        %v4019 = vunpack.c.l.b16 %v3716
        %v4020 = vunpack.c.h.b16 %v3716
        %v4021 = vunpack.c.l.b16 %v3717
        %v4022 = vunpack.c.h.b16 %v3717
        %v4023 = vunpack.c.l.b16 %v3718
        %v4024 = vunpack.c.h.b16 %v3718
        %v4025 = vunpack.c.l.b16 %v3719
        %v4026 = vunpack.c.h.b16 %v3719
        %v4027 = vunpack.c.l.b16 %v3720
        %v4028 = vunpack.c.h.b16 %v3720
        %v4029 = vunpack.c.l.b16 %v3721
        %v4030 = vunpack.c.h.b16 %v3721
        %v4031 = vunpack.c.l.b16 %v3722
        %v4032 = vunpack.c.h.b16 %v3722
        %v4033 = vunpack.c.l.b16 %v3723
        %v4034 = vunpack.c.h.b16 %v3723
        %v4035 = vunpack.c.l.b16 %v3724
        %v4036 = vunpack.c.h.b16 %v3724
        %v4037 = vunpack.c.l.b16 %v3725
        %v4038 = vunpack.c.h.b16 %v3725
        %v4039 = vunpack.c.l.b16 %v3726
        %v4040 = vunpack.c.h.b16 %v3726
        %v4041 = vunpack.c.l.b16 %v3727
        %v4042 = vunpack.c.h.b16 %v3727
        %v4043 = vunpack.c.l.b16 %v3728
        %v4044 = vunpack.c.h.b16 %v3728
        %v4045 = vunpack.c.l.b16 %v3729
        %v4046 = vunpack.c.h.b16 %v3729
        %v4047 = vunpack.c.l.b16 %v3730
        %v4048 = vunpack.c.h.b16 %v3730
        %v4049 = vunpack.c.l.b16 %v3731
        %v4050 = vunpack.c.h.b16 %v3731
        %v4051 = vunpack.c.l.b16 %v3732
        %v4052 = vunpack.c.h.b16 %v3732
        %v4053 = vunpack.c.l.b16 %v3733
        %v4054 = vunpack.c.h.b16 %v3733
        %v4055 = vunpack.c.l.b16 %v3734
        %v4056 = vunpack.c.h.b16 %v3734
        %v4057 = vunpack.c.l.b16 %v3735
        %v4058 = vunpack.c.h.b16 %v3735
        %v4059 = vunpack.c.l.b16 %v3736
        %v4060 = vunpack.c.h.b16 %v3736
        %v4061 = vunpack.c.l.b16 %v3737
        %v4062 = vunpack.c.h.b16 %v3737
        %v4063 = vunpack.c.l.b16 %v3738
        %v4064 = vunpack.c.h.b16 %v3738
        %v4065 = vunpack.c.l.b16 %v3739
        %v4066 = vunpack.c.h.b16 %v3739
        %v4067 = vunpack.c.l.b16 %v3740
        %v4068 = vunpack.c.h.b16 %v3740
        %v4069 = vunpack.c.l.b16 %v3741
        %v4070 = vunpack.c.h.b16 %v3741
        %v4071 = vunpack.c.l.b16 %v3742
        %v4072 = vunpack.c.h.b16 %v3742
        %v4073 = vunpack.c.l.b16 %v3743
        %v4074 = vunpack.c.h.b16 %v3743
        %v4075 = vunpack.c.l.b16 %v3744
        %v4076 = vunpack.c.h.b16 %v3744
        %v4077 = vunpack.c.l.b16 %v3745
        %v4078 = vunpack.c.h.b16 %v3745
        %v4079 = vunpack.c.l.b16 %v3746
        %v4080 = vunpack.c.h.b16 %v3746
        %v4081 = vunpack.c.l.b16 %v3747
        %v4082 = vunpack.c.h.b16 %v3747
        %v4083 = vunpack.c.l.b16 %v3748
        %v4084 = vunpack.c.h.b16 %v3748
        %v4085 = vunpack.c.l.b16 %v3749
        %v4086 = vunpack.c.h.b16 %v3749
        %v4087 = vunpack.c.l.b16 %v3750
        %v4088 = vunpack.c.h.b16 %v3750
        %v4089 = vunpack.c.l.b16 %v3751
        %v4090 = vunpack.c.h.b16 %v3751
        %v4091 = vunpack.c.l.b16 %v3752
        %v4092 = vunpack.c.h.b16 %v3752
        %v4093 = vunpack.c.l.b16 %v3753
        %v4094 = vunpack.c.h.b16 %v3753
        %v4095 = vunpack.c.l.b16 %v3754
        %v4096 = vunpack.c.h.b16 %v3754
        %v4097 = vunpack.c.l.b16 %v3755
        %v4098 = vunpack.c.h.b16 %v3755
        %v4099 = vunpack.c.l.b16 %v3756
        %v4100 = vunpack.c.h.b16 %v3756
        %v4101 = vunpack.c.l.b16 %v3757
        %v4102 = vunpack.c.h.b16 %v3757
        %v4103 = vunpack.c.l.b16 %v3758
        %v4104 = vunpack.c.h.b16 %v3758
        %v4105 = vunpack.c.l.b16 %v3759
        %v4106 = vunpack.c.h.b16 %v3759
        %v4107 = vunpack.c.l.b16 %v3760
        %v4108 = vunpack.c.h.b16 %v3760
        %v4109 = vunpack.c.l.b16 %v3761
        %v4110 = vunpack.c.h.b16 %v3761
        %v4111 = vunpack.c.l.b16 %v3762
        %v4112 = vunpack.c.h.b16 %v3762
        %v4113 = vunpack.c.l.b16 %v3763
        %v4114 = vunpack.c.h.b16 %v3763
        %v4115 = vunpack.c.l.b16 %v3764
        %v4116 = vunpack.c.h.b16 %v3764
        %v4117 = vunpack.c.l.b16 %v3765
        %v4118 = vunpack.c.h.b16 %v3765
        %v4119 = vunpack.c.l.b16 %v3766
        %v4120 = vunpack.c.h.b16 %v3766
        %v4121 = vunpack.c.l.b16 %v3767
        %v4122 = vunpack.c.h.b16 %v3767
        %v4123 = vunpack.c.l.b16 %v3768
        %v4124 = vunpack.c.h.b16 %v3768
        %v4125 = vunpack.c.l.b16 %v3769
        %v4126 = vunpack.c.h.b16 %v3769
        %v4127 = vunpack.c.l.b16 %v3770
        %v4128 = vunpack.c.h.b16 %v3770
        %v4129 = vunpack.c.l.b16 %v3771
        %v4130 = vunpack.c.h.b16 %v3771
        %v4131 = vunpack.c.l.b16 %v3772
        %v4132 = vunpack.c.h.b16 %v3772
        %v4133 = vunpack.c.l.b16 %v3773
        %v4134 = vunpack.c.h.b16 %v3773
        %v4135 = vunpack.c.l.b16 %v3774
        %v4136 = vunpack.c.h.b16 %v3774
        %v4137 = vunpack.c.l.b16 %v3775
        %v4138 = vunpack.c.h.b16 %v3775
        %v4139 = vunpack.c.l.b16 %v3776
        %v4140 = vunpack.c.h.b16 %v3776
        %v4141 = vunpack.c.l.b16 %v3777
        %v4142 = vunpack.c.h.b16 %v3777
        %v4143 = vunpack.c.l.b16 %v3778
        %v4144 = vunpack.c.h.b16 %v3778
        %v4145 = vunpack.c.l.b16 %v3779
        %v4146 = vunpack.c.h.b16 %v3779
        %v4147 = vunpack.c.l.b16 %v3780
        %v4148 = vunpack.c.h.b16 %v3780
        %v4149 = vunpack.c.l.b16 %v3781
        %v4150 = vunpack.c.h.b16 %v3781
        %v4151 = vunpack.c.l.b16 %v3782
        %v4152 = vunpack.c.h.b16 %v3782
        %v4153 = vunpack.c.l.b16 %v3783
        %v4154 = vunpack.c.h.b16 %v3783
        %v4155 = vunpack.c.l.b16 %v3784
        %v4156 = vunpack.c.h.b16 %v3784
        %v4157 = vunpack.c.l.b16 %v3785
        %v4158 = vunpack.c.h.b16 %v3785
        %v4159 = vunpack.c.l.b16 %v3786
        %v4160 = vunpack.c.h.b16 %v3786
        %v4161 = vunpack.c.l.b16 %v3787
        %v4162 = vunpack.c.h.b16 %v3787
        %v4163 = vunpack.c.l.b16 %v3788
        %v4164 = vunpack.c.h.b16 %v3788
        %v4165 = vunpack.c.l.b16 %v3789
        %v4166 = vunpack.c.h.b16 %v3789
        %v4167 = vunpack.c.l.b16 %v3790
        %v4168 = vunpack.c.h.b16 %v3790
        %v4169 = vunpack.c.l.b16 %v3791
        %v4170 = vunpack.c.h.b16 %v3791
        %v4171 = vunpack.c.l.b16 %v3792
        %v4172 = vunpack.c.h.b16 %v3792
        %v4173 = vunpack.c.l.b16 %v3793
        %v4174 = vunpack.c.h.b16 %v3793
        %v4175 = vunpack.c.l.b16 %v3794
        %v4176 = vunpack.c.h.b16 %v3794
        %v4177 = vunpack.c.l.b16 %v3795
        %v4178 = vunpack.c.h.b16 %v3795
        %v4179 = vunpack.c.l.b16 %v3796
        %v4180 = vunpack.c.h.b16 %v3796
        %v4181 = vunpack.c.l.b16 %v3797
        %v4182 = vunpack.c.h.b16 %v3797
        %v4183 = vunpack.c.l.b16 %v3798
        %v4184 = vunpack.c.h.b16 %v3798
        %v4185 = vunpack.c.l.b16 %v3799
        %v4186 = vunpack.c.h.b16 %v3799
        %v4187 = vunpack.c.l.b16 %v3800
        %v4188 = vunpack.c.h.b16 %v3800
        %v4189 = vunpack.c.l.b16 %v3801
        %v4190 = vunpack.c.h.b16 %v3801
        %v4191 = vunpack.c.l.b16 %v3802
        %v4192 = vunpack.c.h.b16 %v3802
        %v4193 = vunpack.c.l.b16 %v3803
        %v4194 = vunpack.c.h.b16 %v3803
        %v4195 = vunpack.c.l.b16 %v3804
        %v4196 = vunpack.c.h.b16 %v3804
        %v4197 = vunpack.c.l.b16 %v3805
        %v4198 = vunpack.c.h.b16 %v3805
        %v4199 = vunpack.c.l.b16 %v3806
        %v4200 = vunpack.c.h.b16 %v3806
        %v4201 = vpack.c.b16 %v3949, %v3945
        %v4202 = vpack.c.b16 %v3950, %v3946
        %v4203 = vpack.c.b16 %v3951, %v3947
        %v4204 = vpack.c.b16 %v3952, %v3948
        %v4205 = vpack.c.b16 %v3957, %v3953
        %v4206 = vpack.c.b16 %v3958, %v3954
        %v4207 = vpack.c.b16 %v3959, %v3955
        %v4208 = vpack.c.b16 %v3960, %v3956
        %v4209 = vpack.c.b16 %v3965, %v3961
        %v4210 = vpack.c.b16 %v3966, %v3962
        %v4211 = vpack.c.b16 %v3967, %v3963
        %v4212 = vpack.c.b16 %v3968, %v3964
        %v4213 = vpack.c.b16 %v3973, %v3969
        %v4214 = vpack.c.b16 %v3974, %v3970
        %v4215 = vpack.c.b16 %v3975, %v3971
        %v4216 = vpack.c.b16 %v3976, %v3972
        %v4217 = vpack.c.b16 %v3981, %v3977
        %v4218 = vpack.c.b16 %v3982, %v3978
        %v4219 = vpack.c.b16 %v3983, %v3979
        %v4220 = vpack.c.b16 %v3984, %v3980
        %v4221 = vpack.c.b16 %v3989, %v3985
        %v4222 = vpack.c.b16 %v3990, %v3986
        %v4223 = vpack.c.b16 %v3991, %v3987
        %v4224 = vpack.c.b16 %v3992, %v3988
        %v4225 = vpack.c.b16 %v3997, %v3993
        %v4226 = vpack.c.b16 %v3998, %v3994
        %v4227 = vpack.c.b16 %v3999, %v3995
        %v4228 = vpack.c.b16 %v4000, %v3996
        %v4229 = vpack.c.b16 %v4005, %v4001
        %v4230 = vpack.c.b16 %v4006, %v4002
        %v4231 = vpack.c.b16 %v4007, %v4003
        %v4232 = vpack.c.b16 %v4008, %v4004
        %v4233 = vpack.c.b16 %v4013, %v4009
        %v4234 = vpack.c.b16 %v4014, %v4010
        %v4235 = vpack.c.b16 %v4015, %v4011
        %v4236 = vpack.c.b16 %v4016, %v4012
        %v4237 = vpack.c.b16 %v4021, %v4017
        %v4238 = vpack.c.b16 %v4022, %v4018
        %v4239 = vpack.c.b16 %v4023, %v4019
        %v4240 = vpack.c.b16 %v4024, %v4020
        %v4241 = vpack.c.b16 %v4029, %v4025
        %v4242 = vpack.c.b16 %v4030, %v4026
        %v4243 = vpack.c.b16 %v4031, %v4027
        %v4244 = vpack.c.b16 %v4032, %v4028
        %v4245 = vpack.c.b16 %v4037, %v4033
        %v4246 = vpack.c.b16 %v4038, %v4034
        %v4247 = vpack.c.b16 %v4039, %v4035
        %v4248 = vpack.c.b16 %v4040, %v4036
        %v4249 = vpack.c.b16 %v4045, %v4041
        %v4250 = vpack.c.b16 %v4046, %v4042
        %v4251 = vpack.c.b16 %v4047, %v4043
        %v4252 = vpack.c.b16 %v4048, %v4044
        %v4253 = vpack.c.b16 %v4053, %v4049
        %v4254 = vpack.c.b16 %v4054, %v4050
        %v4255 = vpack.c.b16 %v4055, %v4051
        %v4256 = vpack.c.b16 %v4056, %v4052
        %v4257 = vpack.c.b16 %v4061, %v4057
        %v4258 = vpack.c.b16 %v4062, %v4058
        %v4259 = vpack.c.b16 %v4063, %v4059
        %v4260 = vpack.c.b16 %v4064, %v4060
        %v4261 = vpack.c.b16 %v4069, %v4065
        %v4262 = vpack.c.b16 %v4070, %v4066
        %v4263 = vpack.c.b16 %v4071, %v4067
        %v4264 = vpack.c.b16 %v4072, %v4068
        %v4265 = vpack.c.b16 %v4077, %v4073
        %v4266 = vpack.c.b16 %v4078, %v4074
        %v4267 = vpack.c.b16 %v4079, %v4075
        %v4268 = vpack.c.b16 %v4080, %v4076
        %v4269 = vpack.c.b16 %v4085, %v4081
        %v4270 = vpack.c.b16 %v4086, %v4082
        %v4271 = vpack.c.b16 %v4087, %v4083
        %v4272 = vpack.c.b16 %v4088, %v4084
        %v4273 = vpack.c.b16 %v4093, %v4089
        %v4274 = vpack.c.b16 %v4094, %v4090
        %v4275 = vpack.c.b16 %v4095, %v4091
        %v4276 = vpack.c.b16 %v4096, %v4092
        %v4277 = vpack.c.b16 %v4101, %v4097
        %v4278 = vpack.c.b16 %v4102, %v4098
        %v4279 = vpack.c.b16 %v4103, %v4099
        %v4280 = vpack.c.b16 %v4104, %v4100
        %v4281 = vpack.c.b16 %v4109, %v4105
        %v4282 = vpack.c.b16 %v4110, %v4106
        %v4283 = vpack.c.b16 %v4111, %v4107
        %v4284 = vpack.c.b16 %v4112, %v4108
        %v4285 = vpack.c.b16 %v4117, %v4113
        %v4286 = vpack.c.b16 %v4118, %v4114
        %v4287 = vpack.c.b16 %v4119, %v4115
        %v4288 = vpack.c.b16 %v4120, %v4116
        %v4289 = vpack.c.b16 %v4125, %v4121
        %v4290 = vpack.c.b16 %v4126, %v4122
        %v4291 = vpack.c.b16 %v4127, %v4123
        %v4292 = vpack.c.b16 %v4128, %v4124
        %v4293 = vpack.c.b16 %v4133, %v4129
        %v4294 = vpack.c.b16 %v4134, %v4130
        %v4295 = vpack.c.b16 %v4135, %v4131
        %v4296 = vpack.c.b16 %v4136, %v4132
        %v4297 = vpack.c.b16 %v4141, %v4137
        %v4298 = vpack.c.b16 %v4142, %v4138
        %v4299 = vpack.c.b16 %v4143, %v4139
        %v4300 = vpack.c.b16 %v4144, %v4140
        %v4301 = vpack.c.b16 %v4149, %v4145
        %v4302 = vpack.c.b16 %v4150, %v4146
        %v4303 = vpack.c.b16 %v4151, %v4147
        %v4304 = vpack.c.b16 %v4152, %v4148
        %v4305 = vpack.c.b16 %v4157, %v4153
        %v4306 = vpack.c.b16 %v4158, %v4154
        %v4307 = vpack.c.b16 %v4159, %v4155
        %v4308 = vpack.c.b16 %v4160, %v4156
        %v4309 = vpack.c.b16 %v4165, %v4161
        %v4310 = vpack.c.b16 %v4166, %v4162
        %v4311 = vpack.c.b16 %v4167, %v4163
        %v4312 = vpack.c.b16 %v4168, %v4164
        %v4313 = vpack.c.b16 %v4173, %v4169
        %v4314 = vpack.c.b16 %v4174, %v4170
        %v4315 = vpack.c.b16 %v4175, %v4171
        %v4316 = vpack.c.b16 %v4176, %v4172
        %v4317 = vpack.c.b16 %v4181, %v4177
        %v4318 = vpack.c.b16 %v4182, %v4178
        %v4319 = vpack.c.b16 %v4183, %v4179
        %v4320 = vpack.c.b16 %v4184, %v4180
        %v4321 = vpack.c.b16 %v4189, %v4185
        %v4322 = vpack.c.b16 %v4190, %v4186
        %v4323 = vpack.c.b16 %v4191, %v4187
        %v4324 = vpack.c.b16 %v4192, %v4188
        %v4325 = vpack.c.b16 %v4197, %v4193
        %v4326 = vpack.c.b16 %v4198, %v4194
        %v4327 = vpack.c.b16 %v4199, %v4195
        %v4328 = vpack.c.b16 %v4200, %v4196
        %4457 = vmatpush.bf16.msra.mxu0 %v4229
        %4458 = vmatpush.bf16.msra.mxu0 %v4225
        %4459 = vmatpush.bf16.msra.mxu0 %v4221
        %4460 = vmatpush.bf16.msra.mxu0 %v4217
        %4461 = vmatpush.bf16.msra.mxu0 %v4213
        %4462 = vmatpush.bf16.msra.mxu0 %v4209
        %4463 = vmatpush.bf16.msra.mxu0 %v4205
        %4464 = vmatpush.bf16.msra.mxu0 %v4201
        %4465 = vmatmul.bf16.gmra.mxu0 %v3675
        %v4466 = vpop.f32.mrf.mxu0
        %v4467 = vadd.f32 %v3809, %v4466
        %v4468 = vpop.f32.mrf.mxu0
        %4469 = vdwg.mxu0
        %4470 = vmatpush.bf16.msra.mxu0 %v4261
        %4471 = vmatpush.bf16.msra.mxu0 %v4257
        %4472 = vmatpush.bf16.msra.mxu0 %v4253
        %4473 = vmatpush.bf16.msra.mxu0 %v4249
        %4474 = vmatpush.bf16.msra.mxu0 %v4245
        %4475 = vmatpush.bf16.msra.mxu0 %v4241
        %4476 = vmatpush.bf16.msra.mxu0 %v4237
        %4477 = vmatpush.bf16.msra.mxu0 %v4233
        %4478 = vmatmul.bf16.gmra.mxu0 %v3676
        %v4479 = vpop.f32.mrf.mxu0
        %v4480 = vadd.f32 %v4467, %v4479
        %v4481 = vpop.f32.mrf.mxu0
        %4482 = vdwg.mxu0
        %4483 = vmatpush.bf16.msra.mxu0 %v4293
        %4484 = vmatpush.bf16.msra.mxu0 %v4289
        %4485 = vmatpush.bf16.msra.mxu0 %v4285
        %4486 = vmatpush.bf16.msra.mxu0 %v4281
        %4487 = vmatpush.bf16.msra.mxu0 %v4277
        %4488 = vmatpush.bf16.msra.mxu0 %v4273
        %4489 = vmatpush.bf16.msra.mxu0 %v4269
        %4490 = vmatpush.bf16.msra.mxu0 %v4265
        %4491 = vmatmul.bf16.gmra.mxu0 %v3677
        %v4492 = vpop.f32.mrf.mxu0
        %v4493 = vadd.f32 %v4480, %v4492
        %v4494 = vpop.f32.mrf.mxu0
        %4495 = vdwg.mxu0
        %4496 = vmatpush.bf16.msra.mxu0 %v4325
        %4497 = vmatpush.bf16.msra.mxu0 %v4321
        %4498 = vmatpush.bf16.msra.mxu0 %v4317
        %4499 = vmatpush.bf16.msra.mxu0 %v4313
        %4500 = vmatpush.bf16.msra.mxu0 %v4309
        %4501 = vmatpush.bf16.msra.mxu0 %v4305
        %4502 = vmatpush.bf16.msra.mxu0 %v4301
        %4503 = vmatpush.bf16.msra.mxu0 %v4297
        %4504 = vmatmul.bf16.gmra.mxu0 %v3678
        %v4505 = vpop.f32.mrf.mxu0
        %v4506 = vadd.f32 %v4493, %v4505
        %v4507 = vpop.f32.mrf.mxu0
        %4508 = vdwg.mxu0
        %4509 = vmatpush.bf16.msra.mxu0 %v4230
        %4510 = vmatpush.bf16.msra.mxu0 %v4226
        %4511 = vmatpush.bf16.msra.mxu0 %v4222
        %4512 = vmatpush.bf16.msra.mxu0 %v4218
        %4513 = vmatpush.bf16.msra.mxu0 %v4214
        %4514 = vmatpush.bf16.msra.mxu0 %v4210
        %4515 = vmatpush.bf16.msra.mxu0 %v4206
        %4516 = vmatpush.bf16.msra.mxu0 %v4202
        %4517 = vmatmul.bf16.gmra.mxu0 %v3675
        %v4518 = vpop.f32.mrf.mxu0
        %v4519 = vadd.f32 %v3810, %v4518
        %v4520 = vpop.f32.mrf.mxu0
        %4521 = vdwg.mxu0
        %4522 = vmatpush.bf16.msra.mxu0 %v4262
        %4523 = vmatpush.bf16.msra.mxu0 %v4258
        %4524 = vmatpush.bf16.msra.mxu0 %v4254
        %4525 = vmatpush.bf16.msra.mxu0 %v4250
        %4526 = vmatpush.bf16.msra.mxu0 %v4246
        %4527 = vmatpush.bf16.msra.mxu0 %v4242
        %4528 = vmatpush.bf16.msra.mxu0 %v4238
        %4529 = vmatpush.bf16.msra.mxu0 %v4234
        %4530 = vmatmul.bf16.gmra.mxu0 %v3676
        %v4531 = vpop.f32.mrf.mxu0
        %v4532 = vadd.f32 %v4519, %v4531
        %v4533 = vpop.f32.mrf.mxu0
        %4534 = vdwg.mxu0
        %4535 = vmatpush.bf16.msra.mxu0 %v4294
        %4536 = vmatpush.bf16.msra.mxu0 %v4290
        %4537 = vmatpush.bf16.msra.mxu0 %v4286
        %4538 = vmatpush.bf16.msra.mxu0 %v4282
        %4539 = vmatpush.bf16.msra.mxu0 %v4278
        %4540 = vmatpush.bf16.msra.mxu0 %v4274
        %4541 = vmatpush.bf16.msra.mxu0 %v4270
        %4542 = vmatpush.bf16.msra.mxu0 %v4266
        %4543 = vmatmul.bf16.gmra.mxu0 %v3677
        %v4544 = vpop.f32.mrf.mxu0
        %v4545 = vadd.f32 %v4532, %v4544
        %v4546 = vpop.f32.mrf.mxu0
        %4547 = vdwg.mxu0
        %4548 = vmatpush.bf16.msra.mxu0 %v4326
        %4549 = vmatpush.bf16.msra.mxu0 %v4322
        %4550 = vmatpush.bf16.msra.mxu0 %v4318
        %4551 = vmatpush.bf16.msra.mxu0 %v4314
        %4552 = vmatpush.bf16.msra.mxu0 %v4310
        %4553 = vmatpush.bf16.msra.mxu0 %v4306
        %4554 = vmatpush.bf16.msra.mxu0 %v4302
        %4555 = vmatpush.bf16.msra.mxu0 %v4298
        %4556 = vmatmul.bf16.gmra.mxu0 %v3678
        %v4557 = vpop.f32.mrf.mxu0
        %v4558 = vadd.f32 %v4545, %v4557
        %v4559 = vpop.f32.mrf.mxu0
        %4560 = vdwg.mxu0
        %4561 = vmatpush.bf16.msra.mxu0 %v4231
        %4562 = vmatpush.bf16.msra.mxu0 %v4227
        %4563 = vmatpush.bf16.msra.mxu0 %v4223
        %4564 = vmatpush.bf16.msra.mxu0 %v4219
        %4565 = vmatpush.bf16.msra.mxu0 %v4215
        %4566 = vmatpush.bf16.msra.mxu0 %v4211
        %4567 = vmatpush.bf16.msra.mxu0 %v4207
        %4568 = vmatpush.bf16.msra.mxu0 %v4203
        %4569 = vmatmul.bf16.gmra.mxu0 %v3675
        %v4570 = vpop.f32.mrf.mxu0
        %v4571 = vadd.f32 %v3811, %v4570
        %v4572 = vpop.f32.mrf.mxu0
        %4573 = vdwg.mxu0
        %4574 = vmatpush.bf16.msra.mxu0 %v4263
        %4575 = vmatpush.bf16.msra.mxu0 %v4259
        %4576 = vmatpush.bf16.msra.mxu0 %v4255
        %4577 = vmatpush.bf16.msra.mxu0 %v4251
        %4578 = vmatpush.bf16.msra.mxu0 %v4247
        %4579 = vmatpush.bf16.msra.mxu0 %v4243
        %4580 = vmatpush.bf16.msra.mxu0 %v4239
        %4581 = vmatpush.bf16.msra.mxu0 %v4235
        %4582 = vmatmul.bf16.gmra.mxu0 %v3676
        %v4583 = vpop.f32.mrf.mxu0
        %v4584 = vadd.f32 %v4571, %v4583
        %v4585 = vpop.f32.mrf.mxu0
        %4586 = vdwg.mxu0
        %4587 = vmatpush.bf16.msra.mxu0 %v4295
        %4588 = vmatpush.bf16.msra.mxu0 %v4291
        %4589 = vmatpush.bf16.msra.mxu0 %v4287
        %4590 = vmatpush.bf16.msra.mxu0 %v4283
        %4591 = vmatpush.bf16.msra.mxu0 %v4279
        %4592 = vmatpush.bf16.msra.mxu0 %v4275
        %4593 = vmatpush.bf16.msra.mxu0 %v4271
        %4594 = vmatpush.bf16.msra.mxu0 %v4267
        %4595 = vmatmul.bf16.gmra.mxu0 %v3677
        %v4596 = vpop.f32.mrf.mxu0
        %v4597 = vadd.f32 %v4584, %v4596
        %v4598 = vpop.f32.mrf.mxu0
        %4599 = vdwg.mxu0
        %4600 = vmatpush.bf16.msra.mxu0 %v4327
        %4601 = vmatpush.bf16.msra.mxu0 %v4323
        %4602 = vmatpush.bf16.msra.mxu0 %v4319
        %4603 = vmatpush.bf16.msra.mxu0 %v4315
        %4604 = vmatpush.bf16.msra.mxu0 %v4311
        %4605 = vmatpush.bf16.msra.mxu0 %v4307
        %4606 = vmatpush.bf16.msra.mxu0 %v4303
        %4607 = vmatpush.bf16.msra.mxu0 %v4299
        %4608 = vmatmul.bf16.gmra.mxu0 %v3678
        %v4609 = vpop.f32.mrf.mxu0
        %v4610 = vadd.f32 %v4597, %v4609
        %v4611 = vpop.f32.mrf.mxu0
        %4612 = vdwg.mxu0
        %4613 = vmatpush.bf16.msra.mxu0 %v4232
        %4614 = vmatpush.bf16.msra.mxu0 %v4228
        %4615 = vmatpush.bf16.msra.mxu0 %v4224
        %4616 = vmatpush.bf16.msra.mxu0 %v4220
        %4617 = vmatpush.bf16.msra.mxu0 %v4216
        %4618 = vmatpush.bf16.msra.mxu0 %v4212
        %4619 = vmatpush.bf16.msra.mxu0 %v4208
        %4620 = vmatpush.bf16.msra.mxu0 %v4204
        %4621 = vmatmul.bf16.gmra.mxu0 %v3675
        %v4622 = vpop.f32.mrf.mxu0
        %v4623 = vadd.f32 %v3812, %v4622
        %v4624 = vpop.f32.mrf.mxu0
        %4625 = vdwg.mxu0
        %4626 = vmatpush.bf16.msra.mxu0 %v4264
        %4627 = vmatpush.bf16.msra.mxu0 %v4260
        %4628 = vmatpush.bf16.msra.mxu0 %v4256
        %4629 = vmatpush.bf16.msra.mxu0 %v4252
        %4630 = vmatpush.bf16.msra.mxu0 %v4248
        %4631 = vmatpush.bf16.msra.mxu0 %v4244
        %4632 = vmatpush.bf16.msra.mxu0 %v4240
        %4633 = vmatpush.bf16.msra.mxu0 %v4236
        %4634 = vmatmul.bf16.gmra.mxu0 %v3676
        %v4635 = vpop.f32.mrf.mxu0
        %v4636 = vadd.f32 %v4623, %v4635
        %v4637 = vpop.f32.mrf.mxu0
        %4638 = vdwg.mxu0
        %4639 = vmatpush.bf16.msra.mxu0 %v4296
        %4640 = vmatpush.bf16.msra.mxu0 %v4292
        %4641 = vmatpush.bf16.msra.mxu0 %v4288
        %4642 = vmatpush.bf16.msra.mxu0 %v4284
        %4643 = vmatpush.bf16.msra.mxu0 %v4280
        %4644 = vmatpush.bf16.msra.mxu0 %v4276
        %4645 = vmatpush.bf16.msra.mxu0 %v4272
        %4646 = vmatpush.bf16.msra.mxu0 %v4268
        %4647 = vmatmul.bf16.gmra.mxu0 %v3677
        %v4648 = vpop.f32.mrf.mxu0
        %v4649 = vadd.f32 %v4636, %v4648
        %v4650 = vpop.f32.mrf.mxu0
        %4651 = vdwg.mxu0
        %4652 = vmatpush.bf16.msra.mxu0 %v4328
        %4653 = vmatpush.bf16.msra.mxu0 %v4324
        %4654 = vmatpush.bf16.msra.mxu0 %v4320
        %4655 = vmatpush.bf16.msra.mxu0 %v4316
        %4656 = vmatpush.bf16.msra.mxu0 %v4312
        %4657 = vmatpush.bf16.msra.mxu0 %v4308
        %4658 = vmatpush.bf16.msra.mxu0 %v4304
        %4659 = vmatpush.bf16.msra.mxu0 %v4300
        %4660 = vmatmul.bf16.gmra.mxu0 %v3678
        %v4661 = vpop.f32.mrf.mxu0
        %v4662 = vadd.f32 %v4649, %v4661
        %v4663 = vpop.f32.mrf.mxu0
        %4664 = vdwg.mxu0
        %v4665 = vxor.u32 %v4506, 2147483648
        %v4666 = vxor.u32 %v4558, 2147483648
        %v4667 = vxor.u32 %v4610, 2147483648
        %v4668 = vxor.u32 %v4662, 2147483648
        %v4669 = vmul.f32 %v4665, 1.442695
        %v4670 = vpow.pop %v4669
        %v4671 = vmul.f32 %v4666, 1.442695
        %v4672 = vpow.pop %v4671
        %v4673 = vmul.f32 %v4667, 1.442695
        %v4674 = vpow.pop %v4673
        %v4675 = vmul.f32 %v4668, 1.442695
        %v4676 = vpow.pop %v4675
        %v4677 = vadd.f32 %v4670, 1.0
        %v4678 = vadd.f32 %v4672, 1.0
        %v4679 = vadd.f32 %v4674, 1.0
        %v4680 = vadd.f32 %v4676, 1.0
        %v4681 = vrcp.pop %v4677
        %v4682 = vmul.f32 %v4677, %v4681
        %v4683 = vsub.f32 1.0, %v4682
        %v4684 = vmul.f32 %v4681, %v4683
        %v4685 = vadd.f32 %v4681, %v4684
        %vm4686 = vweird.f32 %v4677
        %vm4687 = vweird.f32 %v4681
        %vm4688 = vmor %vm4686, %vm4687
        %v4689 = vsel %vm4688, %v4681, %v4685
        %v4690 = vand.u32 2147483647, %v4677
        %vm4691 = vcmp.eq.f32.partialorder %v4690, 8.507059e+37
        %v4692 = vand.u32 %v4677, 2147483648
        %v4693 = vor.u32 1.1754944e-38, %v4692
        %v4694 = vsel %vm4691, %v4693, %v4689
        %v4695 = vmul.f32 1.0, %v4694
        %v4696 = vrcp.pop %v4678
        %v4697 = vmul.f32 %v4678, %v4696
        %v4698 = vsub.f32 1.0, %v4697
        %v4699 = vmul.f32 %v4696, %v4698
        %v4700 = vadd.f32 %v4696, %v4699
        %vm4701 = vweird.f32 %v4678
        %vm4702 = vweird.f32 %v4696
        %vm4703 = vmor %vm4701, %vm4702
        %v4704 = vsel %vm4703, %v4696, %v4700
        %v4705 = vand.u32 2147483647, %v4678
        %vm4706 = vcmp.eq.f32.partialorder %v4705, 8.507059e+37
        %v4707 = vand.u32 %v4678, 2147483648
        %v4708 = vor.u32 1.1754944e-38, %v4707
        %v4709 = vsel %vm4706, %v4708, %v4704
        %v4710 = vmul.f32 1.0, %v4709
        %v4711 = vrcp.pop %v4679
        %v4712 = vmul.f32 %v4679, %v4711
        %v4713 = vsub.f32 1.0, %v4712
        %v4714 = vmul.f32 %v4711, %v4713
        %v4715 = vadd.f32 %v4711, %v4714
        %vm4716 = vweird.f32 %v4679
        %vm4717 = vweird.f32 %v4711
        %vm4718 = vmor %vm4716, %vm4717
        %v4719 = vsel %vm4718, %v4711, %v4715
        %v4720 = vand.u32 2147483647, %v4679
        %vm4721 = vcmp.eq.f32.partialorder %v4720, 8.507059e+37
        %v4722 = vand.u32 %v4679, 2147483648
        %v4723 = vor.u32 1.1754944e-38, %v4722
        %v4724 = vsel %vm4721, %v4723, %v4719
        %v4725 = vmul.f32 1.0, %v4724
        %v4726 = vrcp.pop %v4680
        %v4727 = vmul.f32 %v4680, %v4726
        %v4728 = vsub.f32 1.0, %v4727
        %v4729 = vmul.f32 %v4726, %v4728
        %v4730 = vadd.f32 %v4726, %v4729
        %vm4731 = vweird.f32 %v4680
        %vm4732 = vweird.f32 %v4726
        %vm4733 = vmor %vm4731, %vm4732
        %v4734 = vsel %vm4733, %v4726, %v4730
        %v4735 = vand.u32 2147483647, %v4680
        %vm4736 = vcmp.eq.f32.partialorder %v4735, 8.507059e+37
        %v4737 = vand.u32 %v4680, 2147483648
        %v4738 = vor.u32 1.1754944e-38, %v4737
        %v4739 = vsel %vm4736, %v4738, %v4734
        %v4740 = vmul.f32 1.0, %v4739
        %4741 = vst [vmem:[%s521] sm:$0xff] %v4695
        %4742 = vst [vmem:[%s521 + $0x8] sm:$0xff] %v4710
        %4743 = vst [vmem:[%s521 + $0x10] sm:$0xff] %v4725
        %4744 = vst [vmem:[%s521 + $0x18] sm:$0xff] %v4740
        %s4745 = smul.u32 4, %s30
        %p4746 = scmp.lt.s32.totalorder %s4745, 7
        %s4747 = scalar_select %p4746, %s4745, 7
        %s4748 = smul.addr %s4747, 8
        %s4749 = scalar_lea.vmem %s9, %s4748
        // Predicated region
        $region77: #{mlvae_forward.1} parent=55 // pred_check
          %p4750 = pneg %p247
        $region78: #{mlvae_forward.1} parent=55 // pred_check_branch
          %4752 = sbr.rel (%p4750) target = $region80
        $region79: #{mlvae_forward.1} parent=55 // pred_region
          %s4753 = smul.u32 4, %s30
        $region80: #{mlvae_forward.1} parent=55 // pred_fallthru
          _
        // Predicated region
        $region81: #{mlvae_forward.1} parent=55 // pred_check
          %p4754 = pneg %p268
        $region82: #{mlvae_forward.1} parent=55 // pred_check_branch
          %4756 = sbr.rel (%p4754) target = $region84
        $region83: #{mlvae_forward.1} parent=55 // pred_region
          _
        $region84: #{mlvae_forward.1} parent=55 // pred_fallthru
          _
        // Predicated region
        $region85: #{mlvae_forward.1} parent=55 // pred_check
          %p4757 = pneg %p289
        $region86: #{mlvae_forward.1} parent=55 // pred_check_branch
          %4759 = sbr.rel (%p4757) target = $region88
        $region87: #{mlvae_forward.1} parent=55 // pred_region
          _
        $region88: #{mlvae_forward.1} parent=55 // pred_fallthru
          _
        // Predicated region
        $region89: #{mlvae_forward.1} parent=55 // pred_check
          %p4760 = pneg %p310
        $region90: #{mlvae_forward.1} parent=55 // pred_check_branch
          %4762 = sbr.rel (%p4760) target = $region92
        $region91: #{mlvae_forward.1} parent=55 // pred_region
          _
        $region92: #{mlvae_forward.1} parent=55 // pred_fallthru
          _
        // Predicated region
        $region93: #{mlvae_forward.1} parent=55 // pred_check
          %p4763 = pneg %p331
        $region94: #{mlvae_forward.1} parent=55 // pred_check_branch
          %4765 = sbr.rel (%p4763) target = $region96
        $region95: #{mlvae_forward.1} parent=55 // pred_region
          _
        $region96: #{mlvae_forward.1} parent=55 // pred_fallthru
          _
        // Predicated region
        $region97: #{mlvae_forward.1} parent=55 // pred_check
          %p4766 = pneg %p268
        $region98: #{mlvae_forward.1} parent=55 // pred_check_branch
          %4768 = sbr.rel (%p4766) target = $region100
        $region99: #{mlvae_forward.1} parent=55 // pred_region
          _
        $region100: #{mlvae_forward.1} parent=55 // pred_fallthru
          _
        // Predicated region
        $region101: #{mlvae_forward.1} parent=55 // pred_check
          %p4769 = pneg %p289
        $region102: #{mlvae_forward.1} parent=55 // pred_check_branch
          %4771 = sbr.rel (%p4769) target = $region104
        $region103: #{mlvae_forward.1} parent=55 // pred_region
          _
        $region104: #{mlvae_forward.1} parent=55 // pred_fallthru
          _
        // Predicated region
        $region105: #{mlvae_forward.1} parent=55 // pred_check
          %p4772 = pneg %p310
        $region106: #{mlvae_forward.1} parent=55 // pred_check_branch
          %4774 = sbr.rel (%p4772) target = $region108
        $region107: #{mlvae_forward.1} parent=55 // pred_region
          _
        $region108: #{mlvae_forward.1} parent=55 // pred_fallthru
          _
        // Predicated region
        $region109: #{mlvae_forward.1} parent=55 // pred_check
          %p4775 = pneg %p331
        $region110: #{mlvae_forward.1} parent=55 // pred_check_branch
          %4777 = sbr.rel (%p4775) target = $region112
        $region111: #{mlvae_forward.1} parent=55 // pred_region
          _
        $region112: #{mlvae_forward.1} parent=55 // pred_fallthru
          _
      $region56: #{mlvae_forward.1} parent=5 // pred_fallthru
        _
      %p4778 = scmp.le.s32.totalorder 2, %s25
      // Predicated region
      $region113: #{mlvae_forward.1} parent=5 // pred_check
        %p4779 = pneg %p4778
      $region114: #{mlvae_forward.1} parent=5 // pred_check_branch
        %4781 = sbr.rel (%p4779) target = $region116
      $region115: #{mlvae_forward.1} parent=5 // pred_region
        %s4782 = ssub.s32 %s25, 2
        // Predicated region
        $region117: #{mlvae_forward.1} parent=115 // pred_check
          %p4783 = pneg %p253
        $region118: #{mlvae_forward.1} parent=115 // pred_check_branch
          %4785 = sbr.rel (%p4783) target = $region120
        $region119: #{mlvae_forward.1} parent=115 // pred_region
          %s4786 = smul.u32 4, %s31
          %p4787 = scmp.lt.s32.totalorder %s4786, 7
          %s4788 = scalar_select %p4787, %s4786, 7
          %s4789 = smul.addr %s4788, 8
          %s4790 = scalar_lea.vmem %s9, %s4789
        $region120: #{mlvae_forward.1} parent=115 // pred_fallthru
          _
      $region116: #{mlvae_forward.1} parent=5 // pred_fallthru
        _
    $region6: #{mlvae_forward.1} parent=1 // loop_footer
      %s29 = sadd.s32 1, %s25
    $region7: #{mlvae_forward.1} parent=1 // loop_footer_branch
      %24 = sbr.rel target = $region3
    $region8: #{mlvae_forward.1} parent=1 // loop_exit
      _
    %4791 = vsyncpa [#allocation4], 1
    %s4792 = scalar_lea.sflag [#allocation4], 1
    %4793 = vsyncpa %s4792, 1
    %4794 = vsyncpa [#allocation6], 1
    %4795 = vsyncpa [#allocation9], 1
    %s4796 = scalar_lea.sflag [#allocation9], 1
    %4797 = vsyncpa %s4796, 1

</llo_original>
